<compile_context>
chip_gen: v5e
topology: v5e:2x2
jax: 0.10.0
libtpu: 0.0.40
codegen_flags: <defaults>
</compile_context>

<pallas_src>
import jax
import jax.numpy as jnp
from jax.experimental import pallas as pl
from jax.experimental.pallas import tpu as pltpu

D_IN = 128
HID = 1024
D_OUT = 784


def generator_kernel(x_ref, w1_ref, b1_ref, w2_ref, b2_ref, w3_ref, b3_ref, o_ref):
    # x arrives pre-cast to bf16; weights are bf16; matmuls accumulate in f32
    # on the MXU. Bias add / ReLU / tanh stay in f32 on the VPU / EUP.
    # Layer 1: Linear(128 -> 1024) + ReLU
    h1 = jnp.dot(x_ref[...], w1_ref[...], preferred_element_type=jnp.float32)
    h1 = jnp.maximum(h1 + b1_ref[...], 0.0)
    # Layer 2: Linear(1024 -> 1024) + ReLU
    h2 = jnp.dot(h1.astype(jnp.bfloat16), w2_ref[...],
                 preferred_element_type=jnp.float32)
    h2 = jnp.maximum(h2 + b2_ref[...], 0.0)
    # Layer 3: Linear(1024 -> 784) + Tanh.  784-wide store = 6 full 128-lane
    # vregs unmasked + one masked 16-lane tail (~2% store penalty, no extra
    # HBM pass outside the kernel).
    h3 = jnp.dot(h2.astype(jnp.bfloat16), w3_ref[...],
                 preferred_element_type=jnp.float32)
    o_ref[...] = jnp.tanh(h3 + b3_ref[...])


def init_params(key):
    """Deterministic init matching nn.Linear default (uniform +/-1/sqrt(fan_in)).
    Weights stored as [in, out] (transposed vs. PyTorch), f32."""
    def linear(k, fan_in, fan_out):
        kw, kb = jax.random.split(k)
        bound = 1.0 / jnp.sqrt(fan_in)
        w = jax.random.uniform(kw, (fan_in, fan_out), jnp.float32, -bound, bound)
        b = jax.random.uniform(kb, (1, fan_out), jnp.float32, -bound, bound)
        return w, b

    k1, k2, k3 = jax.random.split(key, 3)
    w1, b1 = linear(k1, D_IN, HID)
    w2, b2 = linear(k2, HID, HID)
    w3, b3 = linear(k3, HID, D_OUT)
    return (w1, b1, w2, b2, w3, b3)


def prepare_params(params):
    """One-time prep for the kernel: bf16 weights (halves weight HBM traffic,
    native MXU path), f32 biases, no lane padding."""
    w1, b1, w2, b2, w3, b3 = params
    return (w1.astype(jnp.bfloat16), b1,
            w2.astype(jnp.bfloat16), b2,
            w3.astype(jnp.bfloat16), b3)


def _choose_batch_tile(B):
    """Pick the batch tile.

    B <= 512: one grid step holding all rows (rounded to a multiple of 8).
      This regime is bound by the ~4 MiB bf16 weight DMA; splitting the grid
      would duplicate the resident weight copy per TensorCore (v7x) for no gain.
    B > 512: waste-aware tile from {512, 256, 128, 64} minimizing padded rows,
      preferring the largest tile on ties (fewer steps -> less fixed per-step
      overhead, MXU M-dim already saturated).
    """
    if B <= 512:
        return max(8, ((B + 7) // 8) * 8)
    best_tb, best_waste = None, None
    for tb in (512, 256, 128, 64):
        waste = (-B) % tb
        if best_waste is None or waste < best_waste:
            best_tb, best_waste = tb, waste
    return best_tb


def generator_forward(x, prepared_params):
    """x: [B, 128] float32 -> [B, 784] float32 (Linear/ReLU x2, Linear/Tanh)."""
    w1, b1, w2, b2, w3, b3 = prepared_params
    B, d_in = x.shape
    H = w1.shape[1]
    d_out = w3.shape[1]

    tb = _choose_batch_tile(B)
    Bp = pl.cdiv(B, tb) * tb

    # Cast x to bf16 once in the wrapper; pad rows only if the tile is ragged.
    xb = x.astype(jnp.bfloat16)
    if Bp != B:
        xb = jnp.pad(xb, ((0, Bp - B), (0, 0)))

    const = lambda i: (0, 0)   # invariant operands: same block every step -> fetched once

    out = pl.pallas_call(
        generator_kernel,
        out_shape=jax.ShapeDtypeStruct((Bp, d_out), jnp.float32),
        grid_spec=pltpu.PrefetchScalarGridSpec(
            num_scalar_prefetch=0,
            grid=(Bp // tb,),
            in_specs=[
                pl.BlockSpec((tb, d_in), lambda i: (i, 0)),   # x tile (bf16)
                pl.BlockSpec((d_in, H), const),               # W1 (bf16)
                pl.BlockSpec((1, H), const),                  # b1 (f32)
                pl.BlockSpec((H, H), const),                  # W2 (bf16)
                pl.BlockSpec((1, H), const),                  # b2 (f32)
                pl.BlockSpec((H, d_out), const),              # W3 (bf16, 784 wide)
                pl.BlockSpec((1, d_out), const),              # b3 (f32, 784 wide)
            ],
            out_specs=pl.BlockSpec((tb, d_out), lambda i: (i, 0)),
        ),
        compiler_params=pltpu.CompilerParams(
            dimension_semantics=("parallel",),
            vmem_limit_bytes=40 << 20,   # footprint ~20 MiB at tb=512; safe on v7x (64 MiB)
        ),
    )(xb, w1, b1, w2, b2, w3, b3)

    return out if Bp == B else out[:B]


def reference_forward_bf16(x, prepared_params):
    """Pure-JAX reference mirroring the kernel numerics (bf16 weights/inputs to
    each dot, f32 accumulation, f32 bias/ReLU/tanh)."""
    w1, b1, w2, b2, w3, b3 = prepared_params
    h = jnp.dot(x.astype(jnp.bfloat16), w1, preferred_element_type=jnp.float32) + b1
    h = jnp.maximum(h, 0.0)
    h = jnp.dot(h.astype(jnp.bfloat16), w2, preferred_element_type=jnp.float32) + b2
    h = jnp.maximum(h, 0.0)
    h = jnp.dot(h.astype(jnp.bfloat16), w3, preferred_element_type=jnp.float32) + b3
    return jnp.tanh(h)


def reference_forward_f32(x, params):
    """Full-f32 reference of the original module semantics."""
    w1, b1, w2, b2, w3, b3 = params
    h = jnp.maximum(x @ w1 + b1, 0.0)
    h = jnp.maximum(h @ w2 + b2, 0.0)
    return jnp.tanh(h @ w3 + b3)


if __name__ == "__main__":
    key = jax.random.PRNGKey(0)
    kx, kp = jax.random.split(key)

    B = 8                      # small batch of noise vectors
    x = jax.random.normal(kx, (B, D_IN), dtype=jnp.float32)
    params = init_params(kp)
    prepared = prepare_params(params)

    out = generator_forward(x, prepared)
    out = jax.block_until_ready(out)
    assert out.shape == (B, D_OUT), out.shape

    # Tight check vs. a reference with identical (bf16-weight) numerics.
    ref_bf16 = reference_forward_bf16(x, prepared)
    err_bf16 = float(jnp.max(jnp.abs(out - ref_bf16)))
    assert err_bf16 < 2e-3, err_bf16

    # Loose sanity check vs. the original full-f32 module math (bf16 weights
    # introduce ~1e-3 level deviations pre-tanh).
    ref_f32 = reference_forward_f32(x, params)
    err_f32 = float(jnp.max(jnp.abs(out - ref_f32)))
    assert err_f32 < 5e-2, err_f32

    print("KERNEL_OK")
</pallas_src>

<mosaic_0001>
module attributes {stable_mosaic.version = 11 : i64} {
  func.func @generator_kernel(%arg0: i32, %arg1: memref<8x128xbf16, #tpu.memory_space<vmem>>, %arg2: memref<128x1024xbf16, #tpu.memory_space<vmem>>, %arg3: memref<1x1024xf32, #tpu.memory_space<vmem>>, %arg4: memref<1024x1024xbf16, #tpu.memory_space<vmem>>, %arg5: memref<1x1024xf32, #tpu.memory_space<vmem>>, %arg6: memref<1024x784xbf16, #tpu.memory_space<vmem>>, %arg7: memref<1x784xf32, #tpu.memory_space<vmem>>, %arg8: memref<8x784xf32, #tpu.memory_space<vmem>>) attributes {dimension_semantics = [#tpu.dimension_semantics<parallel>], iteration_bounds = array<i64: 1>, scalar_prefetch = 0 : i64, scratch_operands = 0 : i64, tpu.core_type = #tpu.core_type<tc>, window_params = [{transform_indices = @transform_0, window_bounds = array<i64: 8, 128>}, {pipeline_mode = #tpu.pipeline_mode<synchronous>, transform_indices = @transform_1, window_bounds = array<i64: 128, 1024>}, {pipeline_mode = #tpu.pipeline_mode<synchronous>, transform_indices = @transform_2, window_bounds = array<i64: 1, 1024>}, {pipeline_mode = #tpu.pipeline_mode<synchronous>, transform_indices = @transform_3, window_bounds = array<i64: 1024, 1024>}, {pipeline_mode = #tpu.pipeline_mode<synchronous>, transform_indices = @transform_4, window_bounds = array<i64: 1, 1024>}, {pipeline_mode = #tpu.pipeline_mode<synchronous>, transform_indices = @transform_5, window_bounds = array<i64: 1024, 784>}, {pipeline_mode = #tpu.pipeline_mode<synchronous>, transform_indices = @transform_6, window_bounds = array<i64: 1, 784>}, {transform_indices = @transform_7, window_bounds = array<i64: 8, 784>}]} {
    %c0 = arith.constant 0 : index
    %c0_0 = arith.constant 0 : index
    %0 = vector.load %arg1[%c0, %c0_0] : memref<8x128xbf16, #tpu.memory_space<vmem>>, vector<8x128xbf16>
    %c0_1 = arith.constant 0 : index
    %c0_2 = arith.constant 0 : index
    %1 = vector.load %arg2[%c0_1, %c0_2] : memref<128x1024xbf16, #tpu.memory_space<vmem>>, vector<128x1024xbf16>
    %cst = arith.constant dense<0.000000e+00> : vector<8x1024xf32>
    %2 = tpu.matmul %0, %1, %cst {dimension_numbers = #tpu.dot_dimension_numbers<[1], [0], [0], [1], [0, 0, 1, 1], [], []>} : vector<8x128xbf16>, vector<128x1024xbf16>, vector<8x1024xf32> -> vector<8x1024xf32>
    %c0_3 = arith.constant 0 : index
    %c0_4 = arith.constant 0 : index
    %3 = vector.load %arg3[%c0_3, %c0_4] : memref<1x1024xf32, #tpu.memory_space<vmem>>, vector<1x1024xf32>
    %4 = vector.broadcast %3 : vector<1x1024xf32> to vector<8x1024xf32>
    %5 = arith.addf %2, %4 : vector<8x1024xf32>
    %cst_5 = arith.constant 0.000000e+00 : f32
    %6 = vector.broadcast %cst_5 : f32 to vector<8x1024xf32>
    %7 = arith.maximumf %5, %6 : vector<8x1024xf32>
    %8 = arith.truncf %7 : vector<8x1024xf32> to vector<8x1024xbf16>
    %c0_6 = arith.constant 0 : index
    %c0_7 = arith.constant 0 : index
    %9 = vector.load %arg4[%c0_6, %c0_7] : memref<1024x1024xbf16, #tpu.memory_space<vmem>>, vector<1024x1024xbf16>
    %cst_8 = arith.constant dense<0.000000e+00> : vector<8x1024xf32>
    %10 = tpu.matmul %8, %9, %cst_8 {dimension_numbers = #tpu.dot_dimension_numbers<[1], [0], [0], [1], [0, 0, 1, 1], [], []>} : vector<8x1024xbf16>, vector<1024x1024xbf16>, vector<8x1024xf32> -> vector<8x1024xf32>
    %c0_9 = arith.constant 0 : index
    %c0_10 = arith.constant 0 : index
    %11 = vector.load %arg5[%c0_9, %c0_10] : memref<1x1024xf32, #tpu.memory_space<vmem>>, vector<1x1024xf32>
    %12 = vector.broadcast %11 : vector<1x1024xf32> to vector<8x1024xf32>
    %13 = arith.addf %10, %12 : vector<8x1024xf32>
    %cst_11 = arith.constant 0.000000e+00 : f32
    %14 = vector.broadcast %cst_11 : f32 to vector<8x1024xf32>
    %15 = arith.maximumf %13, %14 : vector<8x1024xf32>
    %16 = arith.truncf %15 : vector<8x1024xf32> to vector<8x1024xbf16>
    %c0_12 = arith.constant 0 : index
    %c0_13 = arith.constant 0 : index
    %17 = vector.load %arg6[%c0_12, %c0_13] : memref<1024x784xbf16, #tpu.memory_space<vmem>>, vector<1024x784xbf16>
    %cst_14 = arith.constant dense<0.000000e+00> : vector<8x784xf32>
    %18 = tpu.matmul %16, %17, %cst_14 {dimension_numbers = #tpu.dot_dimension_numbers<[1], [0], [0], [1], [0, 0, 1, 1], [], []>} : vector<8x1024xbf16>, vector<1024x784xbf16>, vector<8x784xf32> -> vector<8x784xf32>
    %c0_15 = arith.constant 0 : index
    %c0_16 = arith.constant 0 : index
    %19 = vector.load %arg7[%c0_15, %c0_16] : memref<1x784xf32, #tpu.memory_space<vmem>>, vector<1x784xf32>
    %20 = vector.broadcast %19 : vector<1x784xf32> to vector<8x784xf32>
    %21 = arith.addf %18, %20 : vector<8x784xf32>
    %22 = math.tanh %21 : vector<8x784xf32>
    %c0_17 = arith.constant 0 : index
    %c0_18 = arith.constant 0 : index
    %23 = vector.load %arg8[%c0_17, %c0_18] : memref<8x784xf32, #tpu.memory_space<vmem>>, vector<8x784xf32>
    tpu.vector_store %arg8[%c0_17, %c0_18], %22 {strides = array<i32>} : memref<8x784xf32, #tpu.memory_space<vmem>>, vector<8x784xf32>,
    return
  }
  func.func @transform_0(%arg0: i32) -> (i32, i32) {
    %c0_i32 = arith.constant 0 : i32
    %c0_i32_0 = arith.constant 0 : i32
    return %arg0, %c0_i32 : i32, i32
  }
  func.func @transform_1(%arg0: i32) -> (i32, i32) {
    %c0_i32 = arith.constant 0 : i32
    %c0_i32_0 = arith.constant 0 : i32
    %c0_i32_1 = arith.constant 0 : i32
    return %c0_i32, %c0_i32_0 : i32, i32
  }
  func.func @transform_2(%arg0: i32) -> (i32, i32) {
    %c0_i32 = arith.constant 0 : i32
    %c0_i32_0 = arith.constant 0 : i32
    %c0_i32_1 = arith.constant 0 : i32
    return %c0_i32, %c0_i32_0 : i32, i32
  }
  func.func @transform_3(%arg0: i32) -> (i32, i32) {
    %c0_i32 = arith.constant 0 : i32
    %c0_i32_0 = arith.constant 0 : i32
    %c0_i32_1 = arith.constant 0 : i32
    return %c0_i32, %c0_i32_0 : i32, i32
  }
  func.func @transform_4(%arg0: i32) -> (i32, i32) {
    %c0_i32 = arith.constant 0 : i32
    %c0_i32_0 = arith.constant 0 : i32
    %c0_i32_1 = arith.constant 0 : i32
    return %c0_i32, %c0_i32_0 : i32, i32
  }
  func.func @transform_5(%arg0: i32) -> (i32, i32) {
    %c0_i32 = arith.constant 0 : i32
    %c0_i32_0 = arith.constant 0 : i32
    %c0_i32_1 = arith.constant 0 : i32
    return %c0_i32, %c0_i32_0 : i32, i32
  }
  func.func @transform_6(%arg0: i32) -> (i32, i32) {
    %c0_i32 = arith.constant 0 : i32
    %c0_i32_0 = arith.constant 0 : i32
    %c0_i32_1 = arith.constant 0 : i32
    return %c0_i32, %c0_i32_0 : i32, i32
  }
  func.func @transform_7(%arg0: i32) -> (i32, i32) {
    %c0_i32 = arith.constant 0 : i32
    %c0_i32_0 = arith.constant 0 : i32
    return %arg0, %c0_i32 : i32, i32
  }
}

</mosaic_0001>

<llo_original>
// kernel: tpu_custom_call.1
$region0: #{tpu_custom_call.1}
  #allocation0 [shape = 'u32[]', space=smem, size = 0x4, offset = 0x4, fixed_abs, tag = 'smem constant byte address 0x4 - core index']
  #allocation1 [shape = 'u32[72,128]{1,0:T(1,128)}', space=vmem, size = 0x9000, scoped, tag = 'internal scratch']
  %s0 = inlined_call_operand.vmem [shape: bf16[8,128], index: 0, kind: input, shape index: {}]
  %s1 = inlined_call_operand.vmem [shape: bf16[128,1024], index: 1, kind: input, shape index: {}]
  %s2 = inlined_call_operand.vmem [shape: f32[1,1024], index: 2, kind: input, shape index: {}]
  %s3 = inlined_call_operand.vmem [shape: bf16[1024,1024], index: 3, kind: input, shape index: {}]
  %s4 = inlined_call_operand.vmem [shape: f32[1,1024], index: 4, kind: input, shape index: {}]
  %s5 = inlined_call_operand.vmem [shape: bf16[1024,784], index: 5, kind: input, shape index: {}]
  %s6 = inlined_call_operand.vmem [shape: f32[1,784], index: 6, kind: input, shape index: {}]
  %s7 = inlined_call_operand.hbm [shape: f32[8,784], index: 7, kind: output, shape index: {}]
  %s8 = sld [smem:[#allocation0]]
  $region38: #{tpu_custom_call.1} parent=0
    _
  %s10 = ssub.s32 1, %s8
  %s11 = scalar_select 0, %s10, %s8
  $region1: #{tpu_custom_call.1} parent=0
    #allocation2 [shape = 'u8[28672]{0}', space=vmem, size = 0x7000, scoped, tag = 'output window, operand 0, single buffered']
    #allocation3 [shape = 's32[1]{0}', space=sflag, size = 0x4, scoped, tag = 'scoped memory for tpu_custom_call.1']
    %12 = vsyncpa [#allocation3], 0
    // Predicated region
    $region2: #{tpu_custom_call.1} parent=1 // pred_check
      _
    $region3: #{tpu_custom_call.1} parent=1 // pred_check_branch
      %14 = sbr.rel (0) target = $region5
    $region4: #{tpu_custom_call.1} parent=1 // pred_region
      _
    $region5: #{tpu_custom_call.1} parent=1 // pred_fallthru
      _
    // Predicated region
    $region6: #{tpu_custom_call.1} parent=1 // pred_check
      _
    $region7: #{tpu_custom_call.1} parent=1 // pred_check_branch
      %16 = sbr.rel (0) target = $region9
    $region8: #{tpu_custom_call.1} parent=1 // pred_region
      _
    $region9: #{tpu_custom_call.1} parent=1 // pred_fallthru
      _
    // Predicated region
    $region10: #{tpu_custom_call.1} parent=1 // pred_check
      _
    $region11: #{tpu_custom_call.1} parent=1 // pred_check_branch
      %18 = sbr.rel (0) target = $region13
    $region12: #{tpu_custom_call.1} parent=1 // pred_region
      _
    $region13: #{tpu_custom_call.1} parent=1 // pred_fallthru
      _
    // Predicated region
    $region14: #{tpu_custom_call.1} parent=1 // pred_check
      _
    $region15: #{tpu_custom_call.1} parent=1 // pred_check_branch
      %20 = sbr.rel (0) target = $region17
    $region16: #{tpu_custom_call.1} parent=1 // pred_region
      _
    $region17: #{tpu_custom_call.1} parent=1 // pred_fallthru
      _
    // Predicated region
    $region18: #{tpu_custom_call.1} parent=1 // pred_check
      _
    $region19: #{tpu_custom_call.1} parent=1 // pred_check_branch
      %22 = sbr.rel (0) target = $region21
    $region20: #{tpu_custom_call.1} parent=1 // pred_region
      _
    $region21: #{tpu_custom_call.1} parent=1 // pred_fallthru
      _
    // Predicated region
    $region22: #{tpu_custom_call.1} parent=1 // pred_check
      _
    $region23: #{tpu_custom_call.1} parent=1 // pred_check_branch
      %24 = sbr.rel (0) target = $region25
    $region24: #{tpu_custom_call.1} parent=1 // pred_region
      _
    $region25: #{tpu_custom_call.1} parent=1 // pred_fallthru
      _
    // Predicated region
    $region26: #{tpu_custom_call.1} parent=1 // pred_check
      _
    $region27: #{tpu_custom_call.1} parent=1 // pred_check_branch
      %26 = sbr.rel (0) target = $region29
    $region28: #{tpu_custom_call.1} parent=1 // pred_region
      _
    $region29: #{tpu_custom_call.1} parent=1 // pred_fallthru
      _
    %v27 = vld [vmem:[%s0] sm:$0xf]
    %v28 = vld [vmem:[%s1] sm:$0xff]
    %v29 = vld [vmem:[%s1 + $0x8] sm:$0xff]
    %v30 = vld [vmem:[%s1 + $0x10] sm:$0xff]
    %v31 = vld [vmem:[%s1 + $0x18] sm:$0xff]
    %v32 = vld [vmem:[%s1 + $0x20] sm:$0xff]
    %v33 = vld [vmem:[%s1 + $0x28] sm:$0xff]
    %v34 = vld [vmem:[%s1 + $0x30] sm:$0xff]
    %v35 = vld [vmem:[%s1 + $0x38] sm:$0xff]
    %v36 = vld [vmem:[%s1 + $0x40] sm:$0xff]
    %v37 = vld [vmem:[%s1 + $0x48] sm:$0xff]
    %v38 = vld [vmem:[%s1 + $0x50] sm:$0xff]
    %v39 = vld [vmem:[%s1 + $0x58] sm:$0xff]
    %v40 = vld [vmem:[%s1 + $0x60] sm:$0xff]
    %v41 = vld [vmem:[%s1 + $0x68] sm:$0xff]
    %v42 = vld [vmem:[%s1 + $0x70] sm:$0xff]
    %v43 = vld [vmem:[%s1 + $0x78] sm:$0xff]
    %v44 = vld [vmem:[%s1 + $0x80] sm:$0xff]
    %v45 = vld [vmem:[%s1 + $0x88] sm:$0xff]
    %v46 = vld [vmem:[%s1 + $0x90] sm:$0xff]
    %v47 = vld [vmem:[%s1 + $0x98] sm:$0xff]
    %v48 = vld [vmem:[%s1 + $0xa0] sm:$0xff]
    %v49 = vld [vmem:[%s1 + $0xa8] sm:$0xff]
    %v50 = vld [vmem:[%s1 + $0xb0] sm:$0xff]
    %v51 = vld [vmem:[%s1 + $0xb8] sm:$0xff]
    %v52 = vld [vmem:[%s1 + $0xc0] sm:$0xff]
    %v53 = vld [vmem:[%s1 + $0xc8] sm:$0xff]
    %v54 = vld [vmem:[%s1 + $0xd0] sm:$0xff]
    %v55 = vld [vmem:[%s1 + $0xd8] sm:$0xff]
    %v56 = vld [vmem:[%s1 + $0xe0] sm:$0xff]
    %v57 = vld [vmem:[%s1 + $0xe8] sm:$0xff]
    %v58 = vld [vmem:[%s1 + $0xf0] sm:$0xff]
    %v59 = vld [vmem:[%s1 + $0xf8] sm:$0xff]
    %v60 = vld [vmem:[%s1 + $0x100] sm:$0xff]
    %v61 = vld [vmem:[%s1 + $0x108] sm:$0xff]
    %v62 = vld [vmem:[%s1 + $0x110] sm:$0xff]
    %v63 = vld [vmem:[%s1 + $0x118] sm:$0xff]
    %v64 = vld [vmem:[%s1 + $0x120] sm:$0xff]
    %v65 = vld [vmem:[%s1 + $0x128] sm:$0xff]
    %v66 = vld [vmem:[%s1 + $0x130] sm:$0xff]
    %v67 = vld [vmem:[%s1 + $0x138] sm:$0xff]
    %v68 = vld [vmem:[%s1 + $0x140] sm:$0xff]
    %v69 = vld [vmem:[%s1 + $0x148] sm:$0xff]
    %v70 = vld [vmem:[%s1 + $0x150] sm:$0xff]
    %v71 = vld [vmem:[%s1 + $0x158] sm:$0xff]
    %v72 = vld [vmem:[%s1 + $0x160] sm:$0xff]
    %v73 = vld [vmem:[%s1 + $0x168] sm:$0xff]
    %v74 = vld [vmem:[%s1 + $0x170] sm:$0xff]
    %v75 = vld [vmem:[%s1 + $0x178] sm:$0xff]
    %v76 = vld [vmem:[%s1 + $0x180] sm:$0xff]
    %v77 = vld [vmem:[%s1 + $0x188] sm:$0xff]
    %v78 = vld [vmem:[%s1 + $0x190] sm:$0xff]
    %v79 = vld [vmem:[%s1 + $0x198] sm:$0xff]
    %v80 = vld [vmem:[%s1 + $0x1a0] sm:$0xff]
    %v81 = vld [vmem:[%s1 + $0x1a8] sm:$0xff]
    %v82 = vld [vmem:[%s1 + $0x1b0] sm:$0xff]
    %v83 = vld [vmem:[%s1 + $0x1b8] sm:$0xff]
    %v84 = vld [vmem:[%s1 + $0x1c0] sm:$0xff]
    %v85 = vld [vmem:[%s1 + $0x1c8] sm:$0xff]
    %v86 = vld [vmem:[%s1 + $0x1d0] sm:$0xff]
    %v87 = vld [vmem:[%s1 + $0x1d8] sm:$0xff]
    %v88 = vld [vmem:[%s1 + $0x1e0] sm:$0xff]
    %v89 = vld [vmem:[%s1 + $0x1e8] sm:$0xff]
    %v90 = vld [vmem:[%s1 + $0x1f0] sm:$0xff]
    %v91 = vld [vmem:[%s1 + $0x1f8] sm:$0xff]
    %v92 = vld [vmem:[%s2] sm:$0xff]
    %v94 = vperm.slane %v92, 0
    %v95 = vperm.slane %v92, 1
    %v96 = vperm.slane %v92, 2
    %v97 = vperm.slane %v92, 3
    %v98 = vperm.slane %v92, 4
    %v99 = vperm.slane %v92, 5
    %v100 = vperm.slane %v92, 6
    %v101 = vperm.slane %v92, 7
    %v174 = vunpack.c.l.b16 %v28
    %v175 = vunpack.c.h.b16 %v28
    %v176 = vunpack.c.l.b16 %v29
    %v177 = vunpack.c.h.b16 %v29
    %v178 = vunpack.c.l.b16 %v30
    %v179 = vunpack.c.h.b16 %v30
    %v180 = vunpack.c.l.b16 %v31
    %v181 = vunpack.c.h.b16 %v31
    %v182 = vunpack.c.l.b16 %v32
    %v183 = vunpack.c.h.b16 %v32
    %v184 = vunpack.c.l.b16 %v33
    %v185 = vunpack.c.h.b16 %v33
    %v186 = vunpack.c.l.b16 %v34
    %v187 = vunpack.c.h.b16 %v34
    %v188 = vunpack.c.l.b16 %v35
    %v189 = vunpack.c.h.b16 %v35
    %v190 = vunpack.c.l.b16 %v36
    %v191 = vunpack.c.h.b16 %v36
    %v192 = vunpack.c.l.b16 %v37
    %v193 = vunpack.c.h.b16 %v37
    %v194 = vunpack.c.l.b16 %v38
    %v195 = vunpack.c.h.b16 %v38
    %v196 = vunpack.c.l.b16 %v39
    %v197 = vunpack.c.h.b16 %v39
    %v198 = vunpack.c.l.b16 %v40
    %v199 = vunpack.c.h.b16 %v40
    %v200 = vunpack.c.l.b16 %v41
    %v201 = vunpack.c.h.b16 %v41
    %v202 = vunpack.c.l.b16 %v42
    %v203 = vunpack.c.h.b16 %v42
    %v204 = vunpack.c.l.b16 %v43
    %v205 = vunpack.c.h.b16 %v43
    %v206 = vunpack.c.l.b16 %v44
    %v207 = vunpack.c.h.b16 %v44
    %v208 = vunpack.c.l.b16 %v45
    %v209 = vunpack.c.h.b16 %v45
    %v210 = vunpack.c.l.b16 %v46
    %v211 = vunpack.c.h.b16 %v46
    %v212 = vunpack.c.l.b16 %v47
    %v213 = vunpack.c.h.b16 %v47
    %v214 = vunpack.c.l.b16 %v48
    %v215 = vunpack.c.h.b16 %v48
    %v216 = vunpack.c.l.b16 %v49
    %v217 = vunpack.c.h.b16 %v49
    %v218 = vunpack.c.l.b16 %v50
    %v219 = vunpack.c.h.b16 %v50
    %v220 = vunpack.c.l.b16 %v51
    %v221 = vunpack.c.h.b16 %v51
    %v222 = vunpack.c.l.b16 %v52
    %v223 = vunpack.c.h.b16 %v52
    %v224 = vunpack.c.l.b16 %v53
    %v225 = vunpack.c.h.b16 %v53
    %v226 = vunpack.c.l.b16 %v54
    %v227 = vunpack.c.h.b16 %v54
    %v228 = vunpack.c.l.b16 %v55
    %v229 = vunpack.c.h.b16 %v55
    %v230 = vunpack.c.l.b16 %v56
    %v231 = vunpack.c.h.b16 %v56
    %v232 = vunpack.c.l.b16 %v57
    %v233 = vunpack.c.h.b16 %v57
    %v234 = vunpack.c.l.b16 %v58
    %v235 = vunpack.c.h.b16 %v58
    %v236 = vunpack.c.l.b16 %v59
    %v237 = vunpack.c.h.b16 %v59
    %v238 = vunpack.c.l.b16 %v60
    %v239 = vunpack.c.h.b16 %v60
    %v240 = vunpack.c.l.b16 %v61
    %v241 = vunpack.c.h.b16 %v61
    %v242 = vunpack.c.l.b16 %v62
    %v243 = vunpack.c.h.b16 %v62
    %v244 = vunpack.c.l.b16 %v63
    %v245 = vunpack.c.h.b16 %v63
    %v246 = vunpack.c.l.b16 %v64
    %v247 = vunpack.c.h.b16 %v64
    %v248 = vunpack.c.l.b16 %v65
    %v249 = vunpack.c.h.b16 %v65
    %v250 = vunpack.c.l.b16 %v66
    %v251 = vunpack.c.h.b16 %v66
    %v252 = vunpack.c.l.b16 %v67
    %v253 = vunpack.c.h.b16 %v67
    %v254 = vunpack.c.l.b16 %v68
    %v255 = vunpack.c.h.b16 %v68
    %v256 = vunpack.c.l.b16 %v69
    %v257 = vunpack.c.h.b16 %v69
    %v258 = vunpack.c.l.b16 %v70
    %v259 = vunpack.c.h.b16 %v70
    %v260 = vunpack.c.l.b16 %v71
    %v261 = vunpack.c.h.b16 %v71
    %v262 = vunpack.c.l.b16 %v72
    %v263 = vunpack.c.h.b16 %v72
    %v264 = vunpack.c.l.b16 %v73
    %v265 = vunpack.c.h.b16 %v73
    %v266 = vunpack.c.l.b16 %v74
    %v267 = vunpack.c.h.b16 %v74
    %v268 = vunpack.c.l.b16 %v75
    %v269 = vunpack.c.h.b16 %v75
    %v270 = vunpack.c.l.b16 %v76
    %v271 = vunpack.c.h.b16 %v76
    %v272 = vunpack.c.l.b16 %v77
    %v273 = vunpack.c.h.b16 %v77
    %v274 = vunpack.c.l.b16 %v78
    %v275 = vunpack.c.h.b16 %v78
    %v276 = vunpack.c.l.b16 %v79
    %v277 = vunpack.c.h.b16 %v79
    %v278 = vunpack.c.l.b16 %v80
    %v279 = vunpack.c.h.b16 %v80
    %v280 = vunpack.c.l.b16 %v81
    %v281 = vunpack.c.h.b16 %v81
    %v282 = vunpack.c.l.b16 %v82
    %v283 = vunpack.c.h.b16 %v82
    %v284 = vunpack.c.l.b16 %v83
    %v285 = vunpack.c.h.b16 %v83
    %v286 = vunpack.c.l.b16 %v84
    %v287 = vunpack.c.h.b16 %v84
    %v288 = vunpack.c.l.b16 %v85
    %v289 = vunpack.c.h.b16 %v85
    %v290 = vunpack.c.l.b16 %v86
    %v291 = vunpack.c.h.b16 %v86
    %v292 = vunpack.c.l.b16 %v87
    %v293 = vunpack.c.h.b16 %v87
    %v294 = vunpack.c.l.b16 %v88
    %v295 = vunpack.c.h.b16 %v88
    %v296 = vunpack.c.l.b16 %v89
    %v297 = vunpack.c.h.b16 %v89
    %v298 = vunpack.c.l.b16 %v90
    %v299 = vunpack.c.h.b16 %v90
    %v300 = vunpack.c.l.b16 %v91
    %v301 = vunpack.c.h.b16 %v91
    %v302 = vpack.c.b16 %v182, %v174
    %v303 = vpack.c.b16 %v183, %v175
    %v304 = vpack.c.b16 %v184, %v176
    %v305 = vpack.c.b16 %v185, %v177
    %v306 = vpack.c.b16 %v186, %v178
    %v307 = vpack.c.b16 %v187, %v179
    %v308 = vpack.c.b16 %v188, %v180
    %v309 = vpack.c.b16 %v189, %v181
    %v310 = vpack.c.b16 %v198, %v190
    %v311 = vpack.c.b16 %v199, %v191
    %v312 = vpack.c.b16 %v200, %v192
    %v313 = vpack.c.b16 %v201, %v193
    %v314 = vpack.c.b16 %v202, %v194
    %v315 = vpack.c.b16 %v203, %v195
    %v316 = vpack.c.b16 %v204, %v196
    %v317 = vpack.c.b16 %v205, %v197
    %v318 = vpack.c.b16 %v214, %v206
    %v319 = vpack.c.b16 %v215, %v207
    %v320 = vpack.c.b16 %v216, %v208
    %v321 = vpack.c.b16 %v217, %v209
    %v322 = vpack.c.b16 %v218, %v210
    %v323 = vpack.c.b16 %v219, %v211
    %v324 = vpack.c.b16 %v220, %v212
    %v325 = vpack.c.b16 %v221, %v213
    %v326 = vpack.c.b16 %v230, %v222
    %v327 = vpack.c.b16 %v231, %v223
    %v328 = vpack.c.b16 %v232, %v224
    %v329 = vpack.c.b16 %v233, %v225
    %v330 = vpack.c.b16 %v234, %v226
    %v331 = vpack.c.b16 %v235, %v227
    %v332 = vpack.c.b16 %v236, %v228
    %v333 = vpack.c.b16 %v237, %v229
    %v334 = vpack.c.b16 %v246, %v238
    %v335 = vpack.c.b16 %v247, %v239
    %v336 = vpack.c.b16 %v248, %v240
    %v337 = vpack.c.b16 %v249, %v241
    %v338 = vpack.c.b16 %v250, %v242
    %v339 = vpack.c.b16 %v251, %v243
    %v340 = vpack.c.b16 %v252, %v244
    %v341 = vpack.c.b16 %v253, %v245
    %v342 = vpack.c.b16 %v262, %v254
    %v343 = vpack.c.b16 %v263, %v255
    %v344 = vpack.c.b16 %v264, %v256
    %v345 = vpack.c.b16 %v265, %v257
    %v346 = vpack.c.b16 %v266, %v258
    %v347 = vpack.c.b16 %v267, %v259
    %v348 = vpack.c.b16 %v268, %v260
    %v349 = vpack.c.b16 %v269, %v261
    %v350 = vpack.c.b16 %v278, %v270
    %v351 = vpack.c.b16 %v279, %v271
    %v352 = vpack.c.b16 %v280, %v272
    %v353 = vpack.c.b16 %v281, %v273
    %v354 = vpack.c.b16 %v282, %v274
    %v355 = vpack.c.b16 %v283, %v275
    %v356 = vpack.c.b16 %v284, %v276
    %v357 = vpack.c.b16 %v285, %v277
    %v358 = vpack.c.b16 %v294, %v286
    %v359 = vpack.c.b16 %v295, %v287
    %v360 = vpack.c.b16 %v296, %v288
    %v361 = vpack.c.b16 %v297, %v289
    %v362 = vpack.c.b16 %v298, %v290
    %v363 = vpack.c.b16 %v299, %v291
    %v364 = vpack.c.b16 %v300, %v292
    %v365 = vpack.c.b16 %v301, %v293
    %430 = vmatpush.bf16.msra.mxu0 %v358
    %431 = vmatpush.bf16.msra.mxu0 %v350
    %432 = vmatpush.bf16.msra.mxu0 %v342
    %433 = vmatpush.bf16.msra.mxu0 %v334
    %434 = vmatpush.bf16.msra.mxu0 %v326
    %435 = vmatpush.bf16.msra.mxu0 %v318
    %436 = vmatpush.bf16.msra.mxu0 %v310
    %437 = vmatpush.bf16.msra.mxu0 %v302
    %438 = vmatmul.bf16.gmra.mxu0 %v27
    %v439 = vpop.f32.mrf.mxu0
    %v440 = vadd.f32 %v94, %v439
    %v441 = vpop.f32.mrf.mxu0
    %442 = vdwg.mxu0
    %443 = vmatpush.bf16.msra.mxu0 %v359
    %444 = vmatpush.bf16.msra.mxu0 %v351
    %445 = vmatpush.bf16.msra.mxu0 %v343
    %446 = vmatpush.bf16.msra.mxu0 %v335
    %447 = vmatpush.bf16.msra.mxu0 %v327
    %448 = vmatpush.bf16.msra.mxu0 %v319
    %449 = vmatpush.bf16.msra.mxu0 %v311
    %450 = vmatpush.bf16.msra.mxu0 %v303
    %451 = vmatmul.bf16.gmra.mxu0 %v27
    %v452 = vpop.f32.mrf.mxu0
    %v453 = vadd.f32 %v95, %v452
    %v454 = vpop.f32.mrf.mxu0
    %455 = vdwg.mxu0
    %456 = vmatpush.bf16.msra.mxu0 %v360
    %457 = vmatpush.bf16.msra.mxu0 %v352
    %458 = vmatpush.bf16.msra.mxu0 %v344
    %459 = vmatpush.bf16.msra.mxu0 %v336
    %460 = vmatpush.bf16.msra.mxu0 %v328
    %461 = vmatpush.bf16.msra.mxu0 %v320
    %462 = vmatpush.bf16.msra.mxu0 %v312
    %463 = vmatpush.bf16.msra.mxu0 %v304
    %464 = vmatmul.bf16.gmra.mxu0 %v27
    %v465 = vpop.f32.mrf.mxu0
    %v466 = vadd.f32 %v96, %v465
    %v467 = vpop.f32.mrf.mxu0
    %468 = vdwg.mxu0
    %469 = vmatpush.bf16.msra.mxu0 %v361
    %470 = vmatpush.bf16.msra.mxu0 %v353
    %471 = vmatpush.bf16.msra.mxu0 %v345
    %472 = vmatpush.bf16.msra.mxu0 %v337
    %473 = vmatpush.bf16.msra.mxu0 %v329
    %474 = vmatpush.bf16.msra.mxu0 %v321
    %475 = vmatpush.bf16.msra.mxu0 %v313
    %476 = vmatpush.bf16.msra.mxu0 %v305
    %477 = vmatmul.bf16.gmra.mxu0 %v27
    %v478 = vpop.f32.mrf.mxu0
    %v479 = vadd.f32 %v97, %v478
    %v480 = vpop.f32.mrf.mxu0
    %481 = vdwg.mxu0
    %482 = vmatpush.bf16.msra.mxu0 %v362
    %483 = vmatpush.bf16.msra.mxu0 %v354
    %484 = vmatpush.bf16.msra.mxu0 %v346
    %485 = vmatpush.bf16.msra.mxu0 %v338
    %486 = vmatpush.bf16.msra.mxu0 %v330
    %487 = vmatpush.bf16.msra.mxu0 %v322
    %488 = vmatpush.bf16.msra.mxu0 %v314
    %489 = vmatpush.bf16.msra.mxu0 %v306
    %490 = vmatmul.bf16.gmra.mxu0 %v27
    %v491 = vpop.f32.mrf.mxu0
    %v492 = vadd.f32 %v98, %v491
    %v493 = vpop.f32.mrf.mxu0
    %494 = vdwg.mxu0
    %495 = vmatpush.bf16.msra.mxu0 %v363
    %496 = vmatpush.bf16.msra.mxu0 %v355
    %497 = vmatpush.bf16.msra.mxu0 %v347
    %498 = vmatpush.bf16.msra.mxu0 %v339
    %499 = vmatpush.bf16.msra.mxu0 %v331
    %500 = vmatpush.bf16.msra.mxu0 %v323
    %501 = vmatpush.bf16.msra.mxu0 %v315
    %502 = vmatpush.bf16.msra.mxu0 %v307
    %503 = vmatmul.bf16.gmra.mxu0 %v27
    %v504 = vpop.f32.mrf.mxu0
    %v505 = vadd.f32 %v99, %v504
    %v506 = vpop.f32.mrf.mxu0
    %507 = vdwg.mxu0
    %508 = vmatpush.bf16.msra.mxu0 %v364
    %509 = vmatpush.bf16.msra.mxu0 %v356
    %510 = vmatpush.bf16.msra.mxu0 %v348
    %511 = vmatpush.bf16.msra.mxu0 %v340
    %512 = vmatpush.bf16.msra.mxu0 %v332
    %513 = vmatpush.bf16.msra.mxu0 %v324
    %514 = vmatpush.bf16.msra.mxu0 %v316
    %515 = vmatpush.bf16.msra.mxu0 %v308
    %516 = vmatmul.bf16.gmra.mxu0 %v27
    %v517 = vpop.f32.mrf.mxu0
    %v518 = vadd.f32 %v100, %v517
    %v519 = vpop.f32.mrf.mxu0
    %520 = vdwg.mxu0
    %521 = vmatpush.bf16.msra.mxu0 %v365
    %522 = vmatpush.bf16.msra.mxu0 %v357
    %523 = vmatpush.bf16.msra.mxu0 %v349
    %524 = vmatpush.bf16.msra.mxu0 %v341
    %525 = vmatpush.bf16.msra.mxu0 %v333
    %526 = vmatpush.bf16.msra.mxu0 %v325
    %527 = vmatpush.bf16.msra.mxu0 %v317
    %528 = vmatpush.bf16.msra.mxu0 %v309
    %529 = vmatmul.bf16.gmra.mxu0 %v27
    %v530 = vpop.f32.mrf.mxu0
    %v531 = vadd.f32 %v101, %v530
    %v532 = vpop.f32.mrf.mxu0
    %533 = vdwg.mxu0
    %v534 = vmax.f32 %v440, 0.0
    %v535 = vmax.f32 %v453, 0.0
    %v536 = vmax.f32 %v466, 0.0
    %v537 = vmax.f32 %v479, 0.0
    %v538 = vmax.f32 %v492, 0.0
    %v539 = vmax.f32 %v505, 0.0
    %v540 = vmax.f32 %v518, 0.0
    %v541 = vmax.f32 %v531, 0.0
    %v542 = vpack.c.bf16 %v534, %v534
    %v543 = vpack.c.bf16 %v535, %v535
    %v544 = vpack.c.bf16 %v536, %v536
    %v545 = vpack.c.bf16 %v537, %v537
    %v546 = vpack.c.bf16 %v538, %v538
    %v547 = vpack.c.bf16 %v539, %v539
    %v548 = vpack.c.bf16 %v540, %v540
    %v549 = vpack.c.bf16 %v541, %v541
    %v550 = vld [vmem:[%s3] sm:$0xff]
    %v551 = vld [vmem:[%s3 + $0x8] sm:$0xff]
    %v552 = vld [vmem:[%s3 + $0x10] sm:$0xff]
    %v553 = vld [vmem:[%s3 + $0x18] sm:$0xff]
    %v554 = vld [vmem:[%s3 + $0x20] sm:$0xff]
    %v555 = vld [vmem:[%s3 + $0x28] sm:$0xff]
    %v556 = vld [vmem:[%s3 + $0x30] sm:$0xff]
    %v557 = vld [vmem:[%s3 + $0x38] sm:$0xff]
    %v558 = vld [vmem:[%s3 + $0x40] sm:$0xff]
    %v559 = vld [vmem:[%s3 + $0x48] sm:$0xff]
    %v560 = vld [vmem:[%s3 + $0x50] sm:$0xff]
    %v561 = vld [vmem:[%s3 + $0x58] sm:$0xff]
    %v562 = vld [vmem:[%s3 + $0x60] sm:$0xff]
    %v563 = vld [vmem:[%s3 + $0x68] sm:$0xff]
    %v564 = vld [vmem:[%s3 + $0x70] sm:$0xff]
    %v565 = vld [vmem:[%s3 + $0x78] sm:$0xff]
    %v566 = vld [vmem:[%s3 + $0x80] sm:$0xff]
    %v567 = vld [vmem:[%s3 + $0x88] sm:$0xff]
    %v568 = vld [vmem:[%s3 + $0x90] sm:$0xff]
    %v569 = vld [vmem:[%s3 + $0x98] sm:$0xff]
    %v570 = vld [vmem:[%s3 + $0xa0] sm:$0xff]
    %v571 = vld [vmem:[%s3 + $0xa8] sm:$0xff]
    %v572 = vld [vmem:[%s3 + $0xb0] sm:$0xff]
    %v573 = vld [vmem:[%s3 + $0xb8] sm:$0xff]
    %v574 = vld [vmem:[%s3 + $0xc0] sm:$0xff]
    %v575 = vld [vmem:[%s3 + $0xc8] sm:$0xff]
    %v576 = vld [vmem:[%s3 + $0xd0] sm:$0xff]
    %v577 = vld [vmem:[%s3 + $0xd8] sm:$0xff]
    %v578 = vld [vmem:[%s3 + $0xe0] sm:$0xff]
    %v579 = vld [vmem:[%s3 + $0xe8] sm:$0xff]
    %v580 = vld [vmem:[%s3 + $0xf0] sm:$0xff]
    %v581 = vld [vmem:[%s3 + $0xf8] sm:$0xff]
    %v582 = vld [vmem:[%s3 + $0x100] sm:$0xff]
    %v583 = vld [vmem:[%s3 + $0x108] sm:$0xff]
    %v584 = vld [vmem:[%s3 + $0x110] sm:$0xff]
    %v585 = vld [vmem:[%s3 + $0x118] sm:$0xff]
    %v586 = vld [vmem:[%s3 + $0x120] sm:$0xff]
    %v587 = vld [vmem:[%s3 + $0x128] sm:$0xff]
    %v588 = vld [vmem:[%s3 + $0x130] sm:$0xff]
    %v589 = vld [vmem:[%s3 + $0x138] sm:$0xff]
    %v590 = vld [vmem:[%s3 + $0x140] sm:$0xff]
    %v591 = vld [vmem:[%s3 + $0x148] sm:$0xff]
    %v592 = vld [vmem:[%s3 + $0x150] sm:$0xff]
    %v593 = vld [vmem:[%s3 + $0x158] sm:$0xff]
    %v594 = vld [vmem:[%s3 + $0x160] sm:$0xff]
    %v595 = vld [vmem:[%s3 + $0x168] sm:$0xff]
    %v596 = vld [vmem:[%s3 + $0x170] sm:$0xff]
    %v597 = vld [vmem:[%s3 + $0x178] sm:$0xff]
    %v598 = vld [vmem:[%s3 + $0x180] sm:$0xff]
    %v599 = vld [vmem:[%s3 + $0x188] sm:$0xff]
    %v600 = vld [vmem:[%s3 + $0x190] sm:$0xff]
    %v601 = vld [vmem:[%s3 + $0x198] sm:$0xff]
    %v602 = vld [vmem:[%s3 + $0x1a0] sm:$0xff]
    %v603 = vld [vmem:[%s3 + $0x1a8] sm:$0xff]
    %v604 = vld [vmem:[%s3 + $0x1b0] sm:$0xff]
    %v605 = vld [vmem:[%s3 + $0x1b8] sm:$0xff]
    %v606 = vld [vmem:[%s3 + $0x1c0] sm:$0xff]
    %v607 = vld [vmem:[%s3 + $0x1c8] sm:$0xff]
    %v608 = vld [vmem:[%s3 + $0x1d0] sm:$0xff]
    %v609 = vld [vmem:[%s3 + $0x1d8] sm:$0xff]
    %v610 = vld [vmem:[%s3 + $0x1e0] sm:$0xff]
    %v611 = vld [vmem:[%s3 + $0x1e8] sm:$0xff]
    %v612 = vld [vmem:[%s3 + $0x1f0] sm:$0xff]
    %v613 = vld [vmem:[%s3 + $0x1f8] sm:$0xff]
    %v614 = vld [vmem:[%s3 + $0x200] sm:$0xff]
    %v615 = vld [vmem:[%s3 + $0x208] sm:$0xff]
    %v616 = vld [vmem:[%s3 + $0x210] sm:$0xff]
    %v617 = vld [vmem:[%s3 + $0x218] sm:$0xff]
    %v618 = vld [vmem:[%s3 + $0x220] sm:$0xff]
    %v619 = vld [vmem:[%s3 + $0x228] sm:$0xff]
    %v620 = vld [vmem:[%s3 + $0x230] sm:$0xff]
    %v621 = vld [vmem:[%s3 + $0x238] sm:$0xff]
    %v622 = vld [vmem:[%s3 + $0x240] sm:$0xff]
    %v623 = vld [vmem:[%s3 + $0x248] sm:$0xff]
    %v624 = vld [vmem:[%s3 + $0x250] sm:$0xff]
    %v625 = vld [vmem:[%s3 + $0x258] sm:$0xff]
    %v626 = vld [vmem:[%s3 + $0x260] sm:$0xff]
    %v627 = vld [vmem:[%s3 + $0x268] sm:$0xff]
    %v628 = vld [vmem:[%s3 + $0x270] sm:$0xff]
    %v629 = vld [vmem:[%s3 + $0x278] sm:$0xff]
    %v630 = vld [vmem:[%s3 + $0x280] sm:$0xff]
    %v631 = vld [vmem:[%s3 + $0x288] sm:$0xff]
    %v632 = vld [vmem:[%s3 + $0x290] sm:$0xff]
    %v633 = vld [vmem:[%s3 + $0x298] sm:$0xff]
    %v634 = vld [vmem:[%s3 + $0x2a0] sm:$0xff]
    %v635 = vld [vmem:[%s3 + $0x2a8] sm:$0xff]
    %v636 = vld [vmem:[%s3 + $0x2b0] sm:$0xff]
    %v637 = vld [vmem:[%s3 + $0x2b8] sm:$0xff]
    %v638 = vld [vmem:[%s3 + $0x2c0] sm:$0xff]
    %v639 = vld [vmem:[%s3 + $0x2c8] sm:$0xff]
    %v640 = vld [vmem:[%s3 + $0x2d0] sm:$0xff]
    %v641 = vld [vmem:[%s3 + $0x2d8] sm:$0xff]
    %v642 = vld [vmem:[%s3 + $0x2e0] sm:$0xff]
    %v643 = vld [vmem:[%s3 + $0x2e8] sm:$0xff]
    %v644 = vld [vmem:[%s3 + $0x2f0] sm:$0xff]
    %v645 = vld [vmem:[%s3 + $0x2f8] sm:$0xff]
    %v646 = vld [vmem:[%s3 + $0x300] sm:$0xff]
    %v647 = vld [vmem:[%s3 + $0x308] sm:$0xff]
    %v648 = vld [vmem:[%s3 + $0x310] sm:$0xff]
    %v649 = vld [vmem:[%s3 + $0x318] sm:$0xff]
    %v650 = vld [vmem:[%s3 + $0x320] sm:$0xff]
    %v651 = vld [vmem:[%s3 + $0x328] sm:$0xff]
    %v652 = vld [vmem:[%s3 + $0x330] sm:$0xff]
    %v653 = vld [vmem:[%s3 + $0x338] sm:$0xff]
    %v654 = vld [vmem:[%s3 + $0x340] sm:$0xff]
    %v655 = vld [vmem:[%s3 + $0x348] sm:$0xff]
    %v656 = vld [vmem:[%s3 + $0x350] sm:$0xff]
    %v657 = vld [vmem:[%s3 + $0x358] sm:$0xff]
    %v658 = vld [vmem:[%s3 + $0x360] sm:$0xff]
    %v659 = vld [vmem:[%s3 + $0x368] sm:$0xff]
    %v660 = vld [vmem:[%s3 + $0x370] sm:$0xff]
    %v661 = vld [vmem:[%s3 + $0x378] sm:$0xff]
    %v662 = vld [vmem:[%s3 + $0x380] sm:$0xff]
    %v663 = vld [vmem:[%s3 + $0x388] sm:$0xff]
    %v664 = vld [vmem:[%s3 + $0x390] sm:$0xff]
    %v665 = vld [vmem:[%s3 + $0x398] sm:$0xff]
    %v666 = vld [vmem:[%s3 + $0x3a0] sm:$0xff]
    %v667 = vld [vmem:[%s3 + $0x3a8] sm:$0xff]
    %v668 = vld [vmem:[%s3 + $0x3b0] sm:$0xff]
    %v669 = vld [vmem:[%s3 + $0x3b8] sm:$0xff]
    %v670 = vld [vmem:[%s3 + $0x3c0] sm:$0xff]
    %v671 = vld [vmem:[%s3 + $0x3c8] sm:$0xff]
    %v672 = vld [vmem:[%s3 + $0x3d0] sm:$0xff]
    %v673 = vld [vmem:[%s3 + $0x3d8] sm:$0xff]
    %v674 = vld [vmem:[%s3 + $0x3e0] sm:$0xff]
    %v675 = vld [vmem:[%s3 + $0x3e8] sm:$0xff]
    %v676 = vld [vmem:[%s3 + $0x3f0] sm:$0xff]
    %v677 = vld [vmem:[%s3 + $0x3f8] sm:$0xff]
    %v678 = vld [vmem:[%s3 + $0x400] sm:$0xff]
    %v679 = vld [vmem:[%s3 + $0x408] sm:$0xff]
    %v680 = vld [vmem:[%s3 + $0x410] sm:$0xff]
    %v681 = vld [vmem:[%s3 + $0x418] sm:$0xff]
    %v682 = vld [vmem:[%s3 + $0x420] sm:$0xff]
    %v683 = vld [vmem:[%s3 + $0x428] sm:$0xff]
    %v684 = vld [vmem:[%s3 + $0x430] sm:$0xff]
    %v685 = vld [vmem:[%s3 + $0x438] sm:$0xff]
    %v686 = vld [vmem:[%s3 + $0x440] sm:$0xff]
    %v687 = vld [vmem:[%s3 + $0x448] sm:$0xff]
    %v688 = vld [vmem:[%s3 + $0x450] sm:$0xff]
    %v689 = vld [vmem:[%s3 + $0x458] sm:$0xff]
    %v690 = vld [vmem:[%s3 + $0x460] sm:$0xff]
    %v691 = vld [vmem:[%s3 + $0x468] sm:$0xff]
    %v692 = vld [vmem:[%s3 + $0x470] sm:$0xff]
    %v693 = vld [vmem:[%s3 + $0x478] sm:$0xff]
    %v694 = vld [vmem:[%s3 + $0x480] sm:$0xff]
    %v695 = vld [vmem:[%s3 + $0x488] sm:$0xff]
    %v696 = vld [vmem:[%s3 + $0x490] sm:$0xff]
    %v697 = vld [vmem:[%s3 + $0x498] sm:$0xff]
    %v698 = vld [vmem:[%s3 + $0x4a0] sm:$0xff]
    %v699 = vld [vmem:[%s3 + $0x4a8] sm:$0xff]
    %v700 = vld [vmem:[%s3 + $0x4b0] sm:$0xff]
    %v701 = vld [vmem:[%s3 + $0x4b8] sm:$0xff]
    %v702 = vld [vmem:[%s3 + $0x4c0] sm:$0xff]
    %v703 = vld [vmem:[%s3 + $0x4c8] sm:$0xff]
    %v704 = vld [vmem:[%s3 + $0x4d0] sm:$0xff]
    %v705 = vld [vmem:[%s3 + $0x4d8] sm:$0xff]
    %v706 = vld [vmem:[%s3 + $0x4e0] sm:$0xff]
    %v707 = vld [vmem:[%s3 + $0x4e8] sm:$0xff]
    %v708 = vld [vmem:[%s3 + $0x4f0] sm:$0xff]
    %v709 = vld [vmem:[%s3 + $0x4f8] sm:$0xff]
    %v710 = vld [vmem:[%s3 + $0x500] sm:$0xff]
    %v711 = vld [vmem:[%s3 + $0x508] sm:$0xff]
    %v712 = vld [vmem:[%s3 + $0x510] sm:$0xff]
    %v713 = vld [vmem:[%s3 + $0x518] sm:$0xff]
    %v714 = vld [vmem:[%s3 + $0x520] sm:$0xff]
    %v715 = vld [vmem:[%s3 + $0x528] sm:$0xff]
    %v716 = vld [vmem:[%s3 + $0x530] sm:$0xff]
    %v717 = vld [vmem:[%s3 + $0x538] sm:$0xff]
    %v718 = vld [vmem:[%s3 + $0x540] sm:$0xff]
    %v719 = vld [vmem:[%s3 + $0x548] sm:$0xff]
    %v720 = vld [vmem:[%s3 + $0x550] sm:$0xff]
    %v721 = vld [vmem:[%s3 + $0x558] sm:$0xff]
    %v722 = vld [vmem:[%s3 + $0x560] sm:$0xff]
    %v723 = vld [vmem:[%s3 + $0x568] sm:$0xff]
    %v724 = vld [vmem:[%s3 + $0x570] sm:$0xff]
    %v725 = vld [vmem:[%s3 + $0x578] sm:$0xff]
    %v726 = vld [vmem:[%s3 + $0x580] sm:$0xff]
    %v727 = vld [vmem:[%s3 + $0x588] sm:$0xff]
    %v728 = vld [vmem:[%s3 + $0x590] sm:$0xff]
    %v729 = vld [vmem:[%s3 + $0x598] sm:$0xff]
    %v730 = vld [vmem:[%s3 + $0x5a0] sm:$0xff]
    %v731 = vld [vmem:[%s3 + $0x5a8] sm:$0xff]
    %v732 = vld [vmem:[%s3 + $0x5b0] sm:$0xff]
    %v733 = vld [vmem:[%s3 + $0x5b8] sm:$0xff]
    %v734 = vld [vmem:[%s3 + $0x5c0] sm:$0xff]
    %v735 = vld [vmem:[%s3 + $0x5c8] sm:$0xff]
    %v736 = vld [vmem:[%s3 + $0x5d0] sm:$0xff]
    %v737 = vld [vmem:[%s3 + $0x5d8] sm:$0xff]
    %v738 = vld [vmem:[%s3 + $0x5e0] sm:$0xff]
    %v739 = vld [vmem:[%s3 + $0x5e8] sm:$0xff]
    %v740 = vld [vmem:[%s3 + $0x5f0] sm:$0xff]
    %v741 = vld [vmem:[%s3 + $0x5f8] sm:$0xff]
    %v742 = vld [vmem:[%s3 + $0x600] sm:$0xff]
    %v743 = vld [vmem:[%s3 + $0x608] sm:$0xff]
    %v744 = vld [vmem:[%s3 + $0x610] sm:$0xff]
    %v745 = vld [vmem:[%s3 + $0x618] sm:$0xff]
    %v746 = vld [vmem:[%s3 + $0x620] sm:$0xff]
    %v747 = vld [vmem:[%s3 + $0x628] sm:$0xff]
    %v748 = vld [vmem:[%s3 + $0x630] sm:$0xff]
    %v749 = vld [vmem:[%s3 + $0x638] sm:$0xff]
    %v750 = vld [vmem:[%s3 + $0x640] sm:$0xff]
    %v751 = vld [vmem:[%s3 + $0x648] sm:$0xff]
    %v752 = vld [vmem:[%s3 + $0x650] sm:$0xff]
    %v753 = vld [vmem:[%s3 + $0x658] sm:$0xff]
    %v754 = vld [vmem:[%s3 + $0x660] sm:$0xff]
    %v755 = vld [vmem:[%s3 + $0x668] sm:$0xff]
    %v756 = vld [vmem:[%s3 + $0x670] sm:$0xff]
    %v757 = vld [vmem:[%s3 + $0x678] sm:$0xff]
    %v758 = vld [vmem:[%s3 + $0x680] sm:$0xff]
    %v759 = vld [vmem:[%s3 + $0x688] sm:$0xff]
    %v760 = vld [vmem:[%s3 + $0x690] sm:$0xff]
    %v761 = vld [vmem:[%s3 + $0x698] sm:$0xff]
    %v762 = vld [vmem:[%s3 + $0x6a0] sm:$0xff]
    %v763 = vld [vmem:[%s3 + $0x6a8] sm:$0xff]
    %v764 = vld [vmem:[%s3 + $0x6b0] sm:$0xff]
    %v765 = vld [vmem:[%s3 + $0x6b8] sm:$0xff]
    %v766 = vld [vmem:[%s3 + $0x6c0] sm:$0xff]
    %v767 = vld [vmem:[%s3 + $0x6c8] sm:$0xff]
    %v768 = vld [vmem:[%s3 + $0x6d0] sm:$0xff]
    %v769 = vld [vmem:[%s3 + $0x6d8] sm:$0xff]
    %v770 = vld [vmem:[%s3 + $0x6e0] sm:$0xff]
    %v771 = vld [vmem:[%s3 + $0x6e8] sm:$0xff]
    %v772 = vld [vmem:[%s3 + $0x6f0] sm:$0xff]
    %v773 = vld [vmem:[%s3 + $0x6f8] sm:$0xff]
    %v774 = vld [vmem:[%s3 + $0x700] sm:$0xff]
    %v775 = vld [vmem:[%s3 + $0x708] sm:$0xff]
    %v776 = vld [vmem:[%s3 + $0x710] sm:$0xff]
    %v777 = vld [vmem:[%s3 + $0x718] sm:$0xff]
    %v778 = vld [vmem:[%s3 + $0x720] sm:$0xff]
    %v779 = vld [vmem:[%s3 + $0x728] sm:$0xff]
    %v780 = vld [vmem:[%s3 + $0x730] sm:$0xff]
    %v781 = vld [vmem:[%s3 + $0x738] sm:$0xff]
    %v782 = vld [vmem:[%s3 + $0x740] sm:$0xff]
    %v783 = vld [vmem:[%s3 + $0x748] sm:$0xff]
    %v784 = vld [vmem:[%s3 + $0x750] sm:$0xff]
    %v785 = vld [vmem:[%s3 + $0x758] sm:$0xff]
    %v786 = vld [vmem:[%s3 + $0x760] sm:$0xff]
    %v787 = vld [vmem:[%s3 + $0x768] sm:$0xff]
    %v788 = vld [vmem:[%s3 + $0x770] sm:$0xff]
    %v789 = vld [vmem:[%s3 + $0x778] sm:$0xff]
    %v790 = vld [vmem:[%s3 + $0x780] sm:$0xff]
    %v791 = vld [vmem:[%s3 + $0x788] sm:$0xff]
    %v792 = vld [vmem:[%s3 + $0x790] sm:$0xff]
    %v793 = vld [vmem:[%s3 + $0x798] sm:$0xff]
    %v794 = vld [vmem:[%s3 + $0x7a0] sm:$0xff]
    %v795 = vld [vmem:[%s3 + $0x7a8] sm:$0xff]
    %v796 = vld [vmem:[%s3 + $0x7b0] sm:$0xff]
    %v797 = vld [vmem:[%s3 + $0x7b8] sm:$0xff]
    %v798 = vld [vmem:[%s3 + $0x7c0] sm:$0xff]
    %v799 = vld [vmem:[%s3 + $0x7c8] sm:$0xff]
    %v800 = vld [vmem:[%s3 + $0x7d0] sm:$0xff]
    %v801 = vld [vmem:[%s3 + $0x7d8] sm:$0xff]
    %v802 = vld [vmem:[%s3 + $0x7e0] sm:$0xff]
    %v803 = vld [vmem:[%s3 + $0x7e8] sm:$0xff]
    %v804 = vld [vmem:[%s3 + $0x7f0] sm:$0xff]
    %v805 = vld [vmem:[%s3 + $0x7f8] sm:$0xff]
    %v806 = vld [vmem:[%s3 + $0x800] sm:$0xff]
    %v807 = vld [vmem:[%s3 + $0x808] sm:$0xff]
    %v808 = vld [vmem:[%s3 + $0x810] sm:$0xff]
    %v809 = vld [vmem:[%s3 + $0x818] sm:$0xff]
    %v810 = vld [vmem:[%s3 + $0x820] sm:$0xff]
    %v811 = vld [vmem:[%s3 + $0x828] sm:$0xff]
    %v812 = vld [vmem:[%s3 + $0x830] sm:$0xff]
    %v813 = vld [vmem:[%s3 + $0x838] sm:$0xff]
    %v814 = vld [vmem:[%s3 + $0x840] sm:$0xff]
    %v815 = vld [vmem:[%s3 + $0x848] sm:$0xff]
    %v816 = vld [vmem:[%s3 + $0x850] sm:$0xff]
    %v817 = vld [vmem:[%s3 + $0x858] sm:$0xff]
    %v818 = vld [vmem:[%s3 + $0x860] sm:$0xff]
    %v819 = vld [vmem:[%s3 + $0x868] sm:$0xff]
    %v820 = vld [vmem:[%s3 + $0x870] sm:$0xff]
    %v821 = vld [vmem:[%s3 + $0x878] sm:$0xff]
    %v822 = vld [vmem:[%s3 + $0x880] sm:$0xff]
    %v823 = vld [vmem:[%s3 + $0x888] sm:$0xff]
    %v824 = vld [vmem:[%s3 + $0x890] sm:$0xff]
    %v825 = vld [vmem:[%s3 + $0x898] sm:$0xff]
    %v826 = vld [vmem:[%s3 + $0x8a0] sm:$0xff]
    %v827 = vld [vmem:[%s3 + $0x8a8] sm:$0xff]
    %v828 = vld [vmem:[%s3 + $0x8b0] sm:$0xff]
    %v829 = vld [vmem:[%s3 + $0x8b8] sm:$0xff]
    %v830 = vld [vmem:[%s3 + $0x8c0] sm:$0xff]
    %v831 = vld [vmem:[%s3 + $0x8c8] sm:$0xff]
    %v832 = vld [vmem:[%s3 + $0x8d0] sm:$0xff]
    %v833 = vld [vmem:[%s3 + $0x8d8] sm:$0xff]
    %v834 = vld [vmem:[%s3 + $0x8e0] sm:$0xff]
    %v835 = vld [vmem:[%s3 + $0x8e8] sm:$0xff]
    %v836 = vld [vmem:[%s3 + $0x8f0] sm:$0xff]
    %v837 = vld [vmem:[%s3 + $0x8f8] sm:$0xff]
    %v838 = vld [vmem:[%s3 + $0x900] sm:$0xff]
    %v839 = vld [vmem:[%s3 + $0x908] sm:$0xff]
    %v840 = vld [vmem:[%s3 + $0x910] sm:$0xff]
    %v841 = vld [vmem:[%s3 + $0x918] sm:$0xff]
    %v842 = vld [vmem:[%s3 + $0x920] sm:$0xff]
    %v843 = vld [vmem:[%s3 + $0x928] sm:$0xff]
    %v844 = vld [vmem:[%s3 + $0x930] sm:$0xff]
    %v845 = vld [vmem:[%s3 + $0x938] sm:$0xff]
    %v846 = vld [vmem:[%s3 + $0x940] sm:$0xff]
    %v847 = vld [vmem:[%s3 + $0x948] sm:$0xff]
    %v848 = vld [vmem:[%s3 + $0x950] sm:$0xff]
    %v849 = vld [vmem:[%s3 + $0x958] sm:$0xff]
    %v850 = vld [vmem:[%s3 + $0x960] sm:$0xff]
    %v851 = vld [vmem:[%s3 + $0x968] sm:$0xff]
    %v852 = vld [vmem:[%s3 + $0x970] sm:$0xff]
    %v853 = vld [vmem:[%s3 + $0x978] sm:$0xff]
    %v854 = vld [vmem:[%s3 + $0x980] sm:$0xff]
    %v855 = vld [vmem:[%s3 + $0x988] sm:$0xff]
    %v856 = vld [vmem:[%s3 + $0x990] sm:$0xff]
    %v857 = vld [vmem:[%s3 + $0x998] sm:$0xff]
    %v858 = vld [vmem:[%s3 + $0x9a0] sm:$0xff]
    %v859 = vld [vmem:[%s3 + $0x9a8] sm:$0xff]
    %v860 = vld [vmem:[%s3 + $0x9b0] sm:$0xff]
    %v861 = vld [vmem:[%s3 + $0x9b8] sm:$0xff]
    %v862 = vld [vmem:[%s3 + $0x9c0] sm:$0xff]
    %v863 = vld [vmem:[%s3 + $0x9c8] sm:$0xff]
    %v864 = vld [vmem:[%s3 + $0x9d0] sm:$0xff]
    %v865 = vld [vmem:[%s3 + $0x9d8] sm:$0xff]
    %v866 = vld [vmem:[%s3 + $0x9e0] sm:$0xff]
    %v867 = vld [vmem:[%s3 + $0x9e8] sm:$0xff]
    %v868 = vld [vmem:[%s3 + $0x9f0] sm:$0xff]
    %v869 = vld [vmem:[%s3 + $0x9f8] sm:$0xff]
    %v870 = vld [vmem:[%s3 + $0xa00] sm:$0xff]
    %v871 = vld [vmem:[%s3 + $0xa08] sm:$0xff]
    %v872 = vld [vmem:[%s3 + $0xa10] sm:$0xff]
    %v873 = vld [vmem:[%s3 + $0xa18] sm:$0xff]
    %v874 = vld [vmem:[%s3 + $0xa20] sm:$0xff]
    %v875 = vld [vmem:[%s3 + $0xa28] sm:$0xff]
    %v876 = vld [vmem:[%s3 + $0xa30] sm:$0xff]
    %v877 = vld [vmem:[%s3 + $0xa38] sm:$0xff]
    %v878 = vld [vmem:[%s3 + $0xa40] sm:$0xff]
    %v879 = vld [vmem:[%s3 + $0xa48] sm:$0xff]
    %v880 = vld [vmem:[%s3 + $0xa50] sm:$0xff]
    %v881 = vld [vmem:[%s3 + $0xa58] sm:$0xff]
    %v882 = vld [vmem:[%s3 + $0xa60] sm:$0xff]
    %v883 = vld [vmem:[%s3 + $0xa68] sm:$0xff]
    %v884 = vld [vmem:[%s3 + $0xa70] sm:$0xff]
    %v885 = vld [vmem:[%s3 + $0xa78] sm:$0xff]
    %v886 = vld [vmem:[%s3 + $0xa80] sm:$0xff]
    %v887 = vld [vmem:[%s3 + $0xa88] sm:$0xff]
    %v888 = vld [vmem:[%s3 + $0xa90] sm:$0xff]
    %v889 = vld [vmem:[%s3 + $0xa98] sm:$0xff]
    %v890 = vld [vmem:[%s3 + $0xaa0] sm:$0xff]
    %v891 = vld [vmem:[%s3 + $0xaa8] sm:$0xff]
    %v892 = vld [vmem:[%s3 + $0xab0] sm:$0xff]
    %v893 = vld [vmem:[%s3 + $0xab8] sm:$0xff]
    %v894 = vld [vmem:[%s3 + $0xac0] sm:$0xff]
    %v895 = vld [vmem:[%s3 + $0xac8] sm:$0xff]
    %v896 = vld [vmem:[%s3 + $0xad0] sm:$0xff]
    %v897 = vld [vmem:[%s3 + $0xad8] sm:$0xff]
    %v898 = vld [vmem:[%s3 + $0xae0] sm:$0xff]
    %v899 = vld [vmem:[%s3 + $0xae8] sm:$0xff]
    %v900 = vld [vmem:[%s3 + $0xaf0] sm:$0xff]
    %v901 = vld [vmem:[%s3 + $0xaf8] sm:$0xff]
    %v902 = vld [vmem:[%s3 + $0xb00] sm:$0xff]
    %v903 = vld [vmem:[%s3 + $0xb08] sm:$0xff]
    %v904 = vld [vmem:[%s3 + $0xb10] sm:$0xff]
    %v905 = vld [vmem:[%s3 + $0xb18] sm:$0xff]
    %v906 = vld [vmem:[%s3 + $0xb20] sm:$0xff]
    %v907 = vld [vmem:[%s3 + $0xb28] sm:$0xff]
    %v908 = vld [vmem:[%s3 + $0xb30] sm:$0xff]
    %v909 = vld [vmem:[%s3 + $0xb38] sm:$0xff]
    %v910 = vld [vmem:[%s3 + $0xb40] sm:$0xff]
    %v911 = vld [vmem:[%s3 + $0xb48] sm:$0xff]
    %v912 = vld [vmem:[%s3 + $0xb50] sm:$0xff]
    %v913 = vld [vmem:[%s3 + $0xb58] sm:$0xff]
    %v914 = vld [vmem:[%s3 + $0xb60] sm:$0xff]
    %v915 = vld [vmem:[%s3 + $0xb68] sm:$0xff]
    %v916 = vld [vmem:[%s3 + $0xb70] sm:$0xff]
    %v917 = vld [vmem:[%s3 + $0xb78] sm:$0xff]
    %v918 = vld [vmem:[%s3 + $0xb80] sm:$0xff]
    %v919 = vld [vmem:[%s3 + $0xb88] sm:$0xff]
    %v920 = vld [vmem:[%s3 + $0xb90] sm:$0xff]
    %v921 = vld [vmem:[%s3 + $0xb98] sm:$0xff]
    %v922 = vld [vmem:[%s3 + $0xba0] sm:$0xff]
    %v923 = vld [vmem:[%s3 + $0xba8] sm:$0xff]
    %v924 = vld [vmem:[%s3 + $0xbb0] sm:$0xff]
    %v925 = vld [vmem:[%s3 + $0xbb8] sm:$0xff]
    %v926 = vld [vmem:[%s3 + $0xbc0] sm:$0xff]
    %v927 = vld [vmem:[%s3 + $0xbc8] sm:$0xff]
    %v928 = vld [vmem:[%s3 + $0xbd0] sm:$0xff]
    %v929 = vld [vmem:[%s3 + $0xbd8] sm:$0xff]
    %v930 = vld [vmem:[%s3 + $0xbe0] sm:$0xff]
    %v931 = vld [vmem:[%s3 + $0xbe8] sm:$0xff]
    %v932 = vld [vmem:[%s3 + $0xbf0] sm:$0xff]
    %v933 = vld [vmem:[%s3 + $0xbf8] sm:$0xff]
    %v934 = vld [vmem:[%s3 + $0xc00] sm:$0xff]
    %v935 = vld [vmem:[%s3 + $0xc08] sm:$0xff]
    %v936 = vld [vmem:[%s3 + $0xc10] sm:$0xff]
    %v937 = vld [vmem:[%s3 + $0xc18] sm:$0xff]
    %v938 = vld [vmem:[%s3 + $0xc20] sm:$0xff]
    %v939 = vld [vmem:[%s3 + $0xc28] sm:$0xff]
    %v940 = vld [vmem:[%s3 + $0xc30] sm:$0xff]
    %v941 = vld [vmem:[%s3 + $0xc38] sm:$0xff]
    %v942 = vld [vmem:[%s3 + $0xc40] sm:$0xff]
    %v943 = vld [vmem:[%s3 + $0xc48] sm:$0xff]
    %v944 = vld [vmem:[%s3 + $0xc50] sm:$0xff]
    %v945 = vld [vmem:[%s3 + $0xc58] sm:$0xff]
    %v946 = vld [vmem:[%s3 + $0xc60] sm:$0xff]
    %v947 = vld [vmem:[%s3 + $0xc68] sm:$0xff]
    %v948 = vld [vmem:[%s3 + $0xc70] sm:$0xff]
    %v949 = vld [vmem:[%s3 + $0xc78] sm:$0xff]
    %v950 = vld [vmem:[%s3 + $0xc80] sm:$0xff]
    %v951 = vld [vmem:[%s3 + $0xc88] sm:$0xff]
    %v952 = vld [vmem:[%s3 + $0xc90] sm:$0xff]
    %v953 = vld [vmem:[%s3 + $0xc98] sm:$0xff]
    %v954 = vld [vmem:[%s3 + $0xca0] sm:$0xff]
    %v955 = vld [vmem:[%s3 + $0xca8] sm:$0xff]
    %v956 = vld [vmem:[%s3 + $0xcb0] sm:$0xff]
    %v957 = vld [vmem:[%s3 + $0xcb8] sm:$0xff]
    %v958 = vld [vmem:[%s3 + $0xcc0] sm:$0xff]
    %v959 = vld [vmem:[%s3 + $0xcc8] sm:$0xff]
    %v960 = vld [vmem:[%s3 + $0xcd0] sm:$0xff]
    %v961 = vld [vmem:[%s3 + $0xcd8] sm:$0xff]
    %v962 = vld [vmem:[%s3 + $0xce0] sm:$0xff]
    %v963 = vld [vmem:[%s3 + $0xce8] sm:$0xff]
    %v964 = vld [vmem:[%s3 + $0xcf0] sm:$0xff]
    %v965 = vld [vmem:[%s3 + $0xcf8] sm:$0xff]
    %v966 = vld [vmem:[%s3 + $0xd00] sm:$0xff]
    %v967 = vld [vmem:[%s3 + $0xd08] sm:$0xff]
    %v968 = vld [vmem:[%s3 + $0xd10] sm:$0xff]
    %v969 = vld [vmem:[%s3 + $0xd18] sm:$0xff]
    %v970 = vld [vmem:[%s3 + $0xd20] sm:$0xff]
    %v971 = vld [vmem:[%s3 + $0xd28] sm:$0xff]
    %v972 = vld [vmem:[%s3 + $0xd30] sm:$0xff]
    %v973 = vld [vmem:[%s3 + $0xd38] sm:$0xff]
    %v974 = vld [vmem:[%s3 + $0xd40] sm:$0xff]
    %v975 = vld [vmem:[%s3 + $0xd48] sm:$0xff]
    %v976 = vld [vmem:[%s3 + $0xd50] sm:$0xff]
    %v977 = vld [vmem:[%s3 + $0xd58] sm:$0xff]
    %v978 = vld [vmem:[%s3 + $0xd60] sm:$0xff]
    %v979 = vld [vmem:[%s3 + $0xd68] sm:$0xff]
    %v980 = vld [vmem:[%s3 + $0xd70] sm:$0xff]
    %v981 = vld [vmem:[%s3 + $0xd78] sm:$0xff]
    %v982 = vld [vmem:[%s3 + $0xd80] sm:$0xff]
    %v983 = vld [vmem:[%s3 + $0xd88] sm:$0xff]
    %v984 = vld [vmem:[%s3 + $0xd90] sm:$0xff]
    %v985 = vld [vmem:[%s3 + $0xd98] sm:$0xff]
    %v986 = vld [vmem:[%s3 + $0xda0] sm:$0xff]
    %v987 = vld [vmem:[%s3 + $0xda8] sm:$0xff]
    %v988 = vld [vmem:[%s3 + $0xdb0] sm:$0xff]
    %v989 = vld [vmem:[%s3 + $0xdb8] sm:$0xff]
    %v990 = vld [vmem:[%s3 + $0xdc0] sm:$0xff]
    %v991 = vld [vmem:[%s3 + $0xdc8] sm:$0xff]
    %v992 = vld [vmem:[%s3 + $0xdd0] sm:$0xff]
    %v993 = vld [vmem:[%s3 + $0xdd8] sm:$0xff]
    %v994 = vld [vmem:[%s3 + $0xde0] sm:$0xff]
    %v995 = vld [vmem:[%s3 + $0xde8] sm:$0xff]
    %v996 = vld [vmem:[%s3 + $0xdf0] sm:$0xff]
    %v997 = vld [vmem:[%s3 + $0xdf8] sm:$0xff]
    %v998 = vld [vmem:[%s3 + $0xe00] sm:$0xff]
    %v999 = vld [vmem:[%s3 + $0xe08] sm:$0xff]
    %v1000 = vld [vmem:[%s3 + $0xe10] sm:$0xff]
    %v1001 = vld [vmem:[%s3 + $0xe18] sm:$0xff]
    %v1002 = vld [vmem:[%s3 + $0xe20] sm:$0xff]
    %v1003 = vld [vmem:[%s3 + $0xe28] sm:$0xff]
    %v1004 = vld [vmem:[%s3 + $0xe30] sm:$0xff]
    %v1005 = vld [vmem:[%s3 + $0xe38] sm:$0xff]
    %v1006 = vld [vmem:[%s3 + $0xe40] sm:$0xff]
    %v1007 = vld [vmem:[%s3 + $0xe48] sm:$0xff]
    %v1008 = vld [vmem:[%s3 + $0xe50] sm:$0xff]
    %v1009 = vld [vmem:[%s3 + $0xe58] sm:$0xff]
    %v1010 = vld [vmem:[%s3 + $0xe60] sm:$0xff]
    %v1011 = vld [vmem:[%s3 + $0xe68] sm:$0xff]
    %v1012 = vld [vmem:[%s3 + $0xe70] sm:$0xff]
    %v1013 = vld [vmem:[%s3 + $0xe78] sm:$0xff]
    %v1014 = vld [vmem:[%s3 + $0xe80] sm:$0xff]
    %v1015 = vld [vmem:[%s3 + $0xe88] sm:$0xff]
    %v1016 = vld [vmem:[%s3 + $0xe90] sm:$0xff]
    %v1017 = vld [vmem:[%s3 + $0xe98] sm:$0xff]
    %v1018 = vld [vmem:[%s3 + $0xea0] sm:$0xff]
    %v1019 = vld [vmem:[%s3 + $0xea8] sm:$0xff]
    %v1020 = vld [vmem:[%s3 + $0xeb0] sm:$0xff]
    %v1021 = vld [vmem:[%s3 + $0xeb8] sm:$0xff]
    %v1022 = vld [vmem:[%s3 + $0xec0] sm:$0xff]
    %v1023 = vld [vmem:[%s3 + $0xec8] sm:$0xff]
    %v1024 = vld [vmem:[%s3 + $0xed0] sm:$0xff]
    %v1025 = vld [vmem:[%s3 + $0xed8] sm:$0xff]
    %v1026 = vld [vmem:[%s3 + $0xee0] sm:$0xff]
    %v1027 = vld [vmem:[%s3 + $0xee8] sm:$0xff]
    %v1028 = vld [vmem:[%s3 + $0xef0] sm:$0xff]
    %v1029 = vld [vmem:[%s3 + $0xef8] sm:$0xff]
    %v1030 = vld [vmem:[%s3 + $0xf00] sm:$0xff]
    %v1031 = vld [vmem:[%s3 + $0xf08] sm:$0xff]
    %v1032 = vld [vmem:[%s3 + $0xf10] sm:$0xff]
    %v1033 = vld [vmem:[%s3 + $0xf18] sm:$0xff]
    %v1034 = vld [vmem:[%s3 + $0xf20] sm:$0xff]
    %v1035 = vld [vmem:[%s3 + $0xf28] sm:$0xff]
    %v1036 = vld [vmem:[%s3 + $0xf30] sm:$0xff]
    %v1037 = vld [vmem:[%s3 + $0xf38] sm:$0xff]
    %v1038 = vld [vmem:[%s3 + $0xf40] sm:$0xff]
    %v1039 = vld [vmem:[%s3 + $0xf48] sm:$0xff]
    %v1040 = vld [vmem:[%s3 + $0xf50] sm:$0xff]
    %v1041 = vld [vmem:[%s3 + $0xf58] sm:$0xff]
    %v1042 = vld [vmem:[%s3 + $0xf60] sm:$0xff]
    %v1043 = vld [vmem:[%s3 + $0xf68] sm:$0xff]
    %v1044 = vld [vmem:[%s3 + $0xf70] sm:$0xff]
    %v1045 = vld [vmem:[%s3 + $0xf78] sm:$0xff]
    %v1046 = vld [vmem:[%s3 + $0xf80] sm:$0xff]
    %v1047 = vld [vmem:[%s3 + $0xf88] sm:$0xff]
    %v1048 = vld [vmem:[%s3 + $0xf90] sm:$0xff]
    %v1049 = vld [vmem:[%s3 + $0xf98] sm:$0xff]
    %v1050 = vld [vmem:[%s3 + $0xfa0] sm:$0xff]
    %v1051 = vld [vmem:[%s3 + $0xfa8] sm:$0xff]
    %v1052 = vld [vmem:[%s3 + $0xfb0] sm:$0xff]
    %v1053 = vld [vmem:[%s3 + $0xfb8] sm:$0xff]
    %v1054 = vld [vmem:[%s3 + $0xfc0] sm:$0xff]
    %v1055 = vld [vmem:[%s3 + $0xfc8] sm:$0xff]
    %v1056 = vld [vmem:[%s3 + $0xfd0] sm:$0xff]
    %v1057 = vld [vmem:[%s3 + $0xfd8] sm:$0xff]
    %v1058 = vld [vmem:[%s3 + $0xfe0] sm:$0xff]
    %v1059 = vld [vmem:[%s3 + $0xfe8] sm:$0xff]
    %v1060 = vld [vmem:[%s3 + $0xff0] sm:$0xff]
    %v1061 = vld [vmem:[%s3 + $0xff8] sm:$0xff]
    %v1062 = vld [vmem:[%s4] sm:$0xff]
    %v1064 = vperm.slane %v1062, 0
    %v1065 = vperm.slane %v1062, 1
    %v1066 = vperm.slane %v1062, 2
    %v1067 = vperm.slane %v1062, 3
    %v1068 = vperm.slane %v1062, 4
    %v1069 = vperm.slane %v1062, 5
    %v1070 = vperm.slane %v1062, 6
    %v1071 = vperm.slane %v1062, 7
    %v1592 = vunpack.c.l.b16 %v550
    %v1593 = vunpack.c.h.b16 %v550
    %v1594 = vunpack.c.l.b16 %v551
    %v1595 = vunpack.c.h.b16 %v551
    %v1596 = vunpack.c.l.b16 %v552
    %v1597 = vunpack.c.h.b16 %v552
    %v1598 = vunpack.c.l.b16 %v553
    %v1599 = vunpack.c.h.b16 %v553
    %v1600 = vunpack.c.l.b16 %v554
    %v1601 = vunpack.c.h.b16 %v554
    %v1602 = vunpack.c.l.b16 %v555
    %v1603 = vunpack.c.h.b16 %v555
    %v1604 = vunpack.c.l.b16 %v556
    %v1605 = vunpack.c.h.b16 %v556
    %v1606 = vunpack.c.l.b16 %v557
    %v1607 = vunpack.c.h.b16 %v557
    %v1608 = vunpack.c.l.b16 %v558
    %v1609 = vunpack.c.h.b16 %v558
    %v1610 = vunpack.c.l.b16 %v559
    %v1611 = vunpack.c.h.b16 %v559
    %v1612 = vunpack.c.l.b16 %v560
    %v1613 = vunpack.c.h.b16 %v560
    %v1614 = vunpack.c.l.b16 %v561
    %v1615 = vunpack.c.h.b16 %v561
    %v1616 = vunpack.c.l.b16 %v562
    %v1617 = vunpack.c.h.b16 %v562
    %v1618 = vunpack.c.l.b16 %v563
    %v1619 = vunpack.c.h.b16 %v563
    %v1620 = vunpack.c.l.b16 %v564
    %v1621 = vunpack.c.h.b16 %v564
    %v1622 = vunpack.c.l.b16 %v565
    %v1623 = vunpack.c.h.b16 %v565
    %v1624 = vunpack.c.l.b16 %v566
    %v1625 = vunpack.c.h.b16 %v566
    %v1626 = vunpack.c.l.b16 %v567
    %v1627 = vunpack.c.h.b16 %v567
    %v1628 = vunpack.c.l.b16 %v568
    %v1629 = vunpack.c.h.b16 %v568
    %v1630 = vunpack.c.l.b16 %v569
    %v1631 = vunpack.c.h.b16 %v569
    %v1632 = vunpack.c.l.b16 %v570
    %v1633 = vunpack.c.h.b16 %v570
    %v1634 = vunpack.c.l.b16 %v571
    %v1635 = vunpack.c.h.b16 %v571
    %v1636 = vunpack.c.l.b16 %v572
    %v1637 = vunpack.c.h.b16 %v572
    %v1638 = vunpack.c.l.b16 %v573
    %v1639 = vunpack.c.h.b16 %v573
    %v1640 = vunpack.c.l.b16 %v574
    %v1641 = vunpack.c.h.b16 %v574
    %v1642 = vunpack.c.l.b16 %v575
    %v1643 = vunpack.c.h.b16 %v575
    %v1644 = vunpack.c.l.b16 %v576
    %v1645 = vunpack.c.h.b16 %v576
    %v1646 = vunpack.c.l.b16 %v577
    %v1647 = vunpack.c.h.b16 %v577
    %v1648 = vunpack.c.l.b16 %v578
    %v1649 = vunpack.c.h.b16 %v578
    %v1650 = vunpack.c.l.b16 %v579
    %v1651 = vunpack.c.h.b16 %v579
    %v1652 = vunpack.c.l.b16 %v580
    %v1653 = vunpack.c.h.b16 %v580
    %v1654 = vunpack.c.l.b16 %v581
    %v1655 = vunpack.c.h.b16 %v581
    %v1656 = vunpack.c.l.b16 %v582
    %v1657 = vunpack.c.h.b16 %v582
    %v1658 = vunpack.c.l.b16 %v583
    %v1659 = vunpack.c.h.b16 %v583
    %v1660 = vunpack.c.l.b16 %v584
    %v1661 = vunpack.c.h.b16 %v584
    %v1662 = vunpack.c.l.b16 %v585
    %v1663 = vunpack.c.h.b16 %v585
    %v1664 = vunpack.c.l.b16 %v586
    %v1665 = vunpack.c.h.b16 %v586
    %v1666 = vunpack.c.l.b16 %v587
    %v1667 = vunpack.c.h.b16 %v587
    %v1668 = vunpack.c.l.b16 %v588
    %v1669 = vunpack.c.h.b16 %v588
    %v1670 = vunpack.c.l.b16 %v589
    %v1671 = vunpack.c.h.b16 %v589
    %v1672 = vunpack.c.l.b16 %v590
    %v1673 = vunpack.c.h.b16 %v590
    %v1674 = vunpack.c.l.b16 %v591
    %v1675 = vunpack.c.h.b16 %v591
    %v1676 = vunpack.c.l.b16 %v592
    %v1677 = vunpack.c.h.b16 %v592
    %v1678 = vunpack.c.l.b16 %v593
    %v1679 = vunpack.c.h.b16 %v593
    %v1680 = vunpack.c.l.b16 %v594
    %v1681 = vunpack.c.h.b16 %v594
    %v1682 = vunpack.c.l.b16 %v595
    %v1683 = vunpack.c.h.b16 %v595
    %v1684 = vunpack.c.l.b16 %v596
    %v1685 = vunpack.c.h.b16 %v596
    %v1686 = vunpack.c.l.b16 %v597
    %v1687 = vunpack.c.h.b16 %v597
    %v1688 = vunpack.c.l.b16 %v598
    %v1689 = vunpack.c.h.b16 %v598
    %v1690 = vunpack.c.l.b16 %v599
    %v1691 = vunpack.c.h.b16 %v599
    %v1692 = vunpack.c.l.b16 %v600
    %v1693 = vunpack.c.h.b16 %v600
    %v1694 = vunpack.c.l.b16 %v601
    %v1695 = vunpack.c.h.b16 %v601
    %v1696 = vunpack.c.l.b16 %v602
    %v1697 = vunpack.c.h.b16 %v602
    %v1698 = vunpack.c.l.b16 %v603
    %v1699 = vunpack.c.h.b16 %v603
    %v1700 = vunpack.c.l.b16 %v604
    %v1701 = vunpack.c.h.b16 %v604
    %v1702 = vunpack.c.l.b16 %v605
    %v1703 = vunpack.c.h.b16 %v605
    %v1704 = vunpack.c.l.b16 %v606
    %v1705 = vunpack.c.h.b16 %v606
    %v1706 = vunpack.c.l.b16 %v607
    %v1707 = vunpack.c.h.b16 %v607
    %v1708 = vunpack.c.l.b16 %v608
    %v1709 = vunpack.c.h.b16 %v608
    %v1710 = vunpack.c.l.b16 %v609
    %v1711 = vunpack.c.h.b16 %v609
    %v1712 = vunpack.c.l.b16 %v610
    %v1713 = vunpack.c.h.b16 %v610
    %v1714 = vunpack.c.l.b16 %v611
    %v1715 = vunpack.c.h.b16 %v611
    %v1716 = vunpack.c.l.b16 %v612
    %v1717 = vunpack.c.h.b16 %v612
    %v1718 = vunpack.c.l.b16 %v613
    %v1719 = vunpack.c.h.b16 %v613
    %v1720 = vunpack.c.l.b16 %v614
    %v1721 = vunpack.c.h.b16 %v614
    %v1722 = vunpack.c.l.b16 %v615
    %v1723 = vunpack.c.h.b16 %v615
    %v1724 = vunpack.c.l.b16 %v616
    %v1725 = vunpack.c.h.b16 %v616
    %v1726 = vunpack.c.l.b16 %v617
    %v1727 = vunpack.c.h.b16 %v617
    %v1728 = vunpack.c.l.b16 %v618
    %v1729 = vunpack.c.h.b16 %v618
    %v1730 = vunpack.c.l.b16 %v619
    %v1731 = vunpack.c.h.b16 %v619
    %v1732 = vunpack.c.l.b16 %v620
    %v1733 = vunpack.c.h.b16 %v620
    %v1734 = vunpack.c.l.b16 %v621
    %v1735 = vunpack.c.h.b16 %v621
    %v1736 = vunpack.c.l.b16 %v622
    %v1737 = vunpack.c.h.b16 %v622
    %v1738 = vunpack.c.l.b16 %v623
    %v1739 = vunpack.c.h.b16 %v623
    %v1740 = vunpack.c.l.b16 %v624
    %v1741 = vunpack.c.h.b16 %v624
    %v1742 = vunpack.c.l.b16 %v625
    %v1743 = vunpack.c.h.b16 %v625
    %v1744 = vunpack.c.l.b16 %v626
    %v1745 = vunpack.c.h.b16 %v626
    %v1746 = vunpack.c.l.b16 %v627
    %v1747 = vunpack.c.h.b16 %v627
    %v1748 = vunpack.c.l.b16 %v628
    %v1749 = vunpack.c.h.b16 %v628
    %v1750 = vunpack.c.l.b16 %v629
    %v1751 = vunpack.c.h.b16 %v629
    %v1752 = vunpack.c.l.b16 %v630
    %v1753 = vunpack.c.h.b16 %v630
    %v1754 = vunpack.c.l.b16 %v631
    %v1755 = vunpack.c.h.b16 %v631
    %v1756 = vunpack.c.l.b16 %v632
    %v1757 = vunpack.c.h.b16 %v632
    %v1758 = vunpack.c.l.b16 %v633
    %v1759 = vunpack.c.h.b16 %v633
    %v1760 = vunpack.c.l.b16 %v634
    %v1761 = vunpack.c.h.b16 %v634
    %v1762 = vunpack.c.l.b16 %v635
    %v1763 = vunpack.c.h.b16 %v635
    %v1764 = vunpack.c.l.b16 %v636
    %v1765 = vunpack.c.h.b16 %v636
    %v1766 = vunpack.c.l.b16 %v637
    %v1767 = vunpack.c.h.b16 %v637
    %v1768 = vunpack.c.l.b16 %v638
    %v1769 = vunpack.c.h.b16 %v638
    %v1770 = vunpack.c.l.b16 %v639
    %v1771 = vunpack.c.h.b16 %v639
    %v1772 = vunpack.c.l.b16 %v640
    %v1773 = vunpack.c.h.b16 %v640
    %v1774 = vunpack.c.l.b16 %v641
    %v1775 = vunpack.c.h.b16 %v641
    %v1776 = vunpack.c.l.b16 %v642
    %v1777 = vunpack.c.h.b16 %v642
    %v1778 = vunpack.c.l.b16 %v643
    %v1779 = vunpack.c.h.b16 %v643
    %v1780 = vunpack.c.l.b16 %v644
    %v1781 = vunpack.c.h.b16 %v644
    %v1782 = vunpack.c.l.b16 %v645
    %v1783 = vunpack.c.h.b16 %v645
    %v1784 = vunpack.c.l.b16 %v646
    %v1785 = vunpack.c.h.b16 %v646
    %v1786 = vunpack.c.l.b16 %v647
    %v1787 = vunpack.c.h.b16 %v647
    %v1788 = vunpack.c.l.b16 %v648
    %v1789 = vunpack.c.h.b16 %v648
    %v1790 = vunpack.c.l.b16 %v649
    %v1791 = vunpack.c.h.b16 %v649
    %v1792 = vunpack.c.l.b16 %v650
    %v1793 = vunpack.c.h.b16 %v650
    %v1794 = vunpack.c.l.b16 %v651
    %v1795 = vunpack.c.h.b16 %v651
    %v1796 = vunpack.c.l.b16 %v652
    %v1797 = vunpack.c.h.b16 %v652
    %v1798 = vunpack.c.l.b16 %v653
    %v1799 = vunpack.c.h.b16 %v653
    %v1800 = vunpack.c.l.b16 %v654
    %v1801 = vunpack.c.h.b16 %v654
    %v1802 = vunpack.c.l.b16 %v655
    %v1803 = vunpack.c.h.b16 %v655
    %v1804 = vunpack.c.l.b16 %v656
    %v1805 = vunpack.c.h.b16 %v656
    %v1806 = vunpack.c.l.b16 %v657
    %v1807 = vunpack.c.h.b16 %v657
    %v1808 = vunpack.c.l.b16 %v658
    %v1809 = vunpack.c.h.b16 %v658
    %v1810 = vunpack.c.l.b16 %v659
    %v1811 = vunpack.c.h.b16 %v659
    %v1812 = vunpack.c.l.b16 %v660
    %v1813 = vunpack.c.h.b16 %v660
    %v1814 = vunpack.c.l.b16 %v661
    %v1815 = vunpack.c.h.b16 %v661
    %v1816 = vunpack.c.l.b16 %v662
    %v1817 = vunpack.c.h.b16 %v662
    %v1818 = vunpack.c.l.b16 %v663
    %v1819 = vunpack.c.h.b16 %v663
    %v1820 = vunpack.c.l.b16 %v664
    %v1821 = vunpack.c.h.b16 %v664
    %v1822 = vunpack.c.l.b16 %v665
    %v1823 = vunpack.c.h.b16 %v665
    %v1824 = vunpack.c.l.b16 %v666
    %v1825 = vunpack.c.h.b16 %v666
    %v1826 = vunpack.c.l.b16 %v667
    %v1827 = vunpack.c.h.b16 %v667
    %v1828 = vunpack.c.l.b16 %v668
    %v1829 = vunpack.c.h.b16 %v668
    %v1830 = vunpack.c.l.b16 %v669
    %v1831 = vunpack.c.h.b16 %v669
    %v1832 = vunpack.c.l.b16 %v670
    %v1833 = vunpack.c.h.b16 %v670
    %v1834 = vunpack.c.l.b16 %v671
    %v1835 = vunpack.c.h.b16 %v671
    %v1836 = vunpack.c.l.b16 %v672
    %v1837 = vunpack.c.h.b16 %v672
    %v1838 = vunpack.c.l.b16 %v673
    %v1839 = vunpack.c.h.b16 %v673
    %v1840 = vunpack.c.l.b16 %v674
    %v1841 = vunpack.c.h.b16 %v674
    %v1842 = vunpack.c.l.b16 %v675
    %v1843 = vunpack.c.h.b16 %v675
    %v1844 = vunpack.c.l.b16 %v676
    %v1845 = vunpack.c.h.b16 %v676
    %v1846 = vunpack.c.l.b16 %v677
    %v1847 = vunpack.c.h.b16 %v677
    %v1848 = vunpack.c.l.b16 %v678
    %v1849 = vunpack.c.h.b16 %v678
    %v1850 = vunpack.c.l.b16 %v679
    %v1851 = vunpack.c.h.b16 %v679
    %v1852 = vunpack.c.l.b16 %v680
    %v1853 = vunpack.c.h.b16 %v680
    %v1854 = vunpack.c.l.b16 %v681
    %v1855 = vunpack.c.h.b16 %v681
    %v1856 = vunpack.c.l.b16 %v682
    %v1857 = vunpack.c.h.b16 %v682
    %v1858 = vunpack.c.l.b16 %v683
    %v1859 = vunpack.c.h.b16 %v683
    %v1860 = vunpack.c.l.b16 %v684
    %v1861 = vunpack.c.h.b16 %v684
    %v1862 = vunpack.c.l.b16 %v685
    %v1863 = vunpack.c.h.b16 %v685
    %v1864 = vunpack.c.l.b16 %v686
    %v1865 = vunpack.c.h.b16 %v686
    %v1866 = vunpack.c.l.b16 %v687
    %v1867 = vunpack.c.h.b16 %v687
    %v1868 = vunpack.c.l.b16 %v688
    %v1869 = vunpack.c.h.b16 %v688
    %v1870 = vunpack.c.l.b16 %v689
    %v1871 = vunpack.c.h.b16 %v689
    %v1872 = vunpack.c.l.b16 %v690
    %v1873 = vunpack.c.h.b16 %v690
    %v1874 = vunpack.c.l.b16 %v691
    %v1875 = vunpack.c.h.b16 %v691
    %v1876 = vunpack.c.l.b16 %v692
    %v1877 = vunpack.c.h.b16 %v692
    %v1878 = vunpack.c.l.b16 %v693
    %v1879 = vunpack.c.h.b16 %v693
    %v1880 = vunpack.c.l.b16 %v694
    %v1881 = vunpack.c.h.b16 %v694
    %v1882 = vunpack.c.l.b16 %v695
    %v1883 = vunpack.c.h.b16 %v695
    %v1884 = vunpack.c.l.b16 %v696
    %v1885 = vunpack.c.h.b16 %v696
    %v1886 = vunpack.c.l.b16 %v697
    %v1887 = vunpack.c.h.b16 %v697
    %v1888 = vunpack.c.l.b16 %v698
    %v1889 = vunpack.c.h.b16 %v698
    %v1890 = vunpack.c.l.b16 %v699
    %v1891 = vunpack.c.h.b16 %v699
    %v1892 = vunpack.c.l.b16 %v700
    %v1893 = vunpack.c.h.b16 %v700
    %v1894 = vunpack.c.l.b16 %v701
    %v1895 = vunpack.c.h.b16 %v701
    %v1896 = vunpack.c.l.b16 %v702
    %v1897 = vunpack.c.h.b16 %v702
    %v1898 = vunpack.c.l.b16 %v703
    %v1899 = vunpack.c.h.b16 %v703
    %v1900 = vunpack.c.l.b16 %v704
    %v1901 = vunpack.c.h.b16 %v704
    %v1902 = vunpack.c.l.b16 %v705
    %v1903 = vunpack.c.h.b16 %v705
    %v1904 = vunpack.c.l.b16 %v706
    %v1905 = vunpack.c.h.b16 %v706
    %v1906 = vunpack.c.l.b16 %v707
    %v1907 = vunpack.c.h.b16 %v707
    %v1908 = vunpack.c.l.b16 %v708
    %v1909 = vunpack.c.h.b16 %v708
    %v1910 = vunpack.c.l.b16 %v709
    %v1911 = vunpack.c.h.b16 %v709
    %v1912 = vunpack.c.l.b16 %v710
    %v1913 = vunpack.c.h.b16 %v710
    %v1914 = vunpack.c.l.b16 %v711
    %v1915 = vunpack.c.h.b16 %v711
    %v1916 = vunpack.c.l.b16 %v712
    %v1917 = vunpack.c.h.b16 %v712
    %v1918 = vunpack.c.l.b16 %v713
    %v1919 = vunpack.c.h.b16 %v713
    %v1920 = vunpack.c.l.b16 %v714
    %v1921 = vunpack.c.h.b16 %v714
    %v1922 = vunpack.c.l.b16 %v715
    %v1923 = vunpack.c.h.b16 %v715
    %v1924 = vunpack.c.l.b16 %v716
    %v1925 = vunpack.c.h.b16 %v716
    %v1926 = vunpack.c.l.b16 %v717
    %v1927 = vunpack.c.h.b16 %v717
    %v1928 = vunpack.c.l.b16 %v718
    %v1929 = vunpack.c.h.b16 %v718
    %v1930 = vunpack.c.l.b16 %v719
    %v1931 = vunpack.c.h.b16 %v719
    %v1932 = vunpack.c.l.b16 %v720
    %v1933 = vunpack.c.h.b16 %v720
    %v1934 = vunpack.c.l.b16 %v721
    %v1935 = vunpack.c.h.b16 %v721
    %v1936 = vunpack.c.l.b16 %v722
    %v1937 = vunpack.c.h.b16 %v722
    %v1938 = vunpack.c.l.b16 %v723
    %v1939 = vunpack.c.h.b16 %v723
    %v1940 = vunpack.c.l.b16 %v724
    %v1941 = vunpack.c.h.b16 %v724
    %v1942 = vunpack.c.l.b16 %v725
    %v1943 = vunpack.c.h.b16 %v725
    %v1944 = vunpack.c.l.b16 %v726
    %v1945 = vunpack.c.h.b16 %v726
    %v1946 = vunpack.c.l.b16 %v727
    %v1947 = vunpack.c.h.b16 %v727
    %v1948 = vunpack.c.l.b16 %v728
    %v1949 = vunpack.c.h.b16 %v728
    %v1950 = vunpack.c.l.b16 %v729
    %v1951 = vunpack.c.h.b16 %v729
    %v1952 = vunpack.c.l.b16 %v730
    %v1953 = vunpack.c.h.b16 %v730
    %v1954 = vunpack.c.l.b16 %v731
    %v1955 = vunpack.c.h.b16 %v731
    %v1956 = vunpack.c.l.b16 %v732
    %v1957 = vunpack.c.h.b16 %v732
    %v1958 = vunpack.c.l.b16 %v733
    %v1959 = vunpack.c.h.b16 %v733
    %v1960 = vunpack.c.l.b16 %v734
    %v1961 = vunpack.c.h.b16 %v734
    %v1962 = vunpack.c.l.b16 %v735
    %v1963 = vunpack.c.h.b16 %v735
    %v1964 = vunpack.c.l.b16 %v736
    %v1965 = vunpack.c.h.b16 %v736
    %v1966 = vunpack.c.l.b16 %v737
    %v1967 = vunpack.c.h.b16 %v737
    %v1968 = vunpack.c.l.b16 %v738
    %v1969 = vunpack.c.h.b16 %v738
    %v1970 = vunpack.c.l.b16 %v739
    %v1971 = vunpack.c.h.b16 %v739
    %v1972 = vunpack.c.l.b16 %v740
    %v1973 = vunpack.c.h.b16 %v740
    %v1974 = vunpack.c.l.b16 %v741
    %v1975 = vunpack.c.h.b16 %v741
    %v1976 = vunpack.c.l.b16 %v742
    %v1977 = vunpack.c.h.b16 %v742
    %v1978 = vunpack.c.l.b16 %v743
    %v1979 = vunpack.c.h.b16 %v743
    %v1980 = vunpack.c.l.b16 %v744
    %v1981 = vunpack.c.h.b16 %v744
    %v1982 = vunpack.c.l.b16 %v745
    %v1983 = vunpack.c.h.b16 %v745
    %v1984 = vunpack.c.l.b16 %v746
    %v1985 = vunpack.c.h.b16 %v746
    %v1986 = vunpack.c.l.b16 %v747
    %v1987 = vunpack.c.h.b16 %v747
    %v1988 = vunpack.c.l.b16 %v748
    %v1989 = vunpack.c.h.b16 %v748
    %v1990 = vunpack.c.l.b16 %v749
    %v1991 = vunpack.c.h.b16 %v749
    %v1992 = vunpack.c.l.b16 %v750
    %v1993 = vunpack.c.h.b16 %v750
    %v1994 = vunpack.c.l.b16 %v751
    %v1995 = vunpack.c.h.b16 %v751
    %v1996 = vunpack.c.l.b16 %v752
    %v1997 = vunpack.c.h.b16 %v752
    %v1998 = vunpack.c.l.b16 %v753
    %v1999 = vunpack.c.h.b16 %v753
    %v2000 = vunpack.c.l.b16 %v754
    %v2001 = vunpack.c.h.b16 %v754
    %v2002 = vunpack.c.l.b16 %v755
    %v2003 = vunpack.c.h.b16 %v755
    %v2004 = vunpack.c.l.b16 %v756
    %v2005 = vunpack.c.h.b16 %v756
    %v2006 = vunpack.c.l.b16 %v757
    %v2007 = vunpack.c.h.b16 %v757
    %v2008 = vunpack.c.l.b16 %v758
    %v2009 = vunpack.c.h.b16 %v758
    %v2010 = vunpack.c.l.b16 %v759
    %v2011 = vunpack.c.h.b16 %v759
    %v2012 = vunpack.c.l.b16 %v760
    %v2013 = vunpack.c.h.b16 %v760
    %v2014 = vunpack.c.l.b16 %v761
    %v2015 = vunpack.c.h.b16 %v761
    %v2016 = vunpack.c.l.b16 %v762
    %v2017 = vunpack.c.h.b16 %v762
    %v2018 = vunpack.c.l.b16 %v763
    %v2019 = vunpack.c.h.b16 %v763
    %v2020 = vunpack.c.l.b16 %v764
    %v2021 = vunpack.c.h.b16 %v764
    %v2022 = vunpack.c.l.b16 %v765
    %v2023 = vunpack.c.h.b16 %v765
    %v2024 = vunpack.c.l.b16 %v766
    %v2025 = vunpack.c.h.b16 %v766
    %v2026 = vunpack.c.l.b16 %v767
    %v2027 = vunpack.c.h.b16 %v767
    %v2028 = vunpack.c.l.b16 %v768
    %v2029 = vunpack.c.h.b16 %v768
    %v2030 = vunpack.c.l.b16 %v769
    %v2031 = vunpack.c.h.b16 %v769
    %v2032 = vunpack.c.l.b16 %v770
    %v2033 = vunpack.c.h.b16 %v770
    %v2034 = vunpack.c.l.b16 %v771
    %v2035 = vunpack.c.h.b16 %v771
    %v2036 = vunpack.c.l.b16 %v772
    %v2037 = vunpack.c.h.b16 %v772
    %v2038 = vunpack.c.l.b16 %v773
    %v2039 = vunpack.c.h.b16 %v773
    %v2040 = vunpack.c.l.b16 %v774
    %v2041 = vunpack.c.h.b16 %v774
    %v2042 = vunpack.c.l.b16 %v775
    %v2043 = vunpack.c.h.b16 %v775
    %v2044 = vunpack.c.l.b16 %v776
    %v2045 = vunpack.c.h.b16 %v776
    %v2046 = vunpack.c.l.b16 %v777
    %v2047 = vunpack.c.h.b16 %v777
    %v2048 = vunpack.c.l.b16 %v778
    %v2049 = vunpack.c.h.b16 %v778
    %v2050 = vunpack.c.l.b16 %v779
    %v2051 = vunpack.c.h.b16 %v779
    %v2052 = vunpack.c.l.b16 %v780
    %v2053 = vunpack.c.h.b16 %v780
    %v2054 = vunpack.c.l.b16 %v781
    %v2055 = vunpack.c.h.b16 %v781
    %v2056 = vunpack.c.l.b16 %v782
    %v2057 = vunpack.c.h.b16 %v782
    %v2058 = vunpack.c.l.b16 %v783
    %v2059 = vunpack.c.h.b16 %v783
    %v2060 = vunpack.c.l.b16 %v784
    %v2061 = vunpack.c.h.b16 %v784
    %v2062 = vunpack.c.l.b16 %v785
    %v2063 = vunpack.c.h.b16 %v785
    %v2064 = vunpack.c.l.b16 %v786
    %v2065 = vunpack.c.h.b16 %v786
    %v2066 = vunpack.c.l.b16 %v787
    %v2067 = vunpack.c.h.b16 %v787
    %v2068 = vunpack.c.l.b16 %v788
    %v2069 = vunpack.c.h.b16 %v788
    %v2070 = vunpack.c.l.b16 %v789
    %v2071 = vunpack.c.h.b16 %v789
    %v2072 = vunpack.c.l.b16 %v790
    %v2073 = vunpack.c.h.b16 %v790
    %v2074 = vunpack.c.l.b16 %v791
    %v2075 = vunpack.c.h.b16 %v791
    %v2076 = vunpack.c.l.b16 %v792
    %v2077 = vunpack.c.h.b16 %v792
    %v2078 = vunpack.c.l.b16 %v793
    %v2079 = vunpack.c.h.b16 %v793
    %v2080 = vunpack.c.l.b16 %v794
    %v2081 = vunpack.c.h.b16 %v794
    %v2082 = vunpack.c.l.b16 %v795
    %v2083 = vunpack.c.h.b16 %v795
    %v2084 = vunpack.c.l.b16 %v796
    %v2085 = vunpack.c.h.b16 %v796
    %v2086 = vunpack.c.l.b16 %v797
    %v2087 = vunpack.c.h.b16 %v797
    %v2088 = vunpack.c.l.b16 %v798
    %v2089 = vunpack.c.h.b16 %v798
    %v2090 = vunpack.c.l.b16 %v799
    %v2091 = vunpack.c.h.b16 %v799
    %v2092 = vunpack.c.l.b16 %v800
    %v2093 = vunpack.c.h.b16 %v800
    %v2094 = vunpack.c.l.b16 %v801
    %v2095 = vunpack.c.h.b16 %v801
    %v2096 = vunpack.c.l.b16 %v802
    %v2097 = vunpack.c.h.b16 %v802
    %v2098 = vunpack.c.l.b16 %v803
    %v2099 = vunpack.c.h.b16 %v803
    %v2100 = vunpack.c.l.b16 %v804
    %v2101 = vunpack.c.h.b16 %v804
    %v2102 = vunpack.c.l.b16 %v805
    %v2103 = vunpack.c.h.b16 %v805
    %v2104 = vunpack.c.l.b16 %v806
    %v2105 = vunpack.c.h.b16 %v806
    %v2106 = vunpack.c.l.b16 %v807
    %v2107 = vunpack.c.h.b16 %v807
    %v2108 = vunpack.c.l.b16 %v808
    %v2109 = vunpack.c.h.b16 %v808
    %v2110 = vunpack.c.l.b16 %v809
    %v2111 = vunpack.c.h.b16 %v809
    %v2112 = vunpack.c.l.b16 %v810
    %v2113 = vunpack.c.h.b16 %v810
    %v2114 = vunpack.c.l.b16 %v811
    %v2115 = vunpack.c.h.b16 %v811
    %v2116 = vunpack.c.l.b16 %v812
    %v2117 = vunpack.c.h.b16 %v812
    %v2118 = vunpack.c.l.b16 %v813
    %v2119 = vunpack.c.h.b16 %v813
    %v2120 = vunpack.c.l.b16 %v814
    %v2121 = vunpack.c.h.b16 %v814
    %v2122 = vunpack.c.l.b16 %v815
    %v2123 = vunpack.c.h.b16 %v815
    %v2124 = vunpack.c.l.b16 %v816
    %v2125 = vunpack.c.h.b16 %v816
    %v2126 = vunpack.c.l.b16 %v817
    %v2127 = vunpack.c.h.b16 %v817
    %v2128 = vunpack.c.l.b16 %v818
    %v2129 = vunpack.c.h.b16 %v818
    %v2130 = vunpack.c.l.b16 %v819
    %v2131 = vunpack.c.h.b16 %v819
    %v2132 = vunpack.c.l.b16 %v820
    %v2133 = vunpack.c.h.b16 %v820
    %v2134 = vunpack.c.l.b16 %v821
    %v2135 = vunpack.c.h.b16 %v821
    %v2136 = vunpack.c.l.b16 %v822
    %v2137 = vunpack.c.h.b16 %v822
    %v2138 = vunpack.c.l.b16 %v823
    %v2139 = vunpack.c.h.b16 %v823
    %v2140 = vunpack.c.l.b16 %v824
    %v2141 = vunpack.c.h.b16 %v824
    %v2142 = vunpack.c.l.b16 %v825
    %v2143 = vunpack.c.h.b16 %v825
    %v2144 = vunpack.c.l.b16 %v826
    %v2145 = vunpack.c.h.b16 %v826
    %v2146 = vunpack.c.l.b16 %v827
    %v2147 = vunpack.c.h.b16 %v827
    %v2148 = vunpack.c.l.b16 %v828
    %v2149 = vunpack.c.h.b16 %v828
    %v2150 = vunpack.c.l.b16 %v829
    %v2151 = vunpack.c.h.b16 %v829
    %v2152 = vunpack.c.l.b16 %v830
    %v2153 = vunpack.c.h.b16 %v830
    %v2154 = vunpack.c.l.b16 %v831
    %v2155 = vunpack.c.h.b16 %v831
    %v2156 = vunpack.c.l.b16 %v832
    %v2157 = vunpack.c.h.b16 %v832
    %v2158 = vunpack.c.l.b16 %v833
    %v2159 = vunpack.c.h.b16 %v833
    %v2160 = vunpack.c.l.b16 %v834
    %v2161 = vunpack.c.h.b16 %v834
    %v2162 = vunpack.c.l.b16 %v835
    %v2163 = vunpack.c.h.b16 %v835
    %v2164 = vunpack.c.l.b16 %v836
    %v2165 = vunpack.c.h.b16 %v836
    %v2166 = vunpack.c.l.b16 %v837
    %v2167 = vunpack.c.h.b16 %v837
    %v2168 = vunpack.c.l.b16 %v838
    %v2169 = vunpack.c.h.b16 %v838
    %v2170 = vunpack.c.l.b16 %v839
    %v2171 = vunpack.c.h.b16 %v839
    %v2172 = vunpack.c.l.b16 %v840
    %v2173 = vunpack.c.h.b16 %v840
    %v2174 = vunpack.c.l.b16 %v841
    %v2175 = vunpack.c.h.b16 %v841
    %v2176 = vunpack.c.l.b16 %v842
    %v2177 = vunpack.c.h.b16 %v842
    %v2178 = vunpack.c.l.b16 %v843
    %v2179 = vunpack.c.h.b16 %v843
    %v2180 = vunpack.c.l.b16 %v844
    %v2181 = vunpack.c.h.b16 %v844
    %v2182 = vunpack.c.l.b16 %v845
    %v2183 = vunpack.c.h.b16 %v845
    %v2184 = vunpack.c.l.b16 %v846
    %v2185 = vunpack.c.h.b16 %v846
    %v2186 = vunpack.c.l.b16 %v847
    %v2187 = vunpack.c.h.b16 %v847
    %v2188 = vunpack.c.l.b16 %v848
    %v2189 = vunpack.c.h.b16 %v848
    %v2190 = vunpack.c.l.b16 %v849
    %v2191 = vunpack.c.h.b16 %v849
    %v2192 = vunpack.c.l.b16 %v850
    %v2193 = vunpack.c.h.b16 %v850
    %v2194 = vunpack.c.l.b16 %v851
    %v2195 = vunpack.c.h.b16 %v851
    %v2196 = vunpack.c.l.b16 %v852
    %v2197 = vunpack.c.h.b16 %v852
    %v2198 = vunpack.c.l.b16 %v853
    %v2199 = vunpack.c.h.b16 %v853
    %v2200 = vunpack.c.l.b16 %v854
    %v2201 = vunpack.c.h.b16 %v854
    %v2202 = vunpack.c.l.b16 %v855
    %v2203 = vunpack.c.h.b16 %v855
    %v2204 = vunpack.c.l.b16 %v856
    %v2205 = vunpack.c.h.b16 %v856
    %v2206 = vunpack.c.l.b16 %v857
    %v2207 = vunpack.c.h.b16 %v857
    %v2208 = vunpack.c.l.b16 %v858
    %v2209 = vunpack.c.h.b16 %v858
    %v2210 = vunpack.c.l.b16 %v859
    %v2211 = vunpack.c.h.b16 %v859
    %v2212 = vunpack.c.l.b16 %v860
    %v2213 = vunpack.c.h.b16 %v860
    %v2214 = vunpack.c.l.b16 %v861
    %v2215 = vunpack.c.h.b16 %v861
    %v2216 = vunpack.c.l.b16 %v862
    %v2217 = vunpack.c.h.b16 %v862
    %v2218 = vunpack.c.l.b16 %v863
    %v2219 = vunpack.c.h.b16 %v863
    %v2220 = vunpack.c.l.b16 %v864
    %v2221 = vunpack.c.h.b16 %v864
    %v2222 = vunpack.c.l.b16 %v865
    %v2223 = vunpack.c.h.b16 %v865
    %v2224 = vunpack.c.l.b16 %v866
    %v2225 = vunpack.c.h.b16 %v866
    %v2226 = vunpack.c.l.b16 %v867
    %v2227 = vunpack.c.h.b16 %v867
    %v2228 = vunpack.c.l.b16 %v868
    %v2229 = vunpack.c.h.b16 %v868
    %v2230 = vunpack.c.l.b16 %v869
    %v2231 = vunpack.c.h.b16 %v869
    %v2232 = vunpack.c.l.b16 %v870
    %v2233 = vunpack.c.h.b16 %v870
    %v2234 = vunpack.c.l.b16 %v871
    %v2235 = vunpack.c.h.b16 %v871
    %v2236 = vunpack.c.l.b16 %v872
    %v2237 = vunpack.c.h.b16 %v872
    %v2238 = vunpack.c.l.b16 %v873
    %v2239 = vunpack.c.h.b16 %v873
    %v2240 = vunpack.c.l.b16 %v874
    %v2241 = vunpack.c.h.b16 %v874
    %v2242 = vunpack.c.l.b16 %v875
    %v2243 = vunpack.c.h.b16 %v875
    %v2244 = vunpack.c.l.b16 %v876
    %v2245 = vunpack.c.h.b16 %v876
    %v2246 = vunpack.c.l.b16 %v877
    %v2247 = vunpack.c.h.b16 %v877
    %v2248 = vunpack.c.l.b16 %v878
    %v2249 = vunpack.c.h.b16 %v878
    %v2250 = vunpack.c.l.b16 %v879
    %v2251 = vunpack.c.h.b16 %v879
    %v2252 = vunpack.c.l.b16 %v880
    %v2253 = vunpack.c.h.b16 %v880
    %v2254 = vunpack.c.l.b16 %v881
    %v2255 = vunpack.c.h.b16 %v881
    %v2256 = vunpack.c.l.b16 %v882
    %v2257 = vunpack.c.h.b16 %v882
    %v2258 = vunpack.c.l.b16 %v883
    %v2259 = vunpack.c.h.b16 %v883
    %v2260 = vunpack.c.l.b16 %v884
    %v2261 = vunpack.c.h.b16 %v884
    %v2262 = vunpack.c.l.b16 %v885
    %v2263 = vunpack.c.h.b16 %v885
    %v2264 = vunpack.c.l.b16 %v886
    %v2265 = vunpack.c.h.b16 %v886
    %v2266 = vunpack.c.l.b16 %v887
    %v2267 = vunpack.c.h.b16 %v887
    %v2268 = vunpack.c.l.b16 %v888
    %v2269 = vunpack.c.h.b16 %v888
    %v2270 = vunpack.c.l.b16 %v889
    %v2271 = vunpack.c.h.b16 %v889
    %v2272 = vunpack.c.l.b16 %v890
    %v2273 = vunpack.c.h.b16 %v890
    %v2274 = vunpack.c.l.b16 %v891
    %v2275 = vunpack.c.h.b16 %v891
    %v2276 = vunpack.c.l.b16 %v892
    %v2277 = vunpack.c.h.b16 %v892
    %v2278 = vunpack.c.l.b16 %v893
    %v2279 = vunpack.c.h.b16 %v893
    %v2280 = vunpack.c.l.b16 %v894
    %v2281 = vunpack.c.h.b16 %v894
    %v2282 = vunpack.c.l.b16 %v895
    %v2283 = vunpack.c.h.b16 %v895
    %v2284 = vunpack.c.l.b16 %v896
    %v2285 = vunpack.c.h.b16 %v896
    %v2286 = vunpack.c.l.b16 %v897
    %v2287 = vunpack.c.h.b16 %v897
    %v2288 = vunpack.c.l.b16 %v898
    %v2289 = vunpack.c.h.b16 %v898
    %v2290 = vunpack.c.l.b16 %v899
    %v2291 = vunpack.c.h.b16 %v899
    %v2292 = vunpack.c.l.b16 %v900
    %v2293 = vunpack.c.h.b16 %v900
    %v2294 = vunpack.c.l.b16 %v901
    %v2295 = vunpack.c.h.b16 %v901
    %v2296 = vunpack.c.l.b16 %v902
    %v2297 = vunpack.c.h.b16 %v902
    %v2298 = vunpack.c.l.b16 %v903
    %v2299 = vunpack.c.h.b16 %v903
    %v2300 = vunpack.c.l.b16 %v904
    %v2301 = vunpack.c.h.b16 %v904
    %v2302 = vunpack.c.l.b16 %v905
    %v2303 = vunpack.c.h.b16 %v905
    %v2304 = vunpack.c.l.b16 %v906
    %v2305 = vunpack.c.h.b16 %v906
    %v2306 = vunpack.c.l.b16 %v907
    %v2307 = vunpack.c.h.b16 %v907
    %v2308 = vunpack.c.l.b16 %v908
    %v2309 = vunpack.c.h.b16 %v908
    %v2310 = vunpack.c.l.b16 %v909
    %v2311 = vunpack.c.h.b16 %v909
    %v2312 = vunpack.c.l.b16 %v910
    %v2313 = vunpack.c.h.b16 %v910
    %v2314 = vunpack.c.l.b16 %v911
    %v2315 = vunpack.c.h.b16 %v911
    %v2316 = vunpack.c.l.b16 %v912
    %v2317 = vunpack.c.h.b16 %v912
    %v2318 = vunpack.c.l.b16 %v913
    %v2319 = vunpack.c.h.b16 %v913
    %v2320 = vunpack.c.l.b16 %v914
    %v2321 = vunpack.c.h.b16 %v914
    %v2322 = vunpack.c.l.b16 %v915
    %v2323 = vunpack.c.h.b16 %v915
    %v2324 = vunpack.c.l.b16 %v916
    %v2325 = vunpack.c.h.b16 %v916
    %v2326 = vunpack.c.l.b16 %v917
    %v2327 = vunpack.c.h.b16 %v917
    %v2328 = vunpack.c.l.b16 %v918
    %v2329 = vunpack.c.h.b16 %v918
    %v2330 = vunpack.c.l.b16 %v919
    %v2331 = vunpack.c.h.b16 %v919
    %v2332 = vunpack.c.l.b16 %v920
    %v2333 = vunpack.c.h.b16 %v920
    %v2334 = vunpack.c.l.b16 %v921
    %v2335 = vunpack.c.h.b16 %v921
    %v2336 = vunpack.c.l.b16 %v922
    %v2337 = vunpack.c.h.b16 %v922
    %v2338 = vunpack.c.l.b16 %v923
    %v2339 = vunpack.c.h.b16 %v923
    %v2340 = vunpack.c.l.b16 %v924
    %v2341 = vunpack.c.h.b16 %v924
    %v2342 = vunpack.c.l.b16 %v925
    %v2343 = vunpack.c.h.b16 %v925
    %v2344 = vunpack.c.l.b16 %v926
    %v2345 = vunpack.c.h.b16 %v926
    %v2346 = vunpack.c.l.b16 %v927
    %v2347 = vunpack.c.h.b16 %v927
    %v2348 = vunpack.c.l.b16 %v928
    %v2349 = vunpack.c.h.b16 %v928
    %v2350 = vunpack.c.l.b16 %v929
    %v2351 = vunpack.c.h.b16 %v929
    %v2352 = vunpack.c.l.b16 %v930
    %v2353 = vunpack.c.h.b16 %v930
    %v2354 = vunpack.c.l.b16 %v931
    %v2355 = vunpack.c.h.b16 %v931
    %v2356 = vunpack.c.l.b16 %v932
    %v2357 = vunpack.c.h.b16 %v932
    %v2358 = vunpack.c.l.b16 %v933
    %v2359 = vunpack.c.h.b16 %v933
    %v2360 = vunpack.c.l.b16 %v934
    %v2361 = vunpack.c.h.b16 %v934
    %v2362 = vunpack.c.l.b16 %v935
    %v2363 = vunpack.c.h.b16 %v935
    %v2364 = vunpack.c.l.b16 %v936
    %v2365 = vunpack.c.h.b16 %v936
    %v2366 = vunpack.c.l.b16 %v937
    %v2367 = vunpack.c.h.b16 %v937
    %v2368 = vunpack.c.l.b16 %v938
    %v2369 = vunpack.c.h.b16 %v938
    %v2370 = vunpack.c.l.b16 %v939
    %v2371 = vunpack.c.h.b16 %v939
    %v2372 = vunpack.c.l.b16 %v940
    %v2373 = vunpack.c.h.b16 %v940
    %v2374 = vunpack.c.l.b16 %v941
    %v2375 = vunpack.c.h.b16 %v941
    %v2376 = vunpack.c.l.b16 %v942
    %v2377 = vunpack.c.h.b16 %v942
    %v2378 = vunpack.c.l.b16 %v943
    %v2379 = vunpack.c.h.b16 %v943
    %v2380 = vunpack.c.l.b16 %v944
    %v2381 = vunpack.c.h.b16 %v944
    %v2382 = vunpack.c.l.b16 %v945
    %v2383 = vunpack.c.h.b16 %v945
    %v2384 = vunpack.c.l.b16 %v946
    %v2385 = vunpack.c.h.b16 %v946
    %v2386 = vunpack.c.l.b16 %v947
    %v2387 = vunpack.c.h.b16 %v947
    %v2388 = vunpack.c.l.b16 %v948
    %v2389 = vunpack.c.h.b16 %v948
    %v2390 = vunpack.c.l.b16 %v949
    %v2391 = vunpack.c.h.b16 %v949
    %v2392 = vunpack.c.l.b16 %v950
    %v2393 = vunpack.c.h.b16 %v950
    %v2394 = vunpack.c.l.b16 %v951
    %v2395 = vunpack.c.h.b16 %v951
    %v2396 = vunpack.c.l.b16 %v952
    %v2397 = vunpack.c.h.b16 %v952
    %v2398 = vunpack.c.l.b16 %v953
    %v2399 = vunpack.c.h.b16 %v953
    %v2400 = vunpack.c.l.b16 %v954
    %v2401 = vunpack.c.h.b16 %v954
    %v2402 = vunpack.c.l.b16 %v955
    %v2403 = vunpack.c.h.b16 %v955
    %v2404 = vunpack.c.l.b16 %v956
    %v2405 = vunpack.c.h.b16 %v956
    %v2406 = vunpack.c.l.b16 %v957
    %v2407 = vunpack.c.h.b16 %v957
    %v2408 = vunpack.c.l.b16 %v958
    %v2409 = vunpack.c.h.b16 %v958
    %v2410 = vunpack.c.l.b16 %v959
    %v2411 = vunpack.c.h.b16 %v959
    %v2412 = vunpack.c.l.b16 %v960
    %v2413 = vunpack.c.h.b16 %v960
    %v2414 = vunpack.c.l.b16 %v961
    %v2415 = vunpack.c.h.b16 %v961
    %v2416 = vunpack.c.l.b16 %v962
    %v2417 = vunpack.c.h.b16 %v962
    %v2418 = vunpack.c.l.b16 %v963
    %v2419 = vunpack.c.h.b16 %v963
    %v2420 = vunpack.c.l.b16 %v964
    %v2421 = vunpack.c.h.b16 %v964
    %v2422 = vunpack.c.l.b16 %v965
    %v2423 = vunpack.c.h.b16 %v965
    %v2424 = vunpack.c.l.b16 %v966
    %v2425 = vunpack.c.h.b16 %v966
    %v2426 = vunpack.c.l.b16 %v967
    %v2427 = vunpack.c.h.b16 %v967
    %v2428 = vunpack.c.l.b16 %v968
    %v2429 = vunpack.c.h.b16 %v968
    %v2430 = vunpack.c.l.b16 %v969
    %v2431 = vunpack.c.h.b16 %v969
    %v2432 = vunpack.c.l.b16 %v970
    %v2433 = vunpack.c.h.b16 %v970
    %v2434 = vunpack.c.l.b16 %v971
    %v2435 = vunpack.c.h.b16 %v971
    %v2436 = vunpack.c.l.b16 %v972
    %v2437 = vunpack.c.h.b16 %v972
    %v2438 = vunpack.c.l.b16 %v973
    %v2439 = vunpack.c.h.b16 %v973
    %v2440 = vunpack.c.l.b16 %v974
    %v2441 = vunpack.c.h.b16 %v974
    %v2442 = vunpack.c.l.b16 %v975
    %v2443 = vunpack.c.h.b16 %v975
    %v2444 = vunpack.c.l.b16 %v976
    %v2445 = vunpack.c.h.b16 %v976
    %v2446 = vunpack.c.l.b16 %v977
    %v2447 = vunpack.c.h.b16 %v977
    %v2448 = vunpack.c.l.b16 %v978
    %v2449 = vunpack.c.h.b16 %v978
    %v2450 = vunpack.c.l.b16 %v979
    %v2451 = vunpack.c.h.b16 %v979
    %v2452 = vunpack.c.l.b16 %v980
    %v2453 = vunpack.c.h.b16 %v980
    %v2454 = vunpack.c.l.b16 %v981
    %v2455 = vunpack.c.h.b16 %v981
    %v2456 = vunpack.c.l.b16 %v982
    %v2457 = vunpack.c.h.b16 %v982
    %v2458 = vunpack.c.l.b16 %v983
    %v2459 = vunpack.c.h.b16 %v983
    %v2460 = vunpack.c.l.b16 %v984
    %v2461 = vunpack.c.h.b16 %v984
    %v2462 = vunpack.c.l.b16 %v985
    %v2463 = vunpack.c.h.b16 %v985
    %v2464 = vunpack.c.l.b16 %v986
    %v2465 = vunpack.c.h.b16 %v986
    %v2466 = vunpack.c.l.b16 %v987
    %v2467 = vunpack.c.h.b16 %v987
    %v2468 = vunpack.c.l.b16 %v988
    %v2469 = vunpack.c.h.b16 %v988
    %v2470 = vunpack.c.l.b16 %v989
    %v2471 = vunpack.c.h.b16 %v989
    %v2472 = vunpack.c.l.b16 %v990
    %v2473 = vunpack.c.h.b16 %v990
    %v2474 = vunpack.c.l.b16 %v991
    %v2475 = vunpack.c.h.b16 %v991
    %v2476 = vunpack.c.l.b16 %v992
    %v2477 = vunpack.c.h.b16 %v992
    %v2478 = vunpack.c.l.b16 %v993
    %v2479 = vunpack.c.h.b16 %v993
    %v2480 = vunpack.c.l.b16 %v994
    %v2481 = vunpack.c.h.b16 %v994
    %v2482 = vunpack.c.l.b16 %v995
    %v2483 = vunpack.c.h.b16 %v995
    %v2484 = vunpack.c.l.b16 %v996
    %v2485 = vunpack.c.h.b16 %v996
    %v2486 = vunpack.c.l.b16 %v997
    %v2487 = vunpack.c.h.b16 %v997
    %v2488 = vunpack.c.l.b16 %v998
    %v2489 = vunpack.c.h.b16 %v998
    %v2490 = vunpack.c.l.b16 %v999
    %v2491 = vunpack.c.h.b16 %v999
    %v2492 = vunpack.c.l.b16 %v1000
    %v2493 = vunpack.c.h.b16 %v1000
    %v2494 = vunpack.c.l.b16 %v1001
    %v2495 = vunpack.c.h.b16 %v1001
    %v2496 = vunpack.c.l.b16 %v1002
    %v2497 = vunpack.c.h.b16 %v1002
    %v2498 = vunpack.c.l.b16 %v1003
    %v2499 = vunpack.c.h.b16 %v1003
    %v2500 = vunpack.c.l.b16 %v1004
    %v2501 = vunpack.c.h.b16 %v1004
    %v2502 = vunpack.c.l.b16 %v1005
    %v2503 = vunpack.c.h.b16 %v1005
    %v2504 = vunpack.c.l.b16 %v1006
    %v2505 = vunpack.c.h.b16 %v1006
    %v2506 = vunpack.c.l.b16 %v1007
    %v2507 = vunpack.c.h.b16 %v1007
    %v2508 = vunpack.c.l.b16 %v1008
    %v2509 = vunpack.c.h.b16 %v1008
    %v2510 = vunpack.c.l.b16 %v1009
    %v2511 = vunpack.c.h.b16 %v1009
    %v2512 = vunpack.c.l.b16 %v1010
    %v2513 = vunpack.c.h.b16 %v1010
    %v2514 = vunpack.c.l.b16 %v1011
    %v2515 = vunpack.c.h.b16 %v1011
    %v2516 = vunpack.c.l.b16 %v1012
    %v2517 = vunpack.c.h.b16 %v1012
    %v2518 = vunpack.c.l.b16 %v1013
    %v2519 = vunpack.c.h.b16 %v1013
    %v2520 = vunpack.c.l.b16 %v1014
    %v2521 = vunpack.c.h.b16 %v1014
    %v2522 = vunpack.c.l.b16 %v1015
    %v2523 = vunpack.c.h.b16 %v1015
    %v2524 = vunpack.c.l.b16 %v1016
    %v2525 = vunpack.c.h.b16 %v1016
    %v2526 = vunpack.c.l.b16 %v1017
    %v2527 = vunpack.c.h.b16 %v1017
    %v2528 = vunpack.c.l.b16 %v1018
    %v2529 = vunpack.c.h.b16 %v1018
    %v2530 = vunpack.c.l.b16 %v1019
    %v2531 = vunpack.c.h.b16 %v1019
    %v2532 = vunpack.c.l.b16 %v1020
    %v2533 = vunpack.c.h.b16 %v1020
    %v2534 = vunpack.c.l.b16 %v1021
    %v2535 = vunpack.c.h.b16 %v1021
    %v2536 = vunpack.c.l.b16 %v1022
    %v2537 = vunpack.c.h.b16 %v1022
    %v2538 = vunpack.c.l.b16 %v1023
    %v2539 = vunpack.c.h.b16 %v1023
    %v2540 = vunpack.c.l.b16 %v1024
    %v2541 = vunpack.c.h.b16 %v1024
    %v2542 = vunpack.c.l.b16 %v1025
    %v2543 = vunpack.c.h.b16 %v1025
    %v2544 = vunpack.c.l.b16 %v1026
    %v2545 = vunpack.c.h.b16 %v1026
    %v2546 = vunpack.c.l.b16 %v1027
    %v2547 = vunpack.c.h.b16 %v1027
    %v2548 = vunpack.c.l.b16 %v1028
    %v2549 = vunpack.c.h.b16 %v1028
    %v2550 = vunpack.c.l.b16 %v1029
    %v2551 = vunpack.c.h.b16 %v1029
    %v2552 = vunpack.c.l.b16 %v1030
    %v2553 = vunpack.c.h.b16 %v1030
    %v2554 = vunpack.c.l.b16 %v1031
    %v2555 = vunpack.c.h.b16 %v1031
    %v2556 = vunpack.c.l.b16 %v1032
    %v2557 = vunpack.c.h.b16 %v1032
    %v2558 = vunpack.c.l.b16 %v1033
    %v2559 = vunpack.c.h.b16 %v1033
    %v2560 = vunpack.c.l.b16 %v1034
    %v2561 = vunpack.c.h.b16 %v1034
    %v2562 = vunpack.c.l.b16 %v1035
    %v2563 = vunpack.c.h.b16 %v1035
    %v2564 = vunpack.c.l.b16 %v1036
    %v2565 = vunpack.c.h.b16 %v1036
    %v2566 = vunpack.c.l.b16 %v1037
    %v2567 = vunpack.c.h.b16 %v1037
    %v2568 = vunpack.c.l.b16 %v1038
    %v2569 = vunpack.c.h.b16 %v1038
    %v2570 = vunpack.c.l.b16 %v1039
    %v2571 = vunpack.c.h.b16 %v1039
    %v2572 = vunpack.c.l.b16 %v1040
    %v2573 = vunpack.c.h.b16 %v1040
    %v2574 = vunpack.c.l.b16 %v1041
    %v2575 = vunpack.c.h.b16 %v1041
    %v2576 = vunpack.c.l.b16 %v1042
    %v2577 = vunpack.c.h.b16 %v1042
    %v2578 = vunpack.c.l.b16 %v1043
    %v2579 = vunpack.c.h.b16 %v1043
    %v2580 = vunpack.c.l.b16 %v1044
    %v2581 = vunpack.c.h.b16 %v1044
    %v2582 = vunpack.c.l.b16 %v1045
    %v2583 = vunpack.c.h.b16 %v1045
    %v2584 = vunpack.c.l.b16 %v1046
    %v2585 = vunpack.c.h.b16 %v1046
    %v2586 = vunpack.c.l.b16 %v1047
    %v2587 = vunpack.c.h.b16 %v1047
    %v2588 = vunpack.c.l.b16 %v1048
    %v2589 = vunpack.c.h.b16 %v1048
    %v2590 = vunpack.c.l.b16 %v1049
    %v2591 = vunpack.c.h.b16 %v1049
    %v2592 = vunpack.c.l.b16 %v1050
    %v2593 = vunpack.c.h.b16 %v1050
    %v2594 = vunpack.c.l.b16 %v1051
    %v2595 = vunpack.c.h.b16 %v1051
    %v2596 = vunpack.c.l.b16 %v1052
    %v2597 = vunpack.c.h.b16 %v1052
    %v2598 = vunpack.c.l.b16 %v1053
    %v2599 = vunpack.c.h.b16 %v1053
    %v2600 = vunpack.c.l.b16 %v1054
    %v2601 = vunpack.c.h.b16 %v1054
    %v2602 = vunpack.c.l.b16 %v1055
    %v2603 = vunpack.c.h.b16 %v1055
    %v2604 = vunpack.c.l.b16 %v1056
    %v2605 = vunpack.c.h.b16 %v1056
    %v2606 = vunpack.c.l.b16 %v1057
    %v2607 = vunpack.c.h.b16 %v1057
    %v2608 = vunpack.c.l.b16 %v1058
    %v2609 = vunpack.c.h.b16 %v1058
    %v2610 = vunpack.c.l.b16 %v1059
    %v2611 = vunpack.c.h.b16 %v1059
    %v2612 = vunpack.c.l.b16 %v1060
    %v2613 = vunpack.c.h.b16 %v1060
    %v2614 = vunpack.c.l.b16 %v1061
    %v2615 = vunpack.c.h.b16 %v1061
    %v2616 = vpack.c.b16 %v1600, %v1592
    %v2617 = vpack.c.b16 %v1601, %v1593
    %v2618 = vpack.c.b16 %v1602, %v1594
    %v2619 = vpack.c.b16 %v1603, %v1595
    %v2620 = vpack.c.b16 %v1604, %v1596
    %v2621 = vpack.c.b16 %v1605, %v1597
    %v2622 = vpack.c.b16 %v1606, %v1598
    %v2623 = vpack.c.b16 %v1607, %v1599
    %v2624 = vpack.c.b16 %v1616, %v1608
    %v2625 = vpack.c.b16 %v1617, %v1609
    %v2626 = vpack.c.b16 %v1618, %v1610
    %v2627 = vpack.c.b16 %v1619, %v1611
    %v2628 = vpack.c.b16 %v1620, %v1612
    %v2629 = vpack.c.b16 %v1621, %v1613
    %v2630 = vpack.c.b16 %v1622, %v1614
    %v2631 = vpack.c.b16 %v1623, %v1615
    %v2632 = vpack.c.b16 %v1632, %v1624
    %v2633 = vpack.c.b16 %v1633, %v1625
    %v2634 = vpack.c.b16 %v1634, %v1626
    %v2635 = vpack.c.b16 %v1635, %v1627
    %v2636 = vpack.c.b16 %v1636, %v1628
    %v2637 = vpack.c.b16 %v1637, %v1629
    %v2638 = vpack.c.b16 %v1638, %v1630
    %v2639 = vpack.c.b16 %v1639, %v1631
    %v2640 = vpack.c.b16 %v1648, %v1640
    %v2641 = vpack.c.b16 %v1649, %v1641
    %v2642 = vpack.c.b16 %v1650, %v1642
    %v2643 = vpack.c.b16 %v1651, %v1643
    %v2644 = vpack.c.b16 %v1652, %v1644
    %v2645 = vpack.c.b16 %v1653, %v1645
    %v2646 = vpack.c.b16 %v1654, %v1646
    %v2647 = vpack.c.b16 %v1655, %v1647
    %v2648 = vpack.c.b16 %v1664, %v1656
    %v2649 = vpack.c.b16 %v1665, %v1657
    %v2650 = vpack.c.b16 %v1666, %v1658
    %v2651 = vpack.c.b16 %v1667, %v1659
    %v2652 = vpack.c.b16 %v1668, %v1660
    %v2653 = vpack.c.b16 %v1669, %v1661
    %v2654 = vpack.c.b16 %v1670, %v1662
    %v2655 = vpack.c.b16 %v1671, %v1663
    %v2656 = vpack.c.b16 %v1680, %v1672
    %v2657 = vpack.c.b16 %v1681, %v1673
    %v2658 = vpack.c.b16 %v1682, %v1674
    %v2659 = vpack.c.b16 %v1683, %v1675
    %v2660 = vpack.c.b16 %v1684, %v1676
    %v2661 = vpack.c.b16 %v1685, %v1677
    %v2662 = vpack.c.b16 %v1686, %v1678
    %v2663 = vpack.c.b16 %v1687, %v1679
    %v2664 = vpack.c.b16 %v1696, %v1688
    %v2665 = vpack.c.b16 %v1697, %v1689
    %v2666 = vpack.c.b16 %v1698, %v1690
    %v2667 = vpack.c.b16 %v1699, %v1691
    %v2668 = vpack.c.b16 %v1700, %v1692
    %v2669 = vpack.c.b16 %v1701, %v1693
    %v2670 = vpack.c.b16 %v1702, %v1694
    %v2671 = vpack.c.b16 %v1703, %v1695
    %v2672 = vpack.c.b16 %v1712, %v1704
    %v2673 = vpack.c.b16 %v1713, %v1705
    %v2674 = vpack.c.b16 %v1714, %v1706
    %v2675 = vpack.c.b16 %v1715, %v1707
    %v2676 = vpack.c.b16 %v1716, %v1708
    %v2677 = vpack.c.b16 %v1717, %v1709
    %v2678 = vpack.c.b16 %v1718, %v1710
    %v2679 = vpack.c.b16 %v1719, %v1711
    %v2680 = vpack.c.b16 %v1728, %v1720
    %v2681 = vpack.c.b16 %v1729, %v1721
    %v2682 = vpack.c.b16 %v1730, %v1722
    %v2683 = vpack.c.b16 %v1731, %v1723
    %v2684 = vpack.c.b16 %v1732, %v1724
    %v2685 = vpack.c.b16 %v1733, %v1725
    %v2686 = vpack.c.b16 %v1734, %v1726
    %v2687 = vpack.c.b16 %v1735, %v1727
    %v2688 = vpack.c.b16 %v1744, %v1736
    %v2689 = vpack.c.b16 %v1745, %v1737
    %v2690 = vpack.c.b16 %v1746, %v1738
    %v2691 = vpack.c.b16 %v1747, %v1739
    %v2692 = vpack.c.b16 %v1748, %v1740
    %v2693 = vpack.c.b16 %v1749, %v1741
    %v2694 = vpack.c.b16 %v1750, %v1742
    %v2695 = vpack.c.b16 %v1751, %v1743
    %v2696 = vpack.c.b16 %v1760, %v1752
    %v2697 = vpack.c.b16 %v1761, %v1753
    %v2698 = vpack.c.b16 %v1762, %v1754
    %v2699 = vpack.c.b16 %v1763, %v1755
    %v2700 = vpack.c.b16 %v1764, %v1756
    %v2701 = vpack.c.b16 %v1765, %v1757
    %v2702 = vpack.c.b16 %v1766, %v1758
    %v2703 = vpack.c.b16 %v1767, %v1759
    %v2704 = vpack.c.b16 %v1776, %v1768
    %v2705 = vpack.c.b16 %v1777, %v1769
    %v2706 = vpack.c.b16 %v1778, %v1770
    %v2707 = vpack.c.b16 %v1779, %v1771
    %v2708 = vpack.c.b16 %v1780, %v1772
    %v2709 = vpack.c.b16 %v1781, %v1773
    %v2710 = vpack.c.b16 %v1782, %v1774
    %v2711 = vpack.c.b16 %v1783, %v1775
    %v2712 = vpack.c.b16 %v1792, %v1784
    %v2713 = vpack.c.b16 %v1793, %v1785
    %v2714 = vpack.c.b16 %v1794, %v1786
    %v2715 = vpack.c.b16 %v1795, %v1787
    %v2716 = vpack.c.b16 %v1796, %v1788
    %v2717 = vpack.c.b16 %v1797, %v1789
    %v2718 = vpack.c.b16 %v1798, %v1790
    %v2719 = vpack.c.b16 %v1799, %v1791
    %v2720 = vpack.c.b16 %v1808, %v1800
    %v2721 = vpack.c.b16 %v1809, %v1801
    %v2722 = vpack.c.b16 %v1810, %v1802
    %v2723 = vpack.c.b16 %v1811, %v1803
    %v2724 = vpack.c.b16 %v1812, %v1804
    %v2725 = vpack.c.b16 %v1813, %v1805
    %v2726 = vpack.c.b16 %v1814, %v1806
    %v2727 = vpack.c.b16 %v1815, %v1807
    %v2728 = vpack.c.b16 %v1824, %v1816
    %v2729 = vpack.c.b16 %v1825, %v1817
    %v2730 = vpack.c.b16 %v1826, %v1818
    %v2731 = vpack.c.b16 %v1827, %v1819
    %v2732 = vpack.c.b16 %v1828, %v1820
    %v2733 = vpack.c.b16 %v1829, %v1821
    %v2734 = vpack.c.b16 %v1830, %v1822
    %v2735 = vpack.c.b16 %v1831, %v1823
    %v2736 = vpack.c.b16 %v1840, %v1832
    %v2737 = vpack.c.b16 %v1841, %v1833
    %v2738 = vpack.c.b16 %v1842, %v1834
    %v2739 = vpack.c.b16 %v1843, %v1835
    %v2740 = vpack.c.b16 %v1844, %v1836
    %v2741 = vpack.c.b16 %v1845, %v1837
    %v2742 = vpack.c.b16 %v1846, %v1838
    %v2743 = vpack.c.b16 %v1847, %v1839
    %v2744 = vpack.c.b16 %v1856, %v1848
    %v2745 = vpack.c.b16 %v1857, %v1849
    %v2746 = vpack.c.b16 %v1858, %v1850
    %v2747 = vpack.c.b16 %v1859, %v1851
    %v2748 = vpack.c.b16 %v1860, %v1852
    %v2749 = vpack.c.b16 %v1861, %v1853
    %v2750 = vpack.c.b16 %v1862, %v1854
    %v2751 = vpack.c.b16 %v1863, %v1855
    %v2752 = vpack.c.b16 %v1872, %v1864
    %v2753 = vpack.c.b16 %v1873, %v1865
    %v2754 = vpack.c.b16 %v1874, %v1866
    %v2755 = vpack.c.b16 %v1875, %v1867
    %v2756 = vpack.c.b16 %v1876, %v1868
    %v2757 = vpack.c.b16 %v1877, %v1869
    %v2758 = vpack.c.b16 %v1878, %v1870
    %v2759 = vpack.c.b16 %v1879, %v1871
    %v2760 = vpack.c.b16 %v1888, %v1880
    %v2761 = vpack.c.b16 %v1889, %v1881
    %v2762 = vpack.c.b16 %v1890, %v1882
    %v2763 = vpack.c.b16 %v1891, %v1883
    %v2764 = vpack.c.b16 %v1892, %v1884
    %v2765 = vpack.c.b16 %v1893, %v1885
    %v2766 = vpack.c.b16 %v1894, %v1886
    %v2767 = vpack.c.b16 %v1895, %v1887
    %v2768 = vpack.c.b16 %v1904, %v1896
    %v2769 = vpack.c.b16 %v1905, %v1897
    %v2770 = vpack.c.b16 %v1906, %v1898
    %v2771 = vpack.c.b16 %v1907, %v1899
    %v2772 = vpack.c.b16 %v1908, %v1900
    %v2773 = vpack.c.b16 %v1909, %v1901
    %v2774 = vpack.c.b16 %v1910, %v1902
    %v2775 = vpack.c.b16 %v1911, %v1903
    %v2776 = vpack.c.b16 %v1920, %v1912
    %v2777 = vpack.c.b16 %v1921, %v1913
    %v2778 = vpack.c.b16 %v1922, %v1914
    %v2779 = vpack.c.b16 %v1923, %v1915
    %v2780 = vpack.c.b16 %v1924, %v1916
    %v2781 = vpack.c.b16 %v1925, %v1917
    %v2782 = vpack.c.b16 %v1926, %v1918
    %v2783 = vpack.c.b16 %v1927, %v1919
    %v2784 = vpack.c.b16 %v1936, %v1928
    %v2785 = vpack.c.b16 %v1937, %v1929
    %v2786 = vpack.c.b16 %v1938, %v1930
    %v2787 = vpack.c.b16 %v1939, %v1931
    %v2788 = vpack.c.b16 %v1940, %v1932
    %v2789 = vpack.c.b16 %v1941, %v1933
    %v2790 = vpack.c.b16 %v1942, %v1934
    %v2791 = vpack.c.b16 %v1943, %v1935
    %v2792 = vpack.c.b16 %v1952, %v1944
    %v2793 = vpack.c.b16 %v1953, %v1945
    %v2794 = vpack.c.b16 %v1954, %v1946
    %v2795 = vpack.c.b16 %v1955, %v1947
    %v2796 = vpack.c.b16 %v1956, %v1948
    %v2797 = vpack.c.b16 %v1957, %v1949
    %v2798 = vpack.c.b16 %v1958, %v1950
    %v2799 = vpack.c.b16 %v1959, %v1951
    %v2800 = vpack.c.b16 %v1968, %v1960
    %v2801 = vpack.c.b16 %v1969, %v1961
    %v2802 = vpack.c.b16 %v1970, %v1962
    %v2803 = vpack.c.b16 %v1971, %v1963
    %v2804 = vpack.c.b16 %v1972, %v1964
    %v2805 = vpack.c.b16 %v1973, %v1965
    %v2806 = vpack.c.b16 %v1974, %v1966
    %v2807 = vpack.c.b16 %v1975, %v1967
    %v2808 = vpack.c.b16 %v1984, %v1976
    %v2809 = vpack.c.b16 %v1985, %v1977
    %v2810 = vpack.c.b16 %v1986, %v1978
    %v2811 = vpack.c.b16 %v1987, %v1979
    %v2812 = vpack.c.b16 %v1988, %v1980
    %v2813 = vpack.c.b16 %v1989, %v1981
    %v2814 = vpack.c.b16 %v1990, %v1982
    %v2815 = vpack.c.b16 %v1991, %v1983
    %v2816 = vpack.c.b16 %v2000, %v1992
    %v2817 = vpack.c.b16 %v2001, %v1993
    %v2818 = vpack.c.b16 %v2002, %v1994
    %v2819 = vpack.c.b16 %v2003, %v1995
    %v2820 = vpack.c.b16 %v2004, %v1996
    %v2821 = vpack.c.b16 %v2005, %v1997
    %v2822 = vpack.c.b16 %v2006, %v1998
    %v2823 = vpack.c.b16 %v2007, %v1999
    %v2824 = vpack.c.b16 %v2016, %v2008
    %v2825 = vpack.c.b16 %v2017, %v2009
    %v2826 = vpack.c.b16 %v2018, %v2010
    %v2827 = vpack.c.b16 %v2019, %v2011
    %v2828 = vpack.c.b16 %v2020, %v2012
    %v2829 = vpack.c.b16 %v2021, %v2013
    %v2830 = vpack.c.b16 %v2022, %v2014
    %v2831 = vpack.c.b16 %v2023, %v2015
    %v2832 = vpack.c.b16 %v2032, %v2024
    %v2833 = vpack.c.b16 %v2033, %v2025
    %v2834 = vpack.c.b16 %v2034, %v2026
    %v2835 = vpack.c.b16 %v2035, %v2027
    %v2836 = vpack.c.b16 %v2036, %v2028
    %v2837 = vpack.c.b16 %v2037, %v2029
    %v2838 = vpack.c.b16 %v2038, %v2030
    %v2839 = vpack.c.b16 %v2039, %v2031
    %v2840 = vpack.c.b16 %v2048, %v2040
    %v2841 = vpack.c.b16 %v2049, %v2041
    %v2842 = vpack.c.b16 %v2050, %v2042
    %v2843 = vpack.c.b16 %v2051, %v2043
    %v2844 = vpack.c.b16 %v2052, %v2044
    %v2845 = vpack.c.b16 %v2053, %v2045
    %v2846 = vpack.c.b16 %v2054, %v2046
    %v2847 = vpack.c.b16 %v2055, %v2047
    %v2848 = vpack.c.b16 %v2064, %v2056
    %v2849 = vpack.c.b16 %v2065, %v2057
    %v2850 = vpack.c.b16 %v2066, %v2058
    %v2851 = vpack.c.b16 %v2067, %v2059
    %v2852 = vpack.c.b16 %v2068, %v2060
    %v2853 = vpack.c.b16 %v2069, %v2061
    %v2854 = vpack.c.b16 %v2070, %v2062
    %v2855 = vpack.c.b16 %v2071, %v2063
    %v2856 = vpack.c.b16 %v2080, %v2072
    %v2857 = vpack.c.b16 %v2081, %v2073
    %v2858 = vpack.c.b16 %v2082, %v2074
    %v2859 = vpack.c.b16 %v2083, %v2075
    %v2860 = vpack.c.b16 %v2084, %v2076
    %v2861 = vpack.c.b16 %v2085, %v2077
    %v2862 = vpack.c.b16 %v2086, %v2078
    %v2863 = vpack.c.b16 %v2087, %v2079
    %v2864 = vpack.c.b16 %v2096, %v2088
    %v2865 = vpack.c.b16 %v2097, %v2089
    %v2866 = vpack.c.b16 %v2098, %v2090
    %v2867 = vpack.c.b16 %v2099, %v2091
    %v2868 = vpack.c.b16 %v2100, %v2092
    %v2869 = vpack.c.b16 %v2101, %v2093
    %v2870 = vpack.c.b16 %v2102, %v2094
    %v2871 = vpack.c.b16 %v2103, %v2095
    %v2872 = vpack.c.b16 %v2112, %v2104
    %v2873 = vpack.c.b16 %v2113, %v2105
    %v2874 = vpack.c.b16 %v2114, %v2106
    %v2875 = vpack.c.b16 %v2115, %v2107
    %v2876 = vpack.c.b16 %v2116, %v2108
    %v2877 = vpack.c.b16 %v2117, %v2109
    %v2878 = vpack.c.b16 %v2118, %v2110
    %v2879 = vpack.c.b16 %v2119, %v2111
    %v2880 = vpack.c.b16 %v2128, %v2120
    %v2881 = vpack.c.b16 %v2129, %v2121
    %v2882 = vpack.c.b16 %v2130, %v2122
    %v2883 = vpack.c.b16 %v2131, %v2123
    %v2884 = vpack.c.b16 %v2132, %v2124
    %v2885 = vpack.c.b16 %v2133, %v2125
    %v2886 = vpack.c.b16 %v2134, %v2126
    %v2887 = vpack.c.b16 %v2135, %v2127
    %v2888 = vpack.c.b16 %v2144, %v2136
    %v2889 = vpack.c.b16 %v2145, %v2137
    %v2890 = vpack.c.b16 %v2146, %v2138
    %v2891 = vpack.c.b16 %v2147, %v2139
    %v2892 = vpack.c.b16 %v2148, %v2140
    %v2893 = vpack.c.b16 %v2149, %v2141
    %v2894 = vpack.c.b16 %v2150, %v2142
    %v2895 = vpack.c.b16 %v2151, %v2143
    %v2896 = vpack.c.b16 %v2160, %v2152
    %v2897 = vpack.c.b16 %v2161, %v2153
    %v2898 = vpack.c.b16 %v2162, %v2154
    %v2899 = vpack.c.b16 %v2163, %v2155
    %v2900 = vpack.c.b16 %v2164, %v2156
    %v2901 = vpack.c.b16 %v2165, %v2157
    %v2902 = vpack.c.b16 %v2166, %v2158
    %v2903 = vpack.c.b16 %v2167, %v2159
    %v2904 = vpack.c.b16 %v2176, %v2168
    %v2905 = vpack.c.b16 %v2177, %v2169
    %v2906 = vpack.c.b16 %v2178, %v2170
    %v2907 = vpack.c.b16 %v2179, %v2171
    %v2908 = vpack.c.b16 %v2180, %v2172
    %v2909 = vpack.c.b16 %v2181, %v2173
    %v2910 = vpack.c.b16 %v2182, %v2174
    %v2911 = vpack.c.b16 %v2183, %v2175
    %v2912 = vpack.c.b16 %v2192, %v2184
    %v2913 = vpack.c.b16 %v2193, %v2185
    %v2914 = vpack.c.b16 %v2194, %v2186
    %v2915 = vpack.c.b16 %v2195, %v2187
    %v2916 = vpack.c.b16 %v2196, %v2188
    %v2917 = vpack.c.b16 %v2197, %v2189
    %v2918 = vpack.c.b16 %v2198, %v2190
    %v2919 = vpack.c.b16 %v2199, %v2191
    %v2920 = vpack.c.b16 %v2208, %v2200
    %v2921 = vpack.c.b16 %v2209, %v2201
    %v2922 = vpack.c.b16 %v2210, %v2202
    %v2923 = vpack.c.b16 %v2211, %v2203
    %v2924 = vpack.c.b16 %v2212, %v2204
    %v2925 = vpack.c.b16 %v2213, %v2205
    %v2926 = vpack.c.b16 %v2214, %v2206
    %v2927 = vpack.c.b16 %v2215, %v2207
    %v2928 = vpack.c.b16 %v2224, %v2216
    %v2929 = vpack.c.b16 %v2225, %v2217
    %v2930 = vpack.c.b16 %v2226, %v2218
    %v2931 = vpack.c.b16 %v2227, %v2219
    %v2932 = vpack.c.b16 %v2228, %v2220
    %v2933 = vpack.c.b16 %v2229, %v2221
    %v2934 = vpack.c.b16 %v2230, %v2222
    %v2935 = vpack.c.b16 %v2231, %v2223
    %v2936 = vpack.c.b16 %v2240, %v2232
    %v2937 = vpack.c.b16 %v2241, %v2233
    %v2938 = vpack.c.b16 %v2242, %v2234
    %v2939 = vpack.c.b16 %v2243, %v2235
    %v2940 = vpack.c.b16 %v2244, %v2236
    %v2941 = vpack.c.b16 %v2245, %v2237
    %v2942 = vpack.c.b16 %v2246, %v2238
    %v2943 = vpack.c.b16 %v2247, %v2239
    %v2944 = vpack.c.b16 %v2256, %v2248
    %v2945 = vpack.c.b16 %v2257, %v2249
    %v2946 = vpack.c.b16 %v2258, %v2250
    %v2947 = vpack.c.b16 %v2259, %v2251
    %v2948 = vpack.c.b16 %v2260, %v2252
    %v2949 = vpack.c.b16 %v2261, %v2253
    %v2950 = vpack.c.b16 %v2262, %v2254
    %v2951 = vpack.c.b16 %v2263, %v2255
    %v2952 = vpack.c.b16 %v2272, %v2264
    %v2953 = vpack.c.b16 %v2273, %v2265
    %v2954 = vpack.c.b16 %v2274, %v2266
    %v2955 = vpack.c.b16 %v2275, %v2267
    %v2956 = vpack.c.b16 %v2276, %v2268
    %v2957 = vpack.c.b16 %v2277, %v2269
    %v2958 = vpack.c.b16 %v2278, %v2270
    %v2959 = vpack.c.b16 %v2279, %v2271
    %v2960 = vpack.c.b16 %v2288, %v2280
    %v2961 = vpack.c.b16 %v2289, %v2281
    %v2962 = vpack.c.b16 %v2290, %v2282
    %v2963 = vpack.c.b16 %v2291, %v2283
    %v2964 = vpack.c.b16 %v2292, %v2284
    %v2965 = vpack.c.b16 %v2293, %v2285
    %v2966 = vpack.c.b16 %v2294, %v2286
    %v2967 = vpack.c.b16 %v2295, %v2287
    %v2968 = vpack.c.b16 %v2304, %v2296
    %v2969 = vpack.c.b16 %v2305, %v2297
    %v2970 = vpack.c.b16 %v2306, %v2298
    %v2971 = vpack.c.b16 %v2307, %v2299
    %v2972 = vpack.c.b16 %v2308, %v2300
    %v2973 = vpack.c.b16 %v2309, %v2301
    %v2974 = vpack.c.b16 %v2310, %v2302
    %v2975 = vpack.c.b16 %v2311, %v2303
    %v2976 = vpack.c.b16 %v2320, %v2312
    %v2977 = vpack.c.b16 %v2321, %v2313
    %v2978 = vpack.c.b16 %v2322, %v2314
    %v2979 = vpack.c.b16 %v2323, %v2315
    %v2980 = vpack.c.b16 %v2324, %v2316
    %v2981 = vpack.c.b16 %v2325, %v2317
    %v2982 = vpack.c.b16 %v2326, %v2318
    %v2983 = vpack.c.b16 %v2327, %v2319
    %v2984 = vpack.c.b16 %v2336, %v2328
    %v2985 = vpack.c.b16 %v2337, %v2329
    %v2986 = vpack.c.b16 %v2338, %v2330
    %v2987 = vpack.c.b16 %v2339, %v2331
    %v2988 = vpack.c.b16 %v2340, %v2332
    %v2989 = vpack.c.b16 %v2341, %v2333
    %v2990 = vpack.c.b16 %v2342, %v2334
    %v2991 = vpack.c.b16 %v2343, %v2335
    %v2992 = vpack.c.b16 %v2352, %v2344
    %v2993 = vpack.c.b16 %v2353, %v2345
    %v2994 = vpack.c.b16 %v2354, %v2346
    %v2995 = vpack.c.b16 %v2355, %v2347
    %v2996 = vpack.c.b16 %v2356, %v2348
    %v2997 = vpack.c.b16 %v2357, %v2349
    %v2998 = vpack.c.b16 %v2358, %v2350
    %v2999 = vpack.c.b16 %v2359, %v2351
    %v3000 = vpack.c.b16 %v2368, %v2360
    %v3001 = vpack.c.b16 %v2369, %v2361
    %v3002 = vpack.c.b16 %v2370, %v2362
    %v3003 = vpack.c.b16 %v2371, %v2363
    %v3004 = vpack.c.b16 %v2372, %v2364
    %v3005 = vpack.c.b16 %v2373, %v2365
    %v3006 = vpack.c.b16 %v2374, %v2366
    %v3007 = vpack.c.b16 %v2375, %v2367
    %v3008 = vpack.c.b16 %v2384, %v2376
    %v3009 = vpack.c.b16 %v2385, %v2377
    %v3010 = vpack.c.b16 %v2386, %v2378
    %v3011 = vpack.c.b16 %v2387, %v2379
    %v3012 = vpack.c.b16 %v2388, %v2380
    %v3013 = vpack.c.b16 %v2389, %v2381
    %v3014 = vpack.c.b16 %v2390, %v2382
    %v3015 = vpack.c.b16 %v2391, %v2383
    %v3016 = vpack.c.b16 %v2400, %v2392
    %v3017 = vpack.c.b16 %v2401, %v2393
    %v3018 = vpack.c.b16 %v2402, %v2394
    %v3019 = vpack.c.b16 %v2403, %v2395
    %v3020 = vpack.c.b16 %v2404, %v2396
    %v3021 = vpack.c.b16 %v2405, %v2397
    %v3022 = vpack.c.b16 %v2406, %v2398
    %v3023 = vpack.c.b16 %v2407, %v2399
    %v3024 = vpack.c.b16 %v2416, %v2408
    %v3025 = vpack.c.b16 %v2417, %v2409
    %v3026 = vpack.c.b16 %v2418, %v2410
    %v3027 = vpack.c.b16 %v2419, %v2411
    %v3028 = vpack.c.b16 %v2420, %v2412
    %v3029 = vpack.c.b16 %v2421, %v2413
    %v3030 = vpack.c.b16 %v2422, %v2414
    %v3031 = vpack.c.b16 %v2423, %v2415
    %v3032 = vpack.c.b16 %v2432, %v2424
    %v3033 = vpack.c.b16 %v2433, %v2425
    %v3034 = vpack.c.b16 %v2434, %v2426
    %v3035 = vpack.c.b16 %v2435, %v2427
    %v3036 = vpack.c.b16 %v2436, %v2428
    %v3037 = vpack.c.b16 %v2437, %v2429
    %v3038 = vpack.c.b16 %v2438, %v2430
    %v3039 = vpack.c.b16 %v2439, %v2431
    %v3040 = vpack.c.b16 %v2448, %v2440
    %v3041 = vpack.c.b16 %v2449, %v2441
    %v3042 = vpack.c.b16 %v2450, %v2442
    %v3043 = vpack.c.b16 %v2451, %v2443
    %v3044 = vpack.c.b16 %v2452, %v2444
    %v3045 = vpack.c.b16 %v2453, %v2445
    %v3046 = vpack.c.b16 %v2454, %v2446
    %v3047 = vpack.c.b16 %v2455, %v2447
    %v3048 = vpack.c.b16 %v2464, %v2456
    %v3049 = vpack.c.b16 %v2465, %v2457
    %v3050 = vpack.c.b16 %v2466, %v2458
    %v3051 = vpack.c.b16 %v2467, %v2459
    %v3052 = vpack.c.b16 %v2468, %v2460
    %v3053 = vpack.c.b16 %v2469, %v2461
    %v3054 = vpack.c.b16 %v2470, %v2462
    %v3055 = vpack.c.b16 %v2471, %v2463
    %v3056 = vpack.c.b16 %v2480, %v2472
    %v3057 = vpack.c.b16 %v2481, %v2473
    %v3058 = vpack.c.b16 %v2482, %v2474
    %v3059 = vpack.c.b16 %v2483, %v2475
    %v3060 = vpack.c.b16 %v2484, %v2476
    %v3061 = vpack.c.b16 %v2485, %v2477
    %v3062 = vpack.c.b16 %v2486, %v2478
    %v3063 = vpack.c.b16 %v2487, %v2479
    %v3064 = vpack.c.b16 %v2496, %v2488
    %v3065 = vpack.c.b16 %v2497, %v2489
    %v3066 = vpack.c.b16 %v2498, %v2490
    %v3067 = vpack.c.b16 %v2499, %v2491
    %v3068 = vpack.c.b16 %v2500, %v2492
    %v3069 = vpack.c.b16 %v2501, %v2493
    %v3070 = vpack.c.b16 %v2502, %v2494
    %v3071 = vpack.c.b16 %v2503, %v2495
    %v3072 = vpack.c.b16 %v2512, %v2504
    %v3073 = vpack.c.b16 %v2513, %v2505
    %v3074 = vpack.c.b16 %v2514, %v2506
    %v3075 = vpack.c.b16 %v2515, %v2507
    %v3076 = vpack.c.b16 %v2516, %v2508
    %v3077 = vpack.c.b16 %v2517, %v2509
    %v3078 = vpack.c.b16 %v2518, %v2510
    %v3079 = vpack.c.b16 %v2519, %v2511
    %v3080 = vpack.c.b16 %v2528, %v2520
    %v3081 = vpack.c.b16 %v2529, %v2521
    %v3082 = vpack.c.b16 %v2530, %v2522
    %v3083 = vpack.c.b16 %v2531, %v2523
    %v3084 = vpack.c.b16 %v2532, %v2524
    %v3085 = vpack.c.b16 %v2533, %v2525
    %v3086 = vpack.c.b16 %v2534, %v2526
    %v3087 = vpack.c.b16 %v2535, %v2527
    %v3088 = vpack.c.b16 %v2544, %v2536
    %v3089 = vpack.c.b16 %v2545, %v2537
    %v3090 = vpack.c.b16 %v2546, %v2538
    %v3091 = vpack.c.b16 %v2547, %v2539
    %v3092 = vpack.c.b16 %v2548, %v2540
    %v3093 = vpack.c.b16 %v2549, %v2541
    %v3094 = vpack.c.b16 %v2550, %v2542
    %v3095 = vpack.c.b16 %v2551, %v2543
    %v3096 = vpack.c.b16 %v2560, %v2552
    %v3097 = vpack.c.b16 %v2561, %v2553
    %v3098 = vpack.c.b16 %v2562, %v2554
    %v3099 = vpack.c.b16 %v2563, %v2555
    %v3100 = vpack.c.b16 %v2564, %v2556
    %v3101 = vpack.c.b16 %v2565, %v2557
    %v3102 = vpack.c.b16 %v2566, %v2558
    %v3103 = vpack.c.b16 %v2567, %v2559
    %v3104 = vpack.c.b16 %v2576, %v2568
    %v3105 = vpack.c.b16 %v2577, %v2569
    %v3106 = vpack.c.b16 %v2578, %v2570
    %v3107 = vpack.c.b16 %v2579, %v2571
    %v3108 = vpack.c.b16 %v2580, %v2572
    %v3109 = vpack.c.b16 %v2581, %v2573
    %v3110 = vpack.c.b16 %v2582, %v2574
    %v3111 = vpack.c.b16 %v2583, %v2575
    %v3112 = vpack.c.b16 %v2592, %v2584
    %v3113 = vpack.c.b16 %v2593, %v2585
    %v3114 = vpack.c.b16 %v2594, %v2586
    %v3115 = vpack.c.b16 %v2595, %v2587
    %v3116 = vpack.c.b16 %v2596, %v2588
    %v3117 = vpack.c.b16 %v2597, %v2589
    %v3118 = vpack.c.b16 %v2598, %v2590
    %v3119 = vpack.c.b16 %v2599, %v2591
    %v3120 = vpack.c.b16 %v2608, %v2600
    %v3121 = vpack.c.b16 %v2609, %v2601
    %v3122 = vpack.c.b16 %v2610, %v2602
    %v3123 = vpack.c.b16 %v2611, %v2603
    %v3124 = vpack.c.b16 %v2612, %v2604
    %v3125 = vpack.c.b16 %v2613, %v2605
    %v3126 = vpack.c.b16 %v2614, %v2606
    %v3127 = vpack.c.b16 %v2615, %v2607
    %3640 = vmatpush.bf16.msra.mxu0 %v2672
    %3641 = vmatpush.bf16.msra.mxu0 %v2664
    %3642 = vmatpush.bf16.msra.mxu0 %v2656
    %3643 = vmatpush.bf16.msra.mxu0 %v2648
    %3644 = vmatpush.bf16.msra.mxu0 %v2640
    %3645 = vmatpush.bf16.msra.mxu0 %v2632
    %3646 = vmatpush.bf16.msra.mxu0 %v2624
    %3647 = vmatpush.bf16.msra.mxu0 %v2616
    %3648 = vmatmul.bf16.gmra.mxu0 %v542
    %v3649 = vpop.f32.mrf.mxu0
    %v3650 = vadd.f32 %v1064, %v3649
    %v3651 = vpop.f32.mrf.mxu0
    %3652 = vdwg.mxu0
    %3653 = vmatpush.bf16.msra.mxu0 %v2736
    %3654 = vmatpush.bf16.msra.mxu0 %v2728
    %3655 = vmatpush.bf16.msra.mxu0 %v2720
    %3656 = vmatpush.bf16.msra.mxu0 %v2712
    %3657 = vmatpush.bf16.msra.mxu0 %v2704
    %3658 = vmatpush.bf16.msra.mxu0 %v2696
    %3659 = vmatpush.bf16.msra.mxu0 %v2688
    %3660 = vmatpush.bf16.msra.mxu0 %v2680
    %3661 = vmatmul.bf16.gmra.mxu0 %v543
    %v3662 = vpop.f32.mrf.mxu0
    %v3663 = vadd.f32 %v3650, %v3662
    %v3664 = vpop.f32.mrf.mxu0
    %3665 = vdwg.mxu0
    %3666 = vmatpush.bf16.msra.mxu0 %v2800
    %3667 = vmatpush.bf16.msra.mxu0 %v2792
    %3668 = vmatpush.bf16.msra.mxu0 %v2784
    %3669 = vmatpush.bf16.msra.mxu0 %v2776
    %3670 = vmatpush.bf16.msra.mxu0 %v2768
    %3671 = vmatpush.bf16.msra.mxu0 %v2760
    %3672 = vmatpush.bf16.msra.mxu0 %v2752
    %3673 = vmatpush.bf16.msra.mxu0 %v2744
    %3674 = vmatmul.bf16.gmra.mxu0 %v544
    %v3675 = vpop.f32.mrf.mxu0
    %v3676 = vadd.f32 %v3663, %v3675
    %v3677 = vpop.f32.mrf.mxu0
    %3678 = vdwg.mxu0
    %3679 = vmatpush.bf16.msra.mxu0 %v2864
    %3680 = vmatpush.bf16.msra.mxu0 %v2856
    %3681 = vmatpush.bf16.msra.mxu0 %v2848
    %3682 = vmatpush.bf16.msra.mxu0 %v2840
    %3683 = vmatpush.bf16.msra.mxu0 %v2832
    %3684 = vmatpush.bf16.msra.mxu0 %v2824
    %3685 = vmatpush.bf16.msra.mxu0 %v2816
    %3686 = vmatpush.bf16.msra.mxu0 %v2808
    %3687 = vmatmul.bf16.gmra.mxu0 %v545
    %v3688 = vpop.f32.mrf.mxu0
    %v3689 = vadd.f32 %v3676, %v3688
    %v3690 = vpop.f32.mrf.mxu0
    %3691 = vdwg.mxu0
    %3692 = vmatpush.bf16.msra.mxu0 %v2928
    %3693 = vmatpush.bf16.msra.mxu0 %v2920
    %3694 = vmatpush.bf16.msra.mxu0 %v2912
    %3695 = vmatpush.bf16.msra.mxu0 %v2904
    %3696 = vmatpush.bf16.msra.mxu0 %v2896
    %3697 = vmatpush.bf16.msra.mxu0 %v2888
    %3698 = vmatpush.bf16.msra.mxu0 %v2880
    %3699 = vmatpush.bf16.msra.mxu0 %v2872
    %3700 = vmatmul.bf16.gmra.mxu0 %v546
    %v3701 = vpop.f32.mrf.mxu0
    %v3702 = vadd.f32 %v3689, %v3701
    %v3703 = vpop.f32.mrf.mxu0
    %3704 = vdwg.mxu0
    %3705 = vmatpush.bf16.msra.mxu0 %v2992
    %3706 = vmatpush.bf16.msra.mxu0 %v2984
    %3707 = vmatpush.bf16.msra.mxu0 %v2976
    %3708 = vmatpush.bf16.msra.mxu0 %v2968
    %3709 = vmatpush.bf16.msra.mxu0 %v2960
    %3710 = vmatpush.bf16.msra.mxu0 %v2952
    %3711 = vmatpush.bf16.msra.mxu0 %v2944
    %3712 = vmatpush.bf16.msra.mxu0 %v2936
    %3713 = vmatmul.bf16.gmra.mxu0 %v547
    %v3714 = vpop.f32.mrf.mxu0
    %v3715 = vadd.f32 %v3702, %v3714
    %v3716 = vpop.f32.mrf.mxu0
    %3717 = vdwg.mxu0
    %3718 = vmatpush.bf16.msra.mxu0 %v3056
    %3719 = vmatpush.bf16.msra.mxu0 %v3048
    %3720 = vmatpush.bf16.msra.mxu0 %v3040
    %3721 = vmatpush.bf16.msra.mxu0 %v3032
    %3722 = vmatpush.bf16.msra.mxu0 %v3024
    %3723 = vmatpush.bf16.msra.mxu0 %v3016
    %3724 = vmatpush.bf16.msra.mxu0 %v3008
    %3725 = vmatpush.bf16.msra.mxu0 %v3000
    %3726 = vmatmul.bf16.gmra.mxu0 %v548
    %v3727 = vpop.f32.mrf.mxu0
    %v3728 = vadd.f32 %v3715, %v3727
    %v3729 = vpop.f32.mrf.mxu0
    %3730 = vdwg.mxu0
    %3731 = vmatpush.bf16.msra.mxu0 %v3120
    %3732 = vmatpush.bf16.msra.mxu0 %v3112
    %3733 = vmatpush.bf16.msra.mxu0 %v3104
    %3734 = vmatpush.bf16.msra.mxu0 %v3096
    %3735 = vmatpush.bf16.msra.mxu0 %v3088
    %3736 = vmatpush.bf16.msra.mxu0 %v3080
    %3737 = vmatpush.bf16.msra.mxu0 %v3072
    %3738 = vmatpush.bf16.msra.mxu0 %v3064
    %3739 = vmatmul.bf16.gmra.mxu0 %v549
    %v3740 = vpop.f32.mrf.mxu0
    %v3741 = vadd.f32 %v3728, %v3740
    %v3742 = vpop.f32.mrf.mxu0
    %3743 = vdwg.mxu0
    %3744 = vmatpush.bf16.msra.mxu0 %v2673
    %3745 = vmatpush.bf16.msra.mxu0 %v2665
    %3746 = vmatpush.bf16.msra.mxu0 %v2657
    %3747 = vmatpush.bf16.msra.mxu0 %v2649
    %3748 = vmatpush.bf16.msra.mxu0 %v2641
    %3749 = vmatpush.bf16.msra.mxu0 %v2633
    %3750 = vmatpush.bf16.msra.mxu0 %v2625
    %3751 = vmatpush.bf16.msra.mxu0 %v2617
    %3752 = vmatmul.bf16.gmra.mxu0 %v542
    %v3753 = vpop.f32.mrf.mxu0
    %v3754 = vadd.f32 %v1065, %v3753
    %v3755 = vpop.f32.mrf.mxu0
    %3756 = vdwg.mxu0
    %3757 = vmatpush.bf16.msra.mxu0 %v2737
    %3758 = vmatpush.bf16.msra.mxu0 %v2729
    %3759 = vmatpush.bf16.msra.mxu0 %v2721
    %3760 = vmatpush.bf16.msra.mxu0 %v2713
    %3761 = vmatpush.bf16.msra.mxu0 %v2705
    %3762 = vmatpush.bf16.msra.mxu0 %v2697
    %3763 = vmatpush.bf16.msra.mxu0 %v2689
    %3764 = vmatpush.bf16.msra.mxu0 %v2681
    %3765 = vmatmul.bf16.gmra.mxu0 %v543
    %v3766 = vpop.f32.mrf.mxu0
    %v3767 = vadd.f32 %v3754, %v3766
    %v3768 = vpop.f32.mrf.mxu0
    %3769 = vdwg.mxu0
    %3770 = vmatpush.bf16.msra.mxu0 %v2801
    %3771 = vmatpush.bf16.msra.mxu0 %v2793
    %3772 = vmatpush.bf16.msra.mxu0 %v2785
    %3773 = vmatpush.bf16.msra.mxu0 %v2777
    %3774 = vmatpush.bf16.msra.mxu0 %v2769
    %3775 = vmatpush.bf16.msra.mxu0 %v2761
    %3776 = vmatpush.bf16.msra.mxu0 %v2753
    %3777 = vmatpush.bf16.msra.mxu0 %v2745
    %3778 = vmatmul.bf16.gmra.mxu0 %v544
    %v3779 = vpop.f32.mrf.mxu0
    %v3780 = vadd.f32 %v3767, %v3779
    %v3781 = vpop.f32.mrf.mxu0
    %3782 = vdwg.mxu0
    %3783 = vmatpush.bf16.msra.mxu0 %v2865
    %3784 = vmatpush.bf16.msra.mxu0 %v2857
    %3785 = vmatpush.bf16.msra.mxu0 %v2849
    %3786 = vmatpush.bf16.msra.mxu0 %v2841
    %3787 = vmatpush.bf16.msra.mxu0 %v2833
    %3788 = vmatpush.bf16.msra.mxu0 %v2825
    %3789 = vmatpush.bf16.msra.mxu0 %v2817
    %3790 = vmatpush.bf16.msra.mxu0 %v2809
    %3791 = vmatmul.bf16.gmra.mxu0 %v545
    %v3792 = vpop.f32.mrf.mxu0
    %v3793 = vadd.f32 %v3780, %v3792
    %v3794 = vpop.f32.mrf.mxu0
    %3795 = vdwg.mxu0
    %3796 = vmatpush.bf16.msra.mxu0 %v2929
    %3797 = vmatpush.bf16.msra.mxu0 %v2921
    %3798 = vmatpush.bf16.msra.mxu0 %v2913
    %3799 = vmatpush.bf16.msra.mxu0 %v2905
    %3800 = vmatpush.bf16.msra.mxu0 %v2897
    %3801 = vmatpush.bf16.msra.mxu0 %v2889
    %3802 = vmatpush.bf16.msra.mxu0 %v2881
    %3803 = vmatpush.bf16.msra.mxu0 %v2873
    %3804 = vmatmul.bf16.gmra.mxu0 %v546
    %v3805 = vpop.f32.mrf.mxu0
    %v3806 = vadd.f32 %v3793, %v3805
    %v3807 = vpop.f32.mrf.mxu0
    %3808 = vdwg.mxu0
    %3809 = vmatpush.bf16.msra.mxu0 %v2993
    %3810 = vmatpush.bf16.msra.mxu0 %v2985
    %3811 = vmatpush.bf16.msra.mxu0 %v2977
    %3812 = vmatpush.bf16.msra.mxu0 %v2969
    %3813 = vmatpush.bf16.msra.mxu0 %v2961
    %3814 = vmatpush.bf16.msra.mxu0 %v2953
    %3815 = vmatpush.bf16.msra.mxu0 %v2945
    %3816 = vmatpush.bf16.msra.mxu0 %v2937
    %3817 = vmatmul.bf16.gmra.mxu0 %v547
    %v3818 = vpop.f32.mrf.mxu0
    %v3819 = vadd.f32 %v3806, %v3818
    %v3820 = vpop.f32.mrf.mxu0
    %3821 = vdwg.mxu0
    %3822 = vmatpush.bf16.msra.mxu0 %v3057
    %3823 = vmatpush.bf16.msra.mxu0 %v3049
    %3824 = vmatpush.bf16.msra.mxu0 %v3041
    %3825 = vmatpush.bf16.msra.mxu0 %v3033
    %3826 = vmatpush.bf16.msra.mxu0 %v3025
    %3827 = vmatpush.bf16.msra.mxu0 %v3017
    %3828 = vmatpush.bf16.msra.mxu0 %v3009
    %3829 = vmatpush.bf16.msra.mxu0 %v3001
    %3830 = vmatmul.bf16.gmra.mxu0 %v548
    %v3831 = vpop.f32.mrf.mxu0
    %v3832 = vadd.f32 %v3819, %v3831
    %v3833 = vpop.f32.mrf.mxu0
    %3834 = vdwg.mxu0
    %3835 = vmatpush.bf16.msra.mxu0 %v3121
    %3836 = vmatpush.bf16.msra.mxu0 %v3113
    %3837 = vmatpush.bf16.msra.mxu0 %v3105
    %3838 = vmatpush.bf16.msra.mxu0 %v3097
    %3839 = vmatpush.bf16.msra.mxu0 %v3089
    %3840 = vmatpush.bf16.msra.mxu0 %v3081
    %3841 = vmatpush.bf16.msra.mxu0 %v3073
    %3842 = vmatpush.bf16.msra.mxu0 %v3065
    %3843 = vmatmul.bf16.gmra.mxu0 %v549
    %v3844 = vpop.f32.mrf.mxu0
    %v3845 = vadd.f32 %v3832, %v3844
    %v3846 = vpop.f32.mrf.mxu0
    %3847 = vdwg.mxu0
    %3848 = vmatpush.bf16.msra.mxu0 %v2674
    %3849 = vmatpush.bf16.msra.mxu0 %v2666
    %3850 = vmatpush.bf16.msra.mxu0 %v2658
    %3851 = vmatpush.bf16.msra.mxu0 %v2650
    %3852 = vmatpush.bf16.msra.mxu0 %v2642
    %3853 = vmatpush.bf16.msra.mxu0 %v2634
    %3854 = vmatpush.bf16.msra.mxu0 %v2626
    %3855 = vmatpush.bf16.msra.mxu0 %v2618
    %3856 = vmatmul.bf16.gmra.mxu0 %v542
    %v3857 = vpop.f32.mrf.mxu0
    %v3858 = vadd.f32 %v1066, %v3857
    %v3859 = vpop.f32.mrf.mxu0
    %3860 = vdwg.mxu0
    %3861 = vmatpush.bf16.msra.mxu0 %v2738
    %3862 = vmatpush.bf16.msra.mxu0 %v2730
    %3863 = vmatpush.bf16.msra.mxu0 %v2722
    %3864 = vmatpush.bf16.msra.mxu0 %v2714
    %3865 = vmatpush.bf16.msra.mxu0 %v2706
    %3866 = vmatpush.bf16.msra.mxu0 %v2698
    %3867 = vmatpush.bf16.msra.mxu0 %v2690
    %3868 = vmatpush.bf16.msra.mxu0 %v2682
    %3869 = vmatmul.bf16.gmra.mxu0 %v543
    %v3870 = vpop.f32.mrf.mxu0
    %v3871 = vadd.f32 %v3858, %v3870
    %v3872 = vpop.f32.mrf.mxu0
    %3873 = vdwg.mxu0
    %3874 = vmatpush.bf16.msra.mxu0 %v2802
    %3875 = vmatpush.bf16.msra.mxu0 %v2794
    %3876 = vmatpush.bf16.msra.mxu0 %v2786
    %3877 = vmatpush.bf16.msra.mxu0 %v2778
    %3878 = vmatpush.bf16.msra.mxu0 %v2770
    %3879 = vmatpush.bf16.msra.mxu0 %v2762
    %3880 = vmatpush.bf16.msra.mxu0 %v2754
    %3881 = vmatpush.bf16.msra.mxu0 %v2746
    %3882 = vmatmul.bf16.gmra.mxu0 %v544
    %v3883 = vpop.f32.mrf.mxu0
    %v3884 = vadd.f32 %v3871, %v3883
    %v3885 = vpop.f32.mrf.mxu0
    %3886 = vdwg.mxu0
    %3887 = vmatpush.bf16.msra.mxu0 %v2866
    %3888 = vmatpush.bf16.msra.mxu0 %v2858
    %3889 = vmatpush.bf16.msra.mxu0 %v2850
    %3890 = vmatpush.bf16.msra.mxu0 %v2842
    %3891 = vmatpush.bf16.msra.mxu0 %v2834
    %3892 = vmatpush.bf16.msra.mxu0 %v2826
    %3893 = vmatpush.bf16.msra.mxu0 %v2818
    %3894 = vmatpush.bf16.msra.mxu0 %v2810
    %3895 = vmatmul.bf16.gmra.mxu0 %v545
    %v3896 = vpop.f32.mrf.mxu0
    %v3897 = vadd.f32 %v3884, %v3896
    %v3898 = vpop.f32.mrf.mxu0
    %3899 = vdwg.mxu0
    %3900 = vmatpush.bf16.msra.mxu0 %v2930
    %3901 = vmatpush.bf16.msra.mxu0 %v2922
    %3902 = vmatpush.bf16.msra.mxu0 %v2914
    %3903 = vmatpush.bf16.msra.mxu0 %v2906
    %3904 = vmatpush.bf16.msra.mxu0 %v2898
    %3905 = vmatpush.bf16.msra.mxu0 %v2890
    %3906 = vmatpush.bf16.msra.mxu0 %v2882
    %3907 = vmatpush.bf16.msra.mxu0 %v2874
    %3908 = vmatmul.bf16.gmra.mxu0 %v546
    %v3909 = vpop.f32.mrf.mxu0
    %v3910 = vadd.f32 %v3897, %v3909
    %v3911 = vpop.f32.mrf.mxu0
    %3912 = vdwg.mxu0
    %3913 = vmatpush.bf16.msra.mxu0 %v2994
    %3914 = vmatpush.bf16.msra.mxu0 %v2986
    %3915 = vmatpush.bf16.msra.mxu0 %v2978
    %3916 = vmatpush.bf16.msra.mxu0 %v2970
    %3917 = vmatpush.bf16.msra.mxu0 %v2962
    %3918 = vmatpush.bf16.msra.mxu0 %v2954
    %3919 = vmatpush.bf16.msra.mxu0 %v2946
    %3920 = vmatpush.bf16.msra.mxu0 %v2938
    %3921 = vmatmul.bf16.gmra.mxu0 %v547
    %v3922 = vpop.f32.mrf.mxu0
    %v3923 = vadd.f32 %v3910, %v3922
    %v3924 = vpop.f32.mrf.mxu0
    %3925 = vdwg.mxu0
    %3926 = vmatpush.bf16.msra.mxu0 %v3058
    %3927 = vmatpush.bf16.msra.mxu0 %v3050
    %3928 = vmatpush.bf16.msra.mxu0 %v3042
    %3929 = vmatpush.bf16.msra.mxu0 %v3034
    %3930 = vmatpush.bf16.msra.mxu0 %v3026
    %3931 = vmatpush.bf16.msra.mxu0 %v3018
    %3932 = vmatpush.bf16.msra.mxu0 %v3010
    %3933 = vmatpush.bf16.msra.mxu0 %v3002
    %3934 = vmatmul.bf16.gmra.mxu0 %v548
    %v3935 = vpop.f32.mrf.mxu0
    %v3936 = vadd.f32 %v3923, %v3935
    %v3937 = vpop.f32.mrf.mxu0
    %3938 = vdwg.mxu0
    %3939 = vmatpush.bf16.msra.mxu0 %v3122
    %3940 = vmatpush.bf16.msra.mxu0 %v3114
    %3941 = vmatpush.bf16.msra.mxu0 %v3106
    %3942 = vmatpush.bf16.msra.mxu0 %v3098
    %3943 = vmatpush.bf16.msra.mxu0 %v3090
    %3944 = vmatpush.bf16.msra.mxu0 %v3082
    %3945 = vmatpush.bf16.msra.mxu0 %v3074
    %3946 = vmatpush.bf16.msra.mxu0 %v3066
    %3947 = vmatmul.bf16.gmra.mxu0 %v549
    %v3948 = vpop.f32.mrf.mxu0
    %v3949 = vadd.f32 %v3936, %v3948
    %v3950 = vpop.f32.mrf.mxu0
    %3951 = vdwg.mxu0
    %3952 = vmatpush.bf16.msra.mxu0 %v2675
    %3953 = vmatpush.bf16.msra.mxu0 %v2667
    %3954 = vmatpush.bf16.msra.mxu0 %v2659
    %3955 = vmatpush.bf16.msra.mxu0 %v2651
    %3956 = vmatpush.bf16.msra.mxu0 %v2643
    %3957 = vmatpush.bf16.msra.mxu0 %v2635
    %3958 = vmatpush.bf16.msra.mxu0 %v2627
    %3959 = vmatpush.bf16.msra.mxu0 %v2619
    %3960 = vmatmul.bf16.gmra.mxu0 %v542
    %v3961 = vpop.f32.mrf.mxu0
    %v3962 = vadd.f32 %v1067, %v3961
    %v3963 = vpop.f32.mrf.mxu0
    %3964 = vdwg.mxu0
    %3965 = vmatpush.bf16.msra.mxu0 %v2739
    %3966 = vmatpush.bf16.msra.mxu0 %v2731
    %3967 = vmatpush.bf16.msra.mxu0 %v2723
    %3968 = vmatpush.bf16.msra.mxu0 %v2715
    %3969 = vmatpush.bf16.msra.mxu0 %v2707
    %3970 = vmatpush.bf16.msra.mxu0 %v2699
    %3971 = vmatpush.bf16.msra.mxu0 %v2691
    %3972 = vmatpush.bf16.msra.mxu0 %v2683
    %3973 = vmatmul.bf16.gmra.mxu0 %v543
    %v3974 = vpop.f32.mrf.mxu0
    %v3975 = vadd.f32 %v3962, %v3974
    %v3976 = vpop.f32.mrf.mxu0
    %3977 = vdwg.mxu0
    %3978 = vmatpush.bf16.msra.mxu0 %v2803
    %3979 = vmatpush.bf16.msra.mxu0 %v2795
    %3980 = vmatpush.bf16.msra.mxu0 %v2787
    %3981 = vmatpush.bf16.msra.mxu0 %v2779
    %3982 = vmatpush.bf16.msra.mxu0 %v2771
    %3983 = vmatpush.bf16.msra.mxu0 %v2763
    %3984 = vmatpush.bf16.msra.mxu0 %v2755
    %3985 = vmatpush.bf16.msra.mxu0 %v2747
    %3986 = vmatmul.bf16.gmra.mxu0 %v544
    %v3987 = vpop.f32.mrf.mxu0
    %v3988 = vadd.f32 %v3975, %v3987
    %v3989 = vpop.f32.mrf.mxu0
    %3990 = vdwg.mxu0
    %3991 = vmatpush.bf16.msra.mxu0 %v2867
    %3992 = vmatpush.bf16.msra.mxu0 %v2859
    %3993 = vmatpush.bf16.msra.mxu0 %v2851
    %3994 = vmatpush.bf16.msra.mxu0 %v2843
    %3995 = vmatpush.bf16.msra.mxu0 %v2835
    %3996 = vmatpush.bf16.msra.mxu0 %v2827
    %3997 = vmatpush.bf16.msra.mxu0 %v2819
    %3998 = vmatpush.bf16.msra.mxu0 %v2811
    %3999 = vmatmul.bf16.gmra.mxu0 %v545
    %v4000 = vpop.f32.mrf.mxu0
    %v4001 = vadd.f32 %v3988, %v4000
    %v4002 = vpop.f32.mrf.mxu0
    %4003 = vdwg.mxu0
    %4004 = vmatpush.bf16.msra.mxu0 %v2931
    %4005 = vmatpush.bf16.msra.mxu0 %v2923
    %4006 = vmatpush.bf16.msra.mxu0 %v2915
    %4007 = vmatpush.bf16.msra.mxu0 %v2907
    %4008 = vmatpush.bf16.msra.mxu0 %v2899
    %4009 = vmatpush.bf16.msra.mxu0 %v2891
    %4010 = vmatpush.bf16.msra.mxu0 %v2883
    %4011 = vmatpush.bf16.msra.mxu0 %v2875
    %4012 = vmatmul.bf16.gmra.mxu0 %v546
    %v4013 = vpop.f32.mrf.mxu0
    %v4014 = vadd.f32 %v4001, %v4013
    %v4015 = vpop.f32.mrf.mxu0
    %4016 = vdwg.mxu0
    %4017 = vmatpush.bf16.msra.mxu0 %v2995
    %4018 = vmatpush.bf16.msra.mxu0 %v2987
    %4019 = vmatpush.bf16.msra.mxu0 %v2979
    %4020 = vmatpush.bf16.msra.mxu0 %v2971
    %4021 = vmatpush.bf16.msra.mxu0 %v2963
    %4022 = vmatpush.bf16.msra.mxu0 %v2955
    %4023 = vmatpush.bf16.msra.mxu0 %v2947
    %4024 = vmatpush.bf16.msra.mxu0 %v2939
    %4025 = vmatmul.bf16.gmra.mxu0 %v547
    %v4026 = vpop.f32.mrf.mxu0
    %v4027 = vadd.f32 %v4014, %v4026
    %v4028 = vpop.f32.mrf.mxu0
    %4029 = vdwg.mxu0
    %4030 = vmatpush.bf16.msra.mxu0 %v3059
    %4031 = vmatpush.bf16.msra.mxu0 %v3051
    %4032 = vmatpush.bf16.msra.mxu0 %v3043
    %4033 = vmatpush.bf16.msra.mxu0 %v3035
    %4034 = vmatpush.bf16.msra.mxu0 %v3027
    %4035 = vmatpush.bf16.msra.mxu0 %v3019
    %4036 = vmatpush.bf16.msra.mxu0 %v3011
    %4037 = vmatpush.bf16.msra.mxu0 %v3003
    %4038 = vmatmul.bf16.gmra.mxu0 %v548
    %v4039 = vpop.f32.mrf.mxu0
    %v4040 = vadd.f32 %v4027, %v4039
    %v4041 = vpop.f32.mrf.mxu0
    %4042 = vdwg.mxu0
    %4043 = vmatpush.bf16.msra.mxu0 %v3123
    %4044 = vmatpush.bf16.msra.mxu0 %v3115
    %4045 = vmatpush.bf16.msra.mxu0 %v3107
    %4046 = vmatpush.bf16.msra.mxu0 %v3099
    %4047 = vmatpush.bf16.msra.mxu0 %v3091
    %4048 = vmatpush.bf16.msra.mxu0 %v3083
    %4049 = vmatpush.bf16.msra.mxu0 %v3075
    %4050 = vmatpush.bf16.msra.mxu0 %v3067
    %4051 = vmatmul.bf16.gmra.mxu0 %v549
    %v4052 = vpop.f32.mrf.mxu0
    %v4053 = vadd.f32 %v4040, %v4052
    %v4054 = vpop.f32.mrf.mxu0
    %4055 = vdwg.mxu0
    %4056 = vmatpush.bf16.msra.mxu0 %v2676
    %4057 = vmatpush.bf16.msra.mxu0 %v2668
    %4058 = vmatpush.bf16.msra.mxu0 %v2660
    %4059 = vmatpush.bf16.msra.mxu0 %v2652
    %4060 = vmatpush.bf16.msra.mxu0 %v2644
    %4061 = vmatpush.bf16.msra.mxu0 %v2636
    %4062 = vmatpush.bf16.msra.mxu0 %v2628
    %4063 = vmatpush.bf16.msra.mxu0 %v2620
    %4064 = vmatmul.bf16.gmra.mxu0 %v542
    %v4065 = vpop.f32.mrf.mxu0
    %v4066 = vadd.f32 %v1068, %v4065
    %v4067 = vpop.f32.mrf.mxu0
    %4068 = vdwg.mxu0
    %4069 = vmatpush.bf16.msra.mxu0 %v2740
    %4070 = vmatpush.bf16.msra.mxu0 %v2732
    %4071 = vmatpush.bf16.msra.mxu0 %v2724
    %4072 = vmatpush.bf16.msra.mxu0 %v2716
    %4073 = vmatpush.bf16.msra.mxu0 %v2708
    %4074 = vmatpush.bf16.msra.mxu0 %v2700
    %4075 = vmatpush.bf16.msra.mxu0 %v2692
    %4076 = vmatpush.bf16.msra.mxu0 %v2684
    %4077 = vmatmul.bf16.gmra.mxu0 %v543
    %v4078 = vpop.f32.mrf.mxu0
    %v4079 = vadd.f32 %v4066, %v4078
    %v4080 = vpop.f32.mrf.mxu0
    %4081 = vdwg.mxu0
    %4082 = vmatpush.bf16.msra.mxu0 %v2804
    %4083 = vmatpush.bf16.msra.mxu0 %v2796
    %4084 = vmatpush.bf16.msra.mxu0 %v2788
    %4085 = vmatpush.bf16.msra.mxu0 %v2780
    %4086 = vmatpush.bf16.msra.mxu0 %v2772
    %4087 = vmatpush.bf16.msra.mxu0 %v2764
    %4088 = vmatpush.bf16.msra.mxu0 %v2756
    %4089 = vmatpush.bf16.msra.mxu0 %v2748
    %4090 = vmatmul.bf16.gmra.mxu0 %v544
    %v4091 = vpop.f32.mrf.mxu0
    %v4092 = vadd.f32 %v4079, %v4091
    %v4093 = vpop.f32.mrf.mxu0
    %4094 = vdwg.mxu0
    %4095 = vmatpush.bf16.msra.mxu0 %v2868
    %4096 = vmatpush.bf16.msra.mxu0 %v2860
    %4097 = vmatpush.bf16.msra.mxu0 %v2852
    %4098 = vmatpush.bf16.msra.mxu0 %v2844
    %4099 = vmatpush.bf16.msra.mxu0 %v2836
    %4100 = vmatpush.bf16.msra.mxu0 %v2828
    %4101 = vmatpush.bf16.msra.mxu0 %v2820
    %4102 = vmatpush.bf16.msra.mxu0 %v2812
    %4103 = vmatmul.bf16.gmra.mxu0 %v545
    %v4104 = vpop.f32.mrf.mxu0
    %v4105 = vadd.f32 %v4092, %v4104
    %v4106 = vpop.f32.mrf.mxu0
    %4107 = vdwg.mxu0
    %4108 = vmatpush.bf16.msra.mxu0 %v2932
    %4109 = vmatpush.bf16.msra.mxu0 %v2924
    %4110 = vmatpush.bf16.msra.mxu0 %v2916
    %4111 = vmatpush.bf16.msra.mxu0 %v2908
    %4112 = vmatpush.bf16.msra.mxu0 %v2900
    %4113 = vmatpush.bf16.msra.mxu0 %v2892
    %4114 = vmatpush.bf16.msra.mxu0 %v2884
    %4115 = vmatpush.bf16.msra.mxu0 %v2876
    %4116 = vmatmul.bf16.gmra.mxu0 %v546
    %v4117 = vpop.f32.mrf.mxu0
    %v4118 = vadd.f32 %v4105, %v4117
    %v4119 = vpop.f32.mrf.mxu0
    %4120 = vdwg.mxu0
    %4121 = vmatpush.bf16.msra.mxu0 %v2996
    %4122 = vmatpush.bf16.msra.mxu0 %v2988
    %4123 = vmatpush.bf16.msra.mxu0 %v2980
    %4124 = vmatpush.bf16.msra.mxu0 %v2972
    %4125 = vmatpush.bf16.msra.mxu0 %v2964
    %4126 = vmatpush.bf16.msra.mxu0 %v2956
    %4127 = vmatpush.bf16.msra.mxu0 %v2948
    %4128 = vmatpush.bf16.msra.mxu0 %v2940
    %4129 = vmatmul.bf16.gmra.mxu0 %v547
    %v4130 = vpop.f32.mrf.mxu0
    %v4131 = vadd.f32 %v4118, %v4130
    %v4132 = vpop.f32.mrf.mxu0
    %4133 = vdwg.mxu0
    %4134 = vmatpush.bf16.msra.mxu0 %v3060
    %4135 = vmatpush.bf16.msra.mxu0 %v3052
    %4136 = vmatpush.bf16.msra.mxu0 %v3044
    %4137 = vmatpush.bf16.msra.mxu0 %v3036
    %4138 = vmatpush.bf16.msra.mxu0 %v3028
    %4139 = vmatpush.bf16.msra.mxu0 %v3020
    %4140 = vmatpush.bf16.msra.mxu0 %v3012
    %4141 = vmatpush.bf16.msra.mxu0 %v3004
    %4142 = vmatmul.bf16.gmra.mxu0 %v548
    %v4143 = vpop.f32.mrf.mxu0
    %v4144 = vadd.f32 %v4131, %v4143
    %v4145 = vpop.f32.mrf.mxu0
    %4146 = vdwg.mxu0
    %4147 = vmatpush.bf16.msra.mxu0 %v3124
    %4148 = vmatpush.bf16.msra.mxu0 %v3116
    %4149 = vmatpush.bf16.msra.mxu0 %v3108
    %4150 = vmatpush.bf16.msra.mxu0 %v3100
    %4151 = vmatpush.bf16.msra.mxu0 %v3092
    %4152 = vmatpush.bf16.msra.mxu0 %v3084
    %4153 = vmatpush.bf16.msra.mxu0 %v3076
    %4154 = vmatpush.bf16.msra.mxu0 %v3068
    %4155 = vmatmul.bf16.gmra.mxu0 %v549
    %v4156 = vpop.f32.mrf.mxu0
    %v4157 = vadd.f32 %v4144, %v4156
    %v4158 = vpop.f32.mrf.mxu0
    %4159 = vdwg.mxu0
    %4160 = vmatpush.bf16.msra.mxu0 %v2677
    %4161 = vmatpush.bf16.msra.mxu0 %v2669
    %4162 = vmatpush.bf16.msra.mxu0 %v2661
    %4163 = vmatpush.bf16.msra.mxu0 %v2653
    %4164 = vmatpush.bf16.msra.mxu0 %v2645
    %4165 = vmatpush.bf16.msra.mxu0 %v2637
    %4166 = vmatpush.bf16.msra.mxu0 %v2629
    %4167 = vmatpush.bf16.msra.mxu0 %v2621
    %4168 = vmatmul.bf16.gmra.mxu0 %v542
    %v4169 = vpop.f32.mrf.mxu0
    %v4170 = vadd.f32 %v1069, %v4169
    %v4171 = vpop.f32.mrf.mxu0
    %4172 = vdwg.mxu0
    %4173 = vmatpush.bf16.msra.mxu0 %v2741
    %4174 = vmatpush.bf16.msra.mxu0 %v2733
    %4175 = vmatpush.bf16.msra.mxu0 %v2725
    %4176 = vmatpush.bf16.msra.mxu0 %v2717
    %4177 = vmatpush.bf16.msra.mxu0 %v2709
    %4178 = vmatpush.bf16.msra.mxu0 %v2701
    %4179 = vmatpush.bf16.msra.mxu0 %v2693
    %4180 = vmatpush.bf16.msra.mxu0 %v2685
    %4181 = vmatmul.bf16.gmra.mxu0 %v543
    %v4182 = vpop.f32.mrf.mxu0
    %v4183 = vadd.f32 %v4170, %v4182
    %v4184 = vpop.f32.mrf.mxu0
    %4185 = vdwg.mxu0
    %4186 = vmatpush.bf16.msra.mxu0 %v2805
    %4187 = vmatpush.bf16.msra.mxu0 %v2797
    %4188 = vmatpush.bf16.msra.mxu0 %v2789
    %4189 = vmatpush.bf16.msra.mxu0 %v2781
    %4190 = vmatpush.bf16.msra.mxu0 %v2773
    %4191 = vmatpush.bf16.msra.mxu0 %v2765
    %4192 = vmatpush.bf16.msra.mxu0 %v2757
    %4193 = vmatpush.bf16.msra.mxu0 %v2749
    %4194 = vmatmul.bf16.gmra.mxu0 %v544
    %v4195 = vpop.f32.mrf.mxu0
    %v4196 = vadd.f32 %v4183, %v4195
    %v4197 = vpop.f32.mrf.mxu0
    %4198 = vdwg.mxu0
    %4199 = vmatpush.bf16.msra.mxu0 %v2869
    %4200 = vmatpush.bf16.msra.mxu0 %v2861
    %4201 = vmatpush.bf16.msra.mxu0 %v2853
    %4202 = vmatpush.bf16.msra.mxu0 %v2845
    %4203 = vmatpush.bf16.msra.mxu0 %v2837
    %4204 = vmatpush.bf16.msra.mxu0 %v2829
    %4205 = vmatpush.bf16.msra.mxu0 %v2821
    %4206 = vmatpush.bf16.msra.mxu0 %v2813
    %4207 = vmatmul.bf16.gmra.mxu0 %v545
    %v4208 = vpop.f32.mrf.mxu0
    %v4209 = vadd.f32 %v4196, %v4208
    %v4210 = vpop.f32.mrf.mxu0
    %4211 = vdwg.mxu0
    %4212 = vmatpush.bf16.msra.mxu0 %v2933
    %4213 = vmatpush.bf16.msra.mxu0 %v2925
    %4214 = vmatpush.bf16.msra.mxu0 %v2917
    %4215 = vmatpush.bf16.msra.mxu0 %v2909
    %4216 = vmatpush.bf16.msra.mxu0 %v2901
    %4217 = vmatpush.bf16.msra.mxu0 %v2893
    %4218 = vmatpush.bf16.msra.mxu0 %v2885
    %4219 = vmatpush.bf16.msra.mxu0 %v2877
    %4220 = vmatmul.bf16.gmra.mxu0 %v546
    %v4221 = vpop.f32.mrf.mxu0
    %v4222 = vadd.f32 %v4209, %v4221
    %v4223 = vpop.f32.mrf.mxu0
    %4224 = vdwg.mxu0
    %4225 = vmatpush.bf16.msra.mxu0 %v2997
    %4226 = vmatpush.bf16.msra.mxu0 %v2989
    %4227 = vmatpush.bf16.msra.mxu0 %v2981
    %4228 = vmatpush.bf16.msra.mxu0 %v2973
    %4229 = vmatpush.bf16.msra.mxu0 %v2965
    %4230 = vmatpush.bf16.msra.mxu0 %v2957
    %4231 = vmatpush.bf16.msra.mxu0 %v2949
    %4232 = vmatpush.bf16.msra.mxu0 %v2941
    %4233 = vmatmul.bf16.gmra.mxu0 %v547
    %v4234 = vpop.f32.mrf.mxu0
    %v4235 = vadd.f32 %v4222, %v4234
    %v4236 = vpop.f32.mrf.mxu0
    %4237 = vdwg.mxu0
    %4238 = vmatpush.bf16.msra.mxu0 %v3061
    %4239 = vmatpush.bf16.msra.mxu0 %v3053
    %4240 = vmatpush.bf16.msra.mxu0 %v3045
    %4241 = vmatpush.bf16.msra.mxu0 %v3037
    %4242 = vmatpush.bf16.msra.mxu0 %v3029
    %4243 = vmatpush.bf16.msra.mxu0 %v3021
    %4244 = vmatpush.bf16.msra.mxu0 %v3013
    %4245 = vmatpush.bf16.msra.mxu0 %v3005
    %4246 = vmatmul.bf16.gmra.mxu0 %v548
    %v4247 = vpop.f32.mrf.mxu0
    %v4248 = vadd.f32 %v4235, %v4247
    %v4249 = vpop.f32.mrf.mxu0
    %4250 = vdwg.mxu0
    %4251 = vmatpush.bf16.msra.mxu0 %v3125
    %4252 = vmatpush.bf16.msra.mxu0 %v3117
    %4253 = vmatpush.bf16.msra.mxu0 %v3109
    %4254 = vmatpush.bf16.msra.mxu0 %v3101
    %4255 = vmatpush.bf16.msra.mxu0 %v3093
    %4256 = vmatpush.bf16.msra.mxu0 %v3085
    %4257 = vmatpush.bf16.msra.mxu0 %v3077
    %4258 = vmatpush.bf16.msra.mxu0 %v3069
    %4259 = vmatmul.bf16.gmra.mxu0 %v549
    %v4260 = vpop.f32.mrf.mxu0
    %v4261 = vadd.f32 %v4248, %v4260
    %v4262 = vpop.f32.mrf.mxu0
    %4263 = vdwg.mxu0
    %4264 = vmatpush.bf16.msra.mxu0 %v2678
    %4265 = vmatpush.bf16.msra.mxu0 %v2670
    %4266 = vmatpush.bf16.msra.mxu0 %v2662
    %4267 = vmatpush.bf16.msra.mxu0 %v2654
    %4268 = vmatpush.bf16.msra.mxu0 %v2646
    %4269 = vmatpush.bf16.msra.mxu0 %v2638
    %4270 = vmatpush.bf16.msra.mxu0 %v2630
    %4271 = vmatpush.bf16.msra.mxu0 %v2622
    %4272 = vmatmul.bf16.gmra.mxu0 %v542
    %v4273 = vpop.f32.mrf.mxu0
    %v4274 = vadd.f32 %v1070, %v4273
    %v4275 = vpop.f32.mrf.mxu0
    %4276 = vdwg.mxu0
    %4277 = vmatpush.bf16.msra.mxu0 %v2742
    %4278 = vmatpush.bf16.msra.mxu0 %v2734
    %4279 = vmatpush.bf16.msra.mxu0 %v2726
    %4280 = vmatpush.bf16.msra.mxu0 %v2718
    %4281 = vmatpush.bf16.msra.mxu0 %v2710
    %4282 = vmatpush.bf16.msra.mxu0 %v2702
    %4283 = vmatpush.bf16.msra.mxu0 %v2694
    %4284 = vmatpush.bf16.msra.mxu0 %v2686
    %4285 = vmatmul.bf16.gmra.mxu0 %v543
    %v4286 = vpop.f32.mrf.mxu0
    %v4287 = vadd.f32 %v4274, %v4286
    %v4288 = vpop.f32.mrf.mxu0
    %4289 = vdwg.mxu0
    %4290 = vmatpush.bf16.msra.mxu0 %v2806
    %4291 = vmatpush.bf16.msra.mxu0 %v2798
    %4292 = vmatpush.bf16.msra.mxu0 %v2790
    %4293 = vmatpush.bf16.msra.mxu0 %v2782
    %4294 = vmatpush.bf16.msra.mxu0 %v2774
    %4295 = vmatpush.bf16.msra.mxu0 %v2766
    %4296 = vmatpush.bf16.msra.mxu0 %v2758
    %4297 = vmatpush.bf16.msra.mxu0 %v2750
    %4298 = vmatmul.bf16.gmra.mxu0 %v544
    %v4299 = vpop.f32.mrf.mxu0
    %v4300 = vadd.f32 %v4287, %v4299
    %v4301 = vpop.f32.mrf.mxu0
    %4302 = vdwg.mxu0
    %4303 = vmatpush.bf16.msra.mxu0 %v2870
    %4304 = vmatpush.bf16.msra.mxu0 %v2862
    %4305 = vmatpush.bf16.msra.mxu0 %v2854
    %4306 = vmatpush.bf16.msra.mxu0 %v2846
    %4307 = vmatpush.bf16.msra.mxu0 %v2838
    %4308 = vmatpush.bf16.msra.mxu0 %v2830
    %4309 = vmatpush.bf16.msra.mxu0 %v2822
    %4310 = vmatpush.bf16.msra.mxu0 %v2814
    %4311 = vmatmul.bf16.gmra.mxu0 %v545
    %v4312 = vpop.f32.mrf.mxu0
    %v4313 = vadd.f32 %v4300, %v4312
    %v4314 = vpop.f32.mrf.mxu0
    %4315 = vdwg.mxu0
    %4316 = vmatpush.bf16.msra.mxu0 %v2934
    %4317 = vmatpush.bf16.msra.mxu0 %v2926
    %4318 = vmatpush.bf16.msra.mxu0 %v2918
    %4319 = vmatpush.bf16.msra.mxu0 %v2910
    %4320 = vmatpush.bf16.msra.mxu0 %v2902
    %4321 = vmatpush.bf16.msra.mxu0 %v2894
    %4322 = vmatpush.bf16.msra.mxu0 %v2886
    %4323 = vmatpush.bf16.msra.mxu0 %v2878
    %4324 = vmatmul.bf16.gmra.mxu0 %v546
    %v4325 = vpop.f32.mrf.mxu0
    %v4326 = vadd.f32 %v4313, %v4325
    %v4327 = vpop.f32.mrf.mxu0
    %4328 = vdwg.mxu0
    %4329 = vmatpush.bf16.msra.mxu0 %v2998
    %4330 = vmatpush.bf16.msra.mxu0 %v2990
    %4331 = vmatpush.bf16.msra.mxu0 %v2982
    %4332 = vmatpush.bf16.msra.mxu0 %v2974
    %4333 = vmatpush.bf16.msra.mxu0 %v2966
    %4334 = vmatpush.bf16.msra.mxu0 %v2958
    %4335 = vmatpush.bf16.msra.mxu0 %v2950
    %4336 = vmatpush.bf16.msra.mxu0 %v2942
    %4337 = vmatmul.bf16.gmra.mxu0 %v547
    %v4338 = vpop.f32.mrf.mxu0
    %v4339 = vadd.f32 %v4326, %v4338
    %v4340 = vpop.f32.mrf.mxu0
    %4341 = vdwg.mxu0
    %4342 = vmatpush.bf16.msra.mxu0 %v3062
    %4343 = vmatpush.bf16.msra.mxu0 %v3054
    %4344 = vmatpush.bf16.msra.mxu0 %v3046
    %4345 = vmatpush.bf16.msra.mxu0 %v3038
    %4346 = vmatpush.bf16.msra.mxu0 %v3030
    %4347 = vmatpush.bf16.msra.mxu0 %v3022
    %4348 = vmatpush.bf16.msra.mxu0 %v3014
    %4349 = vmatpush.bf16.msra.mxu0 %v3006
    %4350 = vmatmul.bf16.gmra.mxu0 %v548
    %v4351 = vpop.f32.mrf.mxu0
    %v4352 = vadd.f32 %v4339, %v4351
    %v4353 = vpop.f32.mrf.mxu0
    %4354 = vdwg.mxu0
    %4355 = vmatpush.bf16.msra.mxu0 %v3126
    %4356 = vmatpush.bf16.msra.mxu0 %v3118
    %4357 = vmatpush.bf16.msra.mxu0 %v3110
    %4358 = vmatpush.bf16.msra.mxu0 %v3102
    %4359 = vmatpush.bf16.msra.mxu0 %v3094
    %4360 = vmatpush.bf16.msra.mxu0 %v3086
    %4361 = vmatpush.bf16.msra.mxu0 %v3078
    %4362 = vmatpush.bf16.msra.mxu0 %v3070
    %4363 = vmatmul.bf16.gmra.mxu0 %v549
    %v4364 = vpop.f32.mrf.mxu0
    %v4365 = vadd.f32 %v4352, %v4364
    %v4366 = vpop.f32.mrf.mxu0
    %4367 = vdwg.mxu0
    %4368 = vmatpush.bf16.msra.mxu0 %v2679
    %4369 = vmatpush.bf16.msra.mxu0 %v2671
    %4370 = vmatpush.bf16.msra.mxu0 %v2663
    %4371 = vmatpush.bf16.msra.mxu0 %v2655
    %4372 = vmatpush.bf16.msra.mxu0 %v2647
    %4373 = vmatpush.bf16.msra.mxu0 %v2639
    %4374 = vmatpush.bf16.msra.mxu0 %v2631
    %4375 = vmatpush.bf16.msra.mxu0 %v2623
    %4376 = vmatmul.bf16.gmra.mxu0 %v542
    %v4377 = vpop.f32.mrf.mxu0
    %v4378 = vadd.f32 %v1071, %v4377
    %v4379 = vpop.f32.mrf.mxu0
    %4380 = vdwg.mxu0
    %4381 = vmatpush.bf16.msra.mxu0 %v2743
    %4382 = vmatpush.bf16.msra.mxu0 %v2735
    %4383 = vmatpush.bf16.msra.mxu0 %v2727
    %4384 = vmatpush.bf16.msra.mxu0 %v2719
    %4385 = vmatpush.bf16.msra.mxu0 %v2711
    %4386 = vmatpush.bf16.msra.mxu0 %v2703
    %4387 = vmatpush.bf16.msra.mxu0 %v2695
    %4388 = vmatpush.bf16.msra.mxu0 %v2687
    %4389 = vmatmul.bf16.gmra.mxu0 %v543
    %v4390 = vpop.f32.mrf.mxu0
    %v4391 = vadd.f32 %v4378, %v4390
    %v4392 = vpop.f32.mrf.mxu0
    %4393 = vdwg.mxu0
    %4394 = vmatpush.bf16.msra.mxu0 %v2807
    %4395 = vmatpush.bf16.msra.mxu0 %v2799
    %4396 = vmatpush.bf16.msra.mxu0 %v2791
    %4397 = vmatpush.bf16.msra.mxu0 %v2783
    %4398 = vmatpush.bf16.msra.mxu0 %v2775
    %4399 = vmatpush.bf16.msra.mxu0 %v2767
    %4400 = vmatpush.bf16.msra.mxu0 %v2759
    %4401 = vmatpush.bf16.msra.mxu0 %v2751
    %4402 = vmatmul.bf16.gmra.mxu0 %v544
    %v4403 = vpop.f32.mrf.mxu0
    %v4404 = vadd.f32 %v4391, %v4403
    %v4405 = vpop.f32.mrf.mxu0
    %4406 = vdwg.mxu0
    %4407 = vmatpush.bf16.msra.mxu0 %v2871
    %4408 = vmatpush.bf16.msra.mxu0 %v2863
    %4409 = vmatpush.bf16.msra.mxu0 %v2855
    %4410 = vmatpush.bf16.msra.mxu0 %v2847
    %4411 = vmatpush.bf16.msra.mxu0 %v2839
    %4412 = vmatpush.bf16.msra.mxu0 %v2831
    %4413 = vmatpush.bf16.msra.mxu0 %v2823
    %4414 = vmatpush.bf16.msra.mxu0 %v2815
    %4415 = vmatmul.bf16.gmra.mxu0 %v545
    %v4416 = vpop.f32.mrf.mxu0
    %v4417 = vadd.f32 %v4404, %v4416
    %v4418 = vpop.f32.mrf.mxu0
    %4419 = vdwg.mxu0
    %4420 = vmatpush.bf16.msra.mxu0 %v2935
    %4421 = vmatpush.bf16.msra.mxu0 %v2927
    %4422 = vmatpush.bf16.msra.mxu0 %v2919
    %4423 = vmatpush.bf16.msra.mxu0 %v2911
    %4424 = vmatpush.bf16.msra.mxu0 %v2903
    %4425 = vmatpush.bf16.msra.mxu0 %v2895
    %4426 = vmatpush.bf16.msra.mxu0 %v2887
    %4427 = vmatpush.bf16.msra.mxu0 %v2879
    %4428 = vmatmul.bf16.gmra.mxu0 %v546
    %v4429 = vpop.f32.mrf.mxu0
    %v4430 = vadd.f32 %v4417, %v4429
    %v4431 = vpop.f32.mrf.mxu0
    %4432 = vdwg.mxu0
    %4433 = vmatpush.bf16.msra.mxu0 %v2999
    %4434 = vmatpush.bf16.msra.mxu0 %v2991
    %4435 = vmatpush.bf16.msra.mxu0 %v2983
    %4436 = vmatpush.bf16.msra.mxu0 %v2975
    %4437 = vmatpush.bf16.msra.mxu0 %v2967
    %4438 = vmatpush.bf16.msra.mxu0 %v2959
    %4439 = vmatpush.bf16.msra.mxu0 %v2951
    %4440 = vmatpush.bf16.msra.mxu0 %v2943
    %4441 = vmatmul.bf16.gmra.mxu0 %v547
    %v4442 = vpop.f32.mrf.mxu0
    %v4443 = vadd.f32 %v4430, %v4442
    %v4444 = vpop.f32.mrf.mxu0
    %4445 = vdwg.mxu0
    %4446 = vmatpush.bf16.msra.mxu0 %v3063
    %4447 = vmatpush.bf16.msra.mxu0 %v3055
    %4448 = vmatpush.bf16.msra.mxu0 %v3047
    %4449 = vmatpush.bf16.msra.mxu0 %v3039
    %4450 = vmatpush.bf16.msra.mxu0 %v3031
    %4451 = vmatpush.bf16.msra.mxu0 %v3023
    %4452 = vmatpush.bf16.msra.mxu0 %v3015
    %4453 = vmatpush.bf16.msra.mxu0 %v3007
    %4454 = vmatmul.bf16.gmra.mxu0 %v548
    %v4455 = vpop.f32.mrf.mxu0
    %v4456 = vadd.f32 %v4443, %v4455
    %v4457 = vpop.f32.mrf.mxu0
    %4458 = vdwg.mxu0
    %4459 = vmatpush.bf16.msra.mxu0 %v3127
    %4460 = vmatpush.bf16.msra.mxu0 %v3119
    %4461 = vmatpush.bf16.msra.mxu0 %v3111
    %4462 = vmatpush.bf16.msra.mxu0 %v3103
    %4463 = vmatpush.bf16.msra.mxu0 %v3095
    %4464 = vmatpush.bf16.msra.mxu0 %v3087
    %4465 = vmatpush.bf16.msra.mxu0 %v3079
    %4466 = vmatpush.bf16.msra.mxu0 %v3071
    %4467 = vmatmul.bf16.gmra.mxu0 %v549
    %v4468 = vpop.f32.mrf.mxu0
    %v4469 = vadd.f32 %v4456, %v4468
    %v4470 = vpop.f32.mrf.mxu0
    %4471 = vdwg.mxu0
    %v4472 = vmax.f32 %v3741, 0.0
    %v4473 = vmax.f32 %v3845, 0.0
    %v4474 = vmax.f32 %v3949, 0.0
    %v4475 = vmax.f32 %v4053, 0.0
    %v4476 = vmax.f32 %v4157, 0.0
    %v4477 = vmax.f32 %v4261, 0.0
    %v4478 = vmax.f32 %v4365, 0.0
    %v4479 = vmax.f32 %v4469, 0.0
    %v4480 = vpack.c.bf16 %v4472, %v4472
    %v4481 = vpack.c.bf16 %v4473, %v4473
    %v4482 = vpack.c.bf16 %v4474, %v4474
    %v4483 = vpack.c.bf16 %v4475, %v4475
    %v4484 = vpack.c.bf16 %v4476, %v4476
    %v4485 = vpack.c.bf16 %v4477, %v4477
    %v4486 = vpack.c.bf16 %v4478, %v4478
    %v4487 = vpack.c.bf16 %v4479, %v4479
    %v4488 = vld [vmem:[%s5] sm:$0xff]
    %v4489 = vld [vmem:[%s5 + $0x8] sm:$0xff]
    %v4490 = vld [vmem:[%s5 + $0x10] sm:$0xff]
    %v4491 = vld [vmem:[%s5 + $0x18] sm:$0xf]
    %v4492 = vld [vmem:[%s5 + $0x1c] sm:$0xff]
    %v4493 = vld [vmem:[%s5 + $0x24] sm:$0xff]
    %v4494 = vld [vmem:[%s5 + $0x2c] sm:$0xff]
    %v4495 = vld [vmem:[%s5 + $0x34] sm:$0xf]
    %v4496 = vld [vmem:[%s5 + $0x38] sm:$0xff]
    %v4497 = vld [vmem:[%s5 + $0x40] sm:$0xff]
    %v4498 = vld [vmem:[%s5 + $0x48] sm:$0xff]
    %v4499 = vld [vmem:[%s5 + $0x50] sm:$0xf]
    %v4500 = vld [vmem:[%s5 + $0x54] sm:$0xff]
    %v4501 = vld [vmem:[%s5 + $0x5c] sm:$0xff]
    %v4502 = vld [vmem:[%s5 + $0x64] sm:$0xff]
    %v4503 = vld [vmem:[%s5 + $0x6c] sm:$0xf]
    %v4504 = vld [vmem:[%s5 + $0x70] sm:$0xff]
    %v4505 = vld [vmem:[%s5 + $0x78] sm:$0xff]
    %v4506 = vld [vmem:[%s5 + $0x80] sm:$0xff]
    %v4507 = vld [vmem:[%s5 + $0x88] sm:$0xf]
    %v4508 = vld [vmem:[%s5 + $0x8c] sm:$0xff]
    %v4509 = vld [vmem:[%s5 + $0x94] sm:$0xff]
    %v4510 = vld [vmem:[%s5 + $0x9c] sm:$0xff]
    %v4511 = vld [vmem:[%s5 + $0xa4] sm:$0xf]
    %v4512 = vld [vmem:[%s5 + $0xa8] sm:$0xff]
    %v4513 = vld [vmem:[%s5 + $0xb0] sm:$0xff]
    %v4514 = vld [vmem:[%s5 + $0xb8] sm:$0xff]
    %v4515 = vld [vmem:[%s5 + $0xc0] sm:$0xf]
    %v4516 = vld [vmem:[%s5 + $0xc4] sm:$0xff]
    %v4517 = vld [vmem:[%s5 + $0xcc] sm:$0xff]
    %v4518 = vld [vmem:[%s5 + $0xd4] sm:$0xff]
    %v4519 = vld [vmem:[%s5 + $0xdc] sm:$0xf]
    %v4520 = vld [vmem:[%s5 + $0xe0] sm:$0xff]
    %v4521 = vld [vmem:[%s5 + $0xe8] sm:$0xff]
    %v4522 = vld [vmem:[%s5 + $0xf0] sm:$0xff]
    %v4523 = vld [vmem:[%s5 + $0xf8] sm:$0xf]
    %v4524 = vld [vmem:[%s5 + $0xfc] sm:$0xff]
    %v4525 = vld [vmem:[%s5 + $0x104] sm:$0xff]
    %v4526 = vld [vmem:[%s5 + $0x10c] sm:$0xff]
    %v4527 = vld [vmem:[%s5 + $0x114] sm:$0xf]
    %v4528 = vld [vmem:[%s5 + $0x118] sm:$0xff]
    %v4529 = vld [vmem:[%s5 + $0x120] sm:$0xff]
    %v4530 = vld [vmem:[%s5 + $0x128] sm:$0xff]
    %v4531 = vld [vmem:[%s5 + $0x130] sm:$0xf]
    %v4532 = vld [vmem:[%s5 + $0x134] sm:$0xff]
    %v4533 = vld [vmem:[%s5 + $0x13c] sm:$0xff]
    %v4534 = vld [vmem:[%s5 + $0x144] sm:$0xff]
    %v4535 = vld [vmem:[%s5 + $0x14c] sm:$0xf]
    %v4536 = vld [vmem:[%s5 + $0x150] sm:$0xff]
    %v4537 = vld [vmem:[%s5 + $0x158] sm:$0xff]
    %v4538 = vld [vmem:[%s5 + $0x160] sm:$0xff]
    %v4539 = vld [vmem:[%s5 + $0x168] sm:$0xf]
    %v4540 = vld [vmem:[%s5 + $0x16c] sm:$0xff]
    %v4541 = vld [vmem:[%s5 + $0x174] sm:$0xff]
    %v4542 = vld [vmem:[%s5 + $0x17c] sm:$0xff]
    %v4543 = vld [vmem:[%s5 + $0x184] sm:$0xf]
    %v4544 = vld [vmem:[%s5 + $0x188] sm:$0xff]
    %v4545 = vld [vmem:[%s5 + $0x190] sm:$0xff]
    %v4546 = vld [vmem:[%s5 + $0x198] sm:$0xff]
    %v4547 = vld [vmem:[%s5 + $0x1a0] sm:$0xf]
    %v4548 = vld [vmem:[%s5 + $0x1a4] sm:$0xff]
    %v4549 = vld [vmem:[%s5 + $0x1ac] sm:$0xff]
    %v4550 = vld [vmem:[%s5 + $0x1b4] sm:$0xff]
    %v4551 = vld [vmem:[%s5 + $0x1bc] sm:$0xf]
    %v4552 = vld [vmem:[%s5 + $0x1c0] sm:$0xff]
    %v4553 = vld [vmem:[%s5 + $0x1c8] sm:$0xff]
    %v4554 = vld [vmem:[%s5 + $0x1d0] sm:$0xff]
    %v4555 = vld [vmem:[%s5 + $0x1d8] sm:$0xf]
    %v4556 = vld [vmem:[%s5 + $0x1dc] sm:$0xff]
    %v4557 = vld [vmem:[%s5 + $0x1e4] sm:$0xff]
    %v4558 = vld [vmem:[%s5 + $0x1ec] sm:$0xff]
    %v4559 = vld [vmem:[%s5 + $0x1f4] sm:$0xf]
    %v4560 = vld [vmem:[%s5 + $0x1f8] sm:$0xff]
    %v4561 = vld [vmem:[%s5 + $0x200] sm:$0xff]
    %v4562 = vld [vmem:[%s5 + $0x208] sm:$0xff]
    %v4563 = vld [vmem:[%s5 + $0x210] sm:$0xf]
    %v4564 = vld [vmem:[%s5 + $0x214] sm:$0xff]
    %v4565 = vld [vmem:[%s5 + $0x21c] sm:$0xff]
    %v4566 = vld [vmem:[%s5 + $0x224] sm:$0xff]
    %v4567 = vld [vmem:[%s5 + $0x22c] sm:$0xf]
    %v4568 = vld [vmem:[%s5 + $0x230] sm:$0xff]
    %v4569 = vld [vmem:[%s5 + $0x238] sm:$0xff]
    %v4570 = vld [vmem:[%s5 + $0x240] sm:$0xff]
    %v4571 = vld [vmem:[%s5 + $0x248] sm:$0xf]
    %v4572 = vld [vmem:[%s5 + $0x24c] sm:$0xff]
    %v4573 = vld [vmem:[%s5 + $0x254] sm:$0xff]
    %v4574 = vld [vmem:[%s5 + $0x25c] sm:$0xff]
    %v4575 = vld [vmem:[%s5 + $0x264] sm:$0xf]
    %v4576 = vld [vmem:[%s5 + $0x268] sm:$0xff]
    %v4577 = vld [vmem:[%s5 + $0x270] sm:$0xff]
    %v4578 = vld [vmem:[%s5 + $0x278] sm:$0xff]
    %v4579 = vld [vmem:[%s5 + $0x280] sm:$0xf]
    %v4580 = vld [vmem:[%s5 + $0x284] sm:$0xff]
    %v4581 = vld [vmem:[%s5 + $0x28c] sm:$0xff]
    %v4582 = vld [vmem:[%s5 + $0x294] sm:$0xff]
    %v4583 = vld [vmem:[%s5 + $0x29c] sm:$0xf]
    %v4584 = vld [vmem:[%s5 + $0x2a0] sm:$0xff]
    %v4585 = vld [vmem:[%s5 + $0x2a8] sm:$0xff]
    %v4586 = vld [vmem:[%s5 + $0x2b0] sm:$0xff]
    %v4587 = vld [vmem:[%s5 + $0x2b8] sm:$0xf]
    %v4588 = vld [vmem:[%s5 + $0x2bc] sm:$0xff]
    %v4589 = vld [vmem:[%s5 + $0x2c4] sm:$0xff]
    %v4590 = vld [vmem:[%s5 + $0x2cc] sm:$0xff]
    %v4591 = vld [vmem:[%s5 + $0x2d4] sm:$0xf]
    %v4592 = vld [vmem:[%s5 + $0x2d8] sm:$0xff]
    %v4593 = vld [vmem:[%s5 + $0x2e0] sm:$0xff]
    %v4594 = vld [vmem:[%s5 + $0x2e8] sm:$0xff]
    %v4595 = vld [vmem:[%s5 + $0x2f0] sm:$0xf]
    %v4596 = vld [vmem:[%s5 + $0x2f4] sm:$0xff]
    %v4597 = vld [vmem:[%s5 + $0x2fc] sm:$0xff]
    %v4598 = vld [vmem:[%s5 + $0x304] sm:$0xff]
    %v4599 = vld [vmem:[%s5 + $0x30c] sm:$0xf]
    %v4600 = vld [vmem:[%s5 + $0x310] sm:$0xff]
    %v4601 = vld [vmem:[%s5 + $0x318] sm:$0xff]
    %v4602 = vld [vmem:[%s5 + $0x320] sm:$0xff]
    %v4603 = vld [vmem:[%s5 + $0x328] sm:$0xf]
    %v4604 = vld [vmem:[%s5 + $0x32c] sm:$0xff]
    %v4605 = vld [vmem:[%s5 + $0x334] sm:$0xff]
    %v4606 = vld [vmem:[%s5 + $0x33c] sm:$0xff]
    %v4607 = vld [vmem:[%s5 + $0x344] sm:$0xf]
    %v4608 = vld [vmem:[%s5 + $0x348] sm:$0xff]
    %v4609 = vld [vmem:[%s5 + $0x350] sm:$0xff]
    %v4610 = vld [vmem:[%s5 + $0x358] sm:$0xff]
    %v4611 = vld [vmem:[%s5 + $0x360] sm:$0xf]
    %v4612 = vld [vmem:[%s5 + $0x364] sm:$0xff]
    %v4613 = vld [vmem:[%s5 + $0x36c] sm:$0xff]
    %v4614 = vld [vmem:[%s5 + $0x374] sm:$0xff]
    %v4615 = vld [vmem:[%s5 + $0x37c] sm:$0xf]
    %v4616 = vld [vmem:[%s5 + $0x380] sm:$0xff]
    %v4617 = vld [vmem:[%s5 + $0x388] sm:$0xff]
    %v4618 = vld [vmem:[%s5 + $0x390] sm:$0xff]
    %v4619 = vld [vmem:[%s5 + $0x398] sm:$0xf]
    %v4620 = vld [vmem:[%s5 + $0x39c] sm:$0xff]
    %v4621 = vld [vmem:[%s5 + $0x3a4] sm:$0xff]
    %v4622 = vld [vmem:[%s5 + $0x3ac] sm:$0xff]
    %v4623 = vld [vmem:[%s5 + $0x3b4] sm:$0xf]
    %v4624 = vld [vmem:[%s5 + $0x3b8] sm:$0xff]
    %v4625 = vld [vmem:[%s5 + $0x3c0] sm:$0xff]
    %v4626 = vld [vmem:[%s5 + $0x3c8] sm:$0xff]
    %v4627 = vld [vmem:[%s5 + $0x3d0] sm:$0xf]
    %v4628 = vld [vmem:[%s5 + $0x3d4] sm:$0xff]
    %v4629 = vld [vmem:[%s5 + $0x3dc] sm:$0xff]
    %v4630 = vld [vmem:[%s5 + $0x3e4] sm:$0xff]
    %v4631 = vld [vmem:[%s5 + $0x3ec] sm:$0xf]
    %v4632 = vld [vmem:[%s5 + $0x3f0] sm:$0xff]
    %v4633 = vld [vmem:[%s5 + $0x3f8] sm:$0xff]
    %v4634 = vld [vmem:[%s5 + $0x400] sm:$0xff]
    %v4635 = vld [vmem:[%s5 + $0x408] sm:$0xf]
    %v4636 = vld [vmem:[%s5 + $0x40c] sm:$0xff]
    %v4637 = vld [vmem:[%s5 + $0x414] sm:$0xff]
    %v4638 = vld [vmem:[%s5 + $0x41c] sm:$0xff]
    %v4639 = vld [vmem:[%s5 + $0x424] sm:$0xf]
    %v4640 = vld [vmem:[%s5 + $0x428] sm:$0xff]
    %v4641 = vld [vmem:[%s5 + $0x430] sm:$0xff]
    %v4642 = vld [vmem:[%s5 + $0x438] sm:$0xff]
    %v4643 = vld [vmem:[%s5 + $0x440] sm:$0xf]
    %v4644 = vld [vmem:[%s5 + $0x444] sm:$0xff]
    %v4645 = vld [vmem:[%s5 + $0x44c] sm:$0xff]
    %v4646 = vld [vmem:[%s5 + $0x454] sm:$0xff]
    %v4647 = vld [vmem:[%s5 + $0x45c] sm:$0xf]
    %v4648 = vld [vmem:[%s5 + $0x460] sm:$0xff]
    %v4649 = vld [vmem:[%s5 + $0x468] sm:$0xff]
    %v4650 = vld [vmem:[%s5 + $0x470] sm:$0xff]
    %v4651 = vld [vmem:[%s5 + $0x478] sm:$0xf]
    %v4652 = vld [vmem:[%s5 + $0x47c] sm:$0xff]
    %v4653 = vld [vmem:[%s5 + $0x484] sm:$0xff]
    %v4654 = vld [vmem:[%s5 + $0x48c] sm:$0xff]
    %v4655 = vld [vmem:[%s5 + $0x494] sm:$0xf]
    %v4656 = vld [vmem:[%s5 + $0x498] sm:$0xff]
    %v4657 = vld [vmem:[%s5 + $0x4a0] sm:$0xff]
    %v4658 = vld [vmem:[%s5 + $0x4a8] sm:$0xff]
    %v4659 = vld [vmem:[%s5 + $0x4b0] sm:$0xf]
    %v4660 = vld [vmem:[%s5 + $0x4b4] sm:$0xff]
    %v4661 = vld [vmem:[%s5 + $0x4bc] sm:$0xff]
    %v4662 = vld [vmem:[%s5 + $0x4c4] sm:$0xff]
    %v4663 = vld [vmem:[%s5 + $0x4cc] sm:$0xf]
    %v4664 = vld [vmem:[%s5 + $0x4d0] sm:$0xff]
    %v4665 = vld [vmem:[%s5 + $0x4d8] sm:$0xff]
    %v4666 = vld [vmem:[%s5 + $0x4e0] sm:$0xff]
    %v4667 = vld [vmem:[%s5 + $0x4e8] sm:$0xf]
    %v4668 = vld [vmem:[%s5 + $0x4ec] sm:$0xff]
    %v4669 = vld [vmem:[%s5 + $0x4f4] sm:$0xff]
    %v4670 = vld [vmem:[%s5 + $0x4fc] sm:$0xff]
    %v4671 = vld [vmem:[%s5 + $0x504] sm:$0xf]
    %v4672 = vld [vmem:[%s5 + $0x508] sm:$0xff]
    %v4673 = vld [vmem:[%s5 + $0x510] sm:$0xff]
    %v4674 = vld [vmem:[%s5 + $0x518] sm:$0xff]
    %v4675 = vld [vmem:[%s5 + $0x520] sm:$0xf]
    %v4676 = vld [vmem:[%s5 + $0x524] sm:$0xff]
    %v4677 = vld [vmem:[%s5 + $0x52c] sm:$0xff]
    %v4678 = vld [vmem:[%s5 + $0x534] sm:$0xff]
    %v4679 = vld [vmem:[%s5 + $0x53c] sm:$0xf]
    %v4680 = vld [vmem:[%s5 + $0x540] sm:$0xff]
    %v4681 = vld [vmem:[%s5 + $0x548] sm:$0xff]
    %v4682 = vld [vmem:[%s5 + $0x550] sm:$0xff]
    %v4683 = vld [vmem:[%s5 + $0x558] sm:$0xf]
    %v4684 = vld [vmem:[%s5 + $0x55c] sm:$0xff]
    %v4685 = vld [vmem:[%s5 + $0x564] sm:$0xff]
    %v4686 = vld [vmem:[%s5 + $0x56c] sm:$0xff]
    %v4687 = vld [vmem:[%s5 + $0x574] sm:$0xf]
    %v4688 = vld [vmem:[%s5 + $0x578] sm:$0xff]
    %v4689 = vld [vmem:[%s5 + $0x580] sm:$0xff]
    %v4690 = vld [vmem:[%s5 + $0x588] sm:$0xff]
    %v4691 = vld [vmem:[%s5 + $0x590] sm:$0xf]
    %v4692 = vld [vmem:[%s5 + $0x594] sm:$0xff]
    %v4693 = vld [vmem:[%s5 + $0x59c] sm:$0xff]
    %v4694 = vld [vmem:[%s5 + $0x5a4] sm:$0xff]
    %v4695 = vld [vmem:[%s5 + $0x5ac] sm:$0xf]
    %v4696 = vld [vmem:[%s5 + $0x5b0] sm:$0xff]
    %v4697 = vld [vmem:[%s5 + $0x5b8] sm:$0xff]
    %v4698 = vld [vmem:[%s5 + $0x5c0] sm:$0xff]
    %v4699 = vld [vmem:[%s5 + $0x5c8] sm:$0xf]
    %v4700 = vld [vmem:[%s5 + $0x5cc] sm:$0xff]
    %v4701 = vld [vmem:[%s5 + $0x5d4] sm:$0xff]
    %v4702 = vld [vmem:[%s5 + $0x5dc] sm:$0xff]
    %v4703 = vld [vmem:[%s5 + $0x5e4] sm:$0xf]
    %v4704 = vld [vmem:[%s5 + $0x5e8] sm:$0xff]
    %v4705 = vld [vmem:[%s5 + $0x5f0] sm:$0xff]
    %v4706 = vld [vmem:[%s5 + $0x5f8] sm:$0xff]
    %v4707 = vld [vmem:[%s5 + $0x600] sm:$0xf]
    %v4708 = vld [vmem:[%s5 + $0x604] sm:$0xff]
    %v4709 = vld [vmem:[%s5 + $0x60c] sm:$0xff]
    %v4710 = vld [vmem:[%s5 + $0x614] sm:$0xff]
    %v4711 = vld [vmem:[%s5 + $0x61c] sm:$0xf]
    %v4712 = vld [vmem:[%s5 + $0x620] sm:$0xff]
    %v4713 = vld [vmem:[%s5 + $0x628] sm:$0xff]
    %v4714 = vld [vmem:[%s5 + $0x630] sm:$0xff]
    %v4715 = vld [vmem:[%s5 + $0x638] sm:$0xf]
    %v4716 = vld [vmem:[%s5 + $0x63c] sm:$0xff]
    %v4717 = vld [vmem:[%s5 + $0x644] sm:$0xff]
    %v4718 = vld [vmem:[%s5 + $0x64c] sm:$0xff]
    %v4719 = vld [vmem:[%s5 + $0x654] sm:$0xf]
    %v4720 = vld [vmem:[%s5 + $0x658] sm:$0xff]
    %v4721 = vld [vmem:[%s5 + $0x660] sm:$0xff]
    %v4722 = vld [vmem:[%s5 + $0x668] sm:$0xff]
    %v4723 = vld [vmem:[%s5 + $0x670] sm:$0xf]
    %v4724 = vld [vmem:[%s5 + $0x674] sm:$0xff]
    %v4725 = vld [vmem:[%s5 + $0x67c] sm:$0xff]
    %v4726 = vld [vmem:[%s5 + $0x684] sm:$0xff]
    %v4727 = vld [vmem:[%s5 + $0x68c] sm:$0xf]
    %v4728 = vld [vmem:[%s5 + $0x690] sm:$0xff]
    %v4729 = vld [vmem:[%s5 + $0x698] sm:$0xff]
    %v4730 = vld [vmem:[%s5 + $0x6a0] sm:$0xff]
    %v4731 = vld [vmem:[%s5 + $0x6a8] sm:$0xf]
    %v4732 = vld [vmem:[%s5 + $0x6ac] sm:$0xff]
    %v4733 = vld [vmem:[%s5 + $0x6b4] sm:$0xff]
    %v4734 = vld [vmem:[%s5 + $0x6bc] sm:$0xff]
    %v4735 = vld [vmem:[%s5 + $0x6c4] sm:$0xf]
    %v4736 = vld [vmem:[%s5 + $0x6c8] sm:$0xff]
    %v4737 = vld [vmem:[%s5 + $0x6d0] sm:$0xff]
    %v4738 = vld [vmem:[%s5 + $0x6d8] sm:$0xff]
    %v4739 = vld [vmem:[%s5 + $0x6e0] sm:$0xf]
    %v4740 = vld [vmem:[%s5 + $0x6e4] sm:$0xff]
    %v4741 = vld [vmem:[%s5 + $0x6ec] sm:$0xff]
    %v4742 = vld [vmem:[%s5 + $0x6f4] sm:$0xff]
    %v4743 = vld [vmem:[%s5 + $0x6fc] sm:$0xf]
    %v4744 = vld [vmem:[%s5 + $0x700] sm:$0xff]
    %v4745 = vld [vmem:[%s5 + $0x708] sm:$0xff]
    %v4746 = vld [vmem:[%s5 + $0x710] sm:$0xff]
    %v4747 = vld [vmem:[%s5 + $0x718] sm:$0xf]
    %v4748 = vld [vmem:[%s5 + $0x71c] sm:$0xff]
    %v4749 = vld [vmem:[%s5 + $0x724] sm:$0xff]
    %v4750 = vld [vmem:[%s5 + $0x72c] sm:$0xff]
    %v4751 = vld [vmem:[%s5 + $0x734] sm:$0xf]
    %v4752 = vld [vmem:[%s5 + $0x738] sm:$0xff]
    %v4753 = vld [vmem:[%s5 + $0x740] sm:$0xff]
    %v4754 = vld [vmem:[%s5 + $0x748] sm:$0xff]
    %v4755 = vld [vmem:[%s5 + $0x750] sm:$0xf]
    %v4756 = vld [vmem:[%s5 + $0x754] sm:$0xff]
    %v4757 = vld [vmem:[%s5 + $0x75c] sm:$0xff]
    %v4758 = vld [vmem:[%s5 + $0x764] sm:$0xff]
    %v4759 = vld [vmem:[%s5 + $0x76c] sm:$0xf]
    %v4760 = vld [vmem:[%s5 + $0x770] sm:$0xff]
    %v4761 = vld [vmem:[%s5 + $0x778] sm:$0xff]
    %v4762 = vld [vmem:[%s5 + $0x780] sm:$0xff]
    %v4763 = vld [vmem:[%s5 + $0x788] sm:$0xf]
    %v4764 = vld [vmem:[%s5 + $0x78c] sm:$0xff]
    %v4765 = vld [vmem:[%s5 + $0x794] sm:$0xff]
    %v4766 = vld [vmem:[%s5 + $0x79c] sm:$0xff]
    %v4767 = vld [vmem:[%s5 + $0x7a4] sm:$0xf]
    %v4768 = vld [vmem:[%s5 + $0x7a8] sm:$0xff]
    %v4769 = vld [vmem:[%s5 + $0x7b0] sm:$0xff]
    %v4770 = vld [vmem:[%s5 + $0x7b8] sm:$0xff]
    %v4771 = vld [vmem:[%s5 + $0x7c0] sm:$0xf]
    %v4772 = vld [vmem:[%s5 + $0x7c4] sm:$0xff]
    %v4773 = vld [vmem:[%s5 + $0x7cc] sm:$0xff]
    %v4774 = vld [vmem:[%s5 + $0x7d4] sm:$0xff]
    %v4775 = vld [vmem:[%s5 + $0x7dc] sm:$0xf]
    %v4776 = vld [vmem:[%s5 + $0x7e0] sm:$0xff]
    %v4777 = vld [vmem:[%s5 + $0x7e8] sm:$0xff]
    %v4778 = vld [vmem:[%s5 + $0x7f0] sm:$0xff]
    %v4779 = vld [vmem:[%s5 + $0x7f8] sm:$0xf]
    %v4780 = vld [vmem:[%s5 + $0x7fc] sm:$0xff]
    %v4781 = vld [vmem:[%s5 + $0x804] sm:$0xff]
    %v4782 = vld [vmem:[%s5 + $0x80c] sm:$0xff]
    %v4783 = vld [vmem:[%s5 + $0x814] sm:$0xf]
    %v4784 = vld [vmem:[%s5 + $0x818] sm:$0xff]
    %v4785 = vld [vmem:[%s5 + $0x820] sm:$0xff]
    %v4786 = vld [vmem:[%s5 + $0x828] sm:$0xff]
    %v4787 = vld [vmem:[%s5 + $0x830] sm:$0xf]
    %v4788 = vld [vmem:[%s5 + $0x834] sm:$0xff]
    %v4789 = vld [vmem:[%s5 + $0x83c] sm:$0xff]
    %v4790 = vld [vmem:[%s5 + $0x844] sm:$0xff]
    %v4791 = vld [vmem:[%s5 + $0x84c] sm:$0xf]
    %v4792 = vld [vmem:[%s5 + $0x850] sm:$0xff]
    %v4793 = vld [vmem:[%s5 + $0x858] sm:$0xff]
    %v4794 = vld [vmem:[%s5 + $0x860] sm:$0xff]
    %v4795 = vld [vmem:[%s5 + $0x868] sm:$0xf]
    %v4796 = vld [vmem:[%s5 + $0x86c] sm:$0xff]
    %v4797 = vld [vmem:[%s5 + $0x874] sm:$0xff]
    %v4798 = vld [vmem:[%s5 + $0x87c] sm:$0xff]
    %v4799 = vld [vmem:[%s5 + $0x884] sm:$0xf]
    %v4800 = vld [vmem:[%s5 + $0x888] sm:$0xff]
    %v4801 = vld [vmem:[%s5 + $0x890] sm:$0xff]
    %v4802 = vld [vmem:[%s5 + $0x898] sm:$0xff]
    %v4803 = vld [vmem:[%s5 + $0x8a0] sm:$0xf]
    %v4804 = vld [vmem:[%s5 + $0x8a4] sm:$0xff]
    %v4805 = vld [vmem:[%s5 + $0x8ac] sm:$0xff]
    %v4806 = vld [vmem:[%s5 + $0x8b4] sm:$0xff]
    %v4807 = vld [vmem:[%s5 + $0x8bc] sm:$0xf]
    %v4808 = vld [vmem:[%s5 + $0x8c0] sm:$0xff]
    %v4809 = vld [vmem:[%s5 + $0x8c8] sm:$0xff]
    %v4810 = vld [vmem:[%s5 + $0x8d0] sm:$0xff]
    %v4811 = vld [vmem:[%s5 + $0x8d8] sm:$0xf]
    %v4812 = vld [vmem:[%s5 + $0x8dc] sm:$0xff]
    %v4813 = vld [vmem:[%s5 + $0x8e4] sm:$0xff]
    %v4814 = vld [vmem:[%s5 + $0x8ec] sm:$0xff]
    %v4815 = vld [vmem:[%s5 + $0x8f4] sm:$0xf]
    %v4816 = vld [vmem:[%s5 + $0x8f8] sm:$0xff]
    %v4817 = vld [vmem:[%s5 + $0x900] sm:$0xff]
    %v4818 = vld [vmem:[%s5 + $0x908] sm:$0xff]
    %v4819 = vld [vmem:[%s5 + $0x910] sm:$0xf]
    %v4820 = vld [vmem:[%s5 + $0x914] sm:$0xff]
    %v4821 = vld [vmem:[%s5 + $0x91c] sm:$0xff]
    %v4822 = vld [vmem:[%s5 + $0x924] sm:$0xff]
    %v4823 = vld [vmem:[%s5 + $0x92c] sm:$0xf]
    %v4824 = vld [vmem:[%s5 + $0x930] sm:$0xff]
    %v4825 = vld [vmem:[%s5 + $0x938] sm:$0xff]
    %v4826 = vld [vmem:[%s5 + $0x940] sm:$0xff]
    %v4827 = vld [vmem:[%s5 + $0x948] sm:$0xf]
    %v4828 = vld [vmem:[%s5 + $0x94c] sm:$0xff]
    %v4829 = vld [vmem:[%s5 + $0x954] sm:$0xff]
    %v4830 = vld [vmem:[%s5 + $0x95c] sm:$0xff]
    %v4831 = vld [vmem:[%s5 + $0x964] sm:$0xf]
    %v4832 = vld [vmem:[%s5 + $0x968] sm:$0xff]
    %v4833 = vld [vmem:[%s5 + $0x970] sm:$0xff]
    %v4834 = vld [vmem:[%s5 + $0x978] sm:$0xff]
    %v4835 = vld [vmem:[%s5 + $0x980] sm:$0xf]
    %v4836 = vld [vmem:[%s5 + $0x984] sm:$0xff]
    %v4837 = vld [vmem:[%s5 + $0x98c] sm:$0xff]
    %v4838 = vld [vmem:[%s5 + $0x994] sm:$0xff]
    %v4839 = vld [vmem:[%s5 + $0x99c] sm:$0xf]
    %v4840 = vld [vmem:[%s5 + $0x9a0] sm:$0xff]
    %v4841 = vld [vmem:[%s5 + $0x9a8] sm:$0xff]
    %v4842 = vld [vmem:[%s5 + $0x9b0] sm:$0xff]
    %v4843 = vld [vmem:[%s5 + $0x9b8] sm:$0xf]
    %v4844 = vld [vmem:[%s5 + $0x9bc] sm:$0xff]
    %v4845 = vld [vmem:[%s5 + $0x9c4] sm:$0xff]
    %v4846 = vld [vmem:[%s5 + $0x9cc] sm:$0xff]
    %v4847 = vld [vmem:[%s5 + $0x9d4] sm:$0xf]
    %v4848 = vld [vmem:[%s5 + $0x9d8] sm:$0xff]
    %v4849 = vld [vmem:[%s5 + $0x9e0] sm:$0xff]
    %v4850 = vld [vmem:[%s5 + $0x9e8] sm:$0xff]
    %v4851 = vld [vmem:[%s5 + $0x9f0] sm:$0xf]
    %v4852 = vld [vmem:[%s5 + $0x9f4] sm:$0xff]
    %v4853 = vld [vmem:[%s5 + $0x9fc] sm:$0xff]
    %v4854 = vld [vmem:[%s5 + $0xa04] sm:$0xff]
    %v4855 = vld [vmem:[%s5 + $0xa0c] sm:$0xf]
    %v4856 = vld [vmem:[%s5 + $0xa10] sm:$0xff]
    %v4857 = vld [vmem:[%s5 + $0xa18] sm:$0xff]
    %v4858 = vld [vmem:[%s5 + $0xa20] sm:$0xff]
    %v4859 = vld [vmem:[%s5 + $0xa28] sm:$0xf]
    %v4860 = vld [vmem:[%s5 + $0xa2c] sm:$0xff]
    %v4861 = vld [vmem:[%s5 + $0xa34] sm:$0xff]
    %v4862 = vld [vmem:[%s5 + $0xa3c] sm:$0xff]
    %v4863 = vld [vmem:[%s5 + $0xa44] sm:$0xf]
    %v4864 = vld [vmem:[%s5 + $0xa48] sm:$0xff]
    %v4865 = vld [vmem:[%s5 + $0xa50] sm:$0xff]
    %v4866 = vld [vmem:[%s5 + $0xa58] sm:$0xff]
    %v4867 = vld [vmem:[%s5 + $0xa60] sm:$0xf]
    %v4868 = vld [vmem:[%s5 + $0xa64] sm:$0xff]
    %v4869 = vld [vmem:[%s5 + $0xa6c] sm:$0xff]
    %v4870 = vld [vmem:[%s5 + $0xa74] sm:$0xff]
    %v4871 = vld [vmem:[%s5 + $0xa7c] sm:$0xf]
    %v4872 = vld [vmem:[%s5 + $0xa80] sm:$0xff]
    %v4873 = vld [vmem:[%s5 + $0xa88] sm:$0xff]
    %v4874 = vld [vmem:[%s5 + $0xa90] sm:$0xff]
    %v4875 = vld [vmem:[%s5 + $0xa98] sm:$0xf]
    %v4876 = vld [vmem:[%s5 + $0xa9c] sm:$0xff]
    %v4877 = vld [vmem:[%s5 + $0xaa4] sm:$0xff]
    %v4878 = vld [vmem:[%s5 + $0xaac] sm:$0xff]
    %v4879 = vld [vmem:[%s5 + $0xab4] sm:$0xf]
    %v4880 = vld [vmem:[%s5 + $0xab8] sm:$0xff]
    %v4881 = vld [vmem:[%s5 + $0xac0] sm:$0xff]
    %v4882 = vld [vmem:[%s5 + $0xac8] sm:$0xff]
    %v4883 = vld [vmem:[%s5 + $0xad0] sm:$0xf]
    %v4884 = vld [vmem:[%s5 + $0xad4] sm:$0xff]
    %v4885 = vld [vmem:[%s5 + $0xadc] sm:$0xff]
    %v4886 = vld [vmem:[%s5 + $0xae4] sm:$0xff]
    %v4887 = vld [vmem:[%s5 + $0xaec] sm:$0xf]
    %v4888 = vld [vmem:[%s5 + $0xaf0] sm:$0xff]
    %v4889 = vld [vmem:[%s5 + $0xaf8] sm:$0xff]
    %v4890 = vld [vmem:[%s5 + $0xb00] sm:$0xff]
    %v4891 = vld [vmem:[%s5 + $0xb08] sm:$0xf]
    %v4892 = vld [vmem:[%s5 + $0xb0c] sm:$0xff]
    %v4893 = vld [vmem:[%s5 + $0xb14] sm:$0xff]
    %v4894 = vld [vmem:[%s5 + $0xb1c] sm:$0xff]
    %v4895 = vld [vmem:[%s5 + $0xb24] sm:$0xf]
    %v4896 = vld [vmem:[%s5 + $0xb28] sm:$0xff]
    %v4897 = vld [vmem:[%s5 + $0xb30] sm:$0xff]
    %v4898 = vld [vmem:[%s5 + $0xb38] sm:$0xff]
    %v4899 = vld [vmem:[%s5 + $0xb40] sm:$0xf]
    %v4900 = vld [vmem:[%s5 + $0xb44] sm:$0xff]
    %v4901 = vld [vmem:[%s5 + $0xb4c] sm:$0xff]
    %v4902 = vld [vmem:[%s5 + $0xb54] sm:$0xff]
    %v4903 = vld [vmem:[%s5 + $0xb5c] sm:$0xf]
    %v4904 = vld [vmem:[%s5 + $0xb60] sm:$0xff]
    %v4905 = vld [vmem:[%s5 + $0xb68] sm:$0xff]
    %v4906 = vld [vmem:[%s5 + $0xb70] sm:$0xff]
    %v4907 = vld [vmem:[%s5 + $0xb78] sm:$0xf]
    %v4908 = vld [vmem:[%s5 + $0xb7c] sm:$0xff]
    %v4909 = vld [vmem:[%s5 + $0xb84] sm:$0xff]
    %v4910 = vld [vmem:[%s5 + $0xb8c] sm:$0xff]
    %v4911 = vld [vmem:[%s5 + $0xb94] sm:$0xf]
    %v4912 = vld [vmem:[%s5 + $0xb98] sm:$0xff]
    %v4913 = vld [vmem:[%s5 + $0xba0] sm:$0xff]
    %v4914 = vld [vmem:[%s5 + $0xba8] sm:$0xff]
    %v4915 = vld [vmem:[%s5 + $0xbb0] sm:$0xf]
    %v4916 = vld [vmem:[%s5 + $0xbb4] sm:$0xff]
    %v4917 = vld [vmem:[%s5 + $0xbbc] sm:$0xff]
    %v4918 = vld [vmem:[%s5 + $0xbc4] sm:$0xff]
    %v4919 = vld [vmem:[%s5 + $0xbcc] sm:$0xf]
    %v4920 = vld [vmem:[%s5 + $0xbd0] sm:$0xff]
    %v4921 = vld [vmem:[%s5 + $0xbd8] sm:$0xff]
    %v4922 = vld [vmem:[%s5 + $0xbe0] sm:$0xff]
    %v4923 = vld [vmem:[%s5 + $0xbe8] sm:$0xf]
    %v4924 = vld [vmem:[%s5 + $0xbec] sm:$0xff]
    %v4925 = vld [vmem:[%s5 + $0xbf4] sm:$0xff]
    %v4926 = vld [vmem:[%s5 + $0xbfc] sm:$0xff]
    %v4927 = vld [vmem:[%s5 + $0xc04] sm:$0xf]
    %v4928 = vld [vmem:[%s5 + $0xc08] sm:$0xff]
    %v4929 = vld [vmem:[%s5 + $0xc10] sm:$0xff]
    %v4930 = vld [vmem:[%s5 + $0xc18] sm:$0xff]
    %v4931 = vld [vmem:[%s5 + $0xc20] sm:$0xf]
    %v4932 = vld [vmem:[%s5 + $0xc24] sm:$0xff]
    %v4933 = vld [vmem:[%s5 + $0xc2c] sm:$0xff]
    %v4934 = vld [vmem:[%s5 + $0xc34] sm:$0xff]
    %v4935 = vld [vmem:[%s5 + $0xc3c] sm:$0xf]
    %v4936 = vld [vmem:[%s5 + $0xc40] sm:$0xff]
    %v4937 = vld [vmem:[%s5 + $0xc48] sm:$0xff]
    %v4938 = vld [vmem:[%s5 + $0xc50] sm:$0xff]
    %v4939 = vld [vmem:[%s5 + $0xc58] sm:$0xf]
    %v4940 = vld [vmem:[%s5 + $0xc5c] sm:$0xff]
    %v4941 = vld [vmem:[%s5 + $0xc64] sm:$0xff]
    %v4942 = vld [vmem:[%s5 + $0xc6c] sm:$0xff]
    %v4943 = vld [vmem:[%s5 + $0xc74] sm:$0xf]
    %v4944 = vld [vmem:[%s5 + $0xc78] sm:$0xff]
    %v4945 = vld [vmem:[%s5 + $0xc80] sm:$0xff]
    %v4946 = vld [vmem:[%s5 + $0xc88] sm:$0xff]
    %v4947 = vld [vmem:[%s5 + $0xc90] sm:$0xf]
    %v4948 = vld [vmem:[%s5 + $0xc94] sm:$0xff]
    %v4949 = vld [vmem:[%s5 + $0xc9c] sm:$0xff]
    %v4950 = vld [vmem:[%s5 + $0xca4] sm:$0xff]
    %v4951 = vld [vmem:[%s5 + $0xcac] sm:$0xf]
    %v4952 = vld [vmem:[%s5 + $0xcb0] sm:$0xff]
    %v4953 = vld [vmem:[%s5 + $0xcb8] sm:$0xff]
    %v4954 = vld [vmem:[%s5 + $0xcc0] sm:$0xff]
    %v4955 = vld [vmem:[%s5 + $0xcc8] sm:$0xf]
    %v4956 = vld [vmem:[%s5 + $0xccc] sm:$0xff]
    %v4957 = vld [vmem:[%s5 + $0xcd4] sm:$0xff]
    %v4958 = vld [vmem:[%s5 + $0xcdc] sm:$0xff]
    %v4959 = vld [vmem:[%s5 + $0xce4] sm:$0xf]
    %v4960 = vld [vmem:[%s5 + $0xce8] sm:$0xff]
    %v4961 = vld [vmem:[%s5 + $0xcf0] sm:$0xff]
    %v4962 = vld [vmem:[%s5 + $0xcf8] sm:$0xff]
    %v4963 = vld [vmem:[%s5 + $0xd00] sm:$0xf]
    %v4964 = vld [vmem:[%s5 + $0xd04] sm:$0xff]
    %v4965 = vld [vmem:[%s5 + $0xd0c] sm:$0xff]
    %v4966 = vld [vmem:[%s5 + $0xd14] sm:$0xff]
    %v4967 = vld [vmem:[%s5 + $0xd1c] sm:$0xf]
    %v4968 = vld [vmem:[%s5 + $0xd20] sm:$0xff]
    %v4969 = vld [vmem:[%s5 + $0xd28] sm:$0xff]
    %v4970 = vld [vmem:[%s5 + $0xd30] sm:$0xff]
    %v4971 = vld [vmem:[%s5 + $0xd38] sm:$0xf]
    %v4972 = vld [vmem:[%s5 + $0xd3c] sm:$0xff]
    %v4973 = vld [vmem:[%s5 + $0xd44] sm:$0xff]
    %v4974 = vld [vmem:[%s5 + $0xd4c] sm:$0xff]
    %v4975 = vld [vmem:[%s5 + $0xd54] sm:$0xf]
    %v4976 = vld [vmem:[%s5 + $0xd58] sm:$0xff]
    %v4977 = vld [vmem:[%s5 + $0xd60] sm:$0xff]
    %v4978 = vld [vmem:[%s5 + $0xd68] sm:$0xff]
    %v4979 = vld [vmem:[%s5 + $0xd70] sm:$0xf]
    %v4980 = vld [vmem:[%s5 + $0xd74] sm:$0xff]
    %v4981 = vld [vmem:[%s5 + $0xd7c] sm:$0xff]
    %v4982 = vld [vmem:[%s5 + $0xd84] sm:$0xff]
    %v4983 = vld [vmem:[%s5 + $0xd8c] sm:$0xf]
    %v4984 = vld [vmem:[%s5 + $0xd90] sm:$0xff]
    %v4985 = vld [vmem:[%s5 + $0xd98] sm:$0xff]
    %v4986 = vld [vmem:[%s5 + $0xda0] sm:$0xff]
    %v4987 = vld [vmem:[%s5 + $0xda8] sm:$0xf]
    %v4988 = vld [vmem:[%s5 + $0xdac] sm:$0xff]
    %v4989 = vld [vmem:[%s5 + $0xdb4] sm:$0xff]
    %v4990 = vld [vmem:[%s5 + $0xdbc] sm:$0xff]
    %v4991 = vld [vmem:[%s5 + $0xdc4] sm:$0xf]
    %v4992 = vld [vmem:[%s5 + $0xdc8] sm:$0xff]
    %v4993 = vld [vmem:[%s5 + $0xdd0] sm:$0xff]
    %v4994 = vld [vmem:[%s5 + $0xdd8] sm:$0xff]
    %v4995 = vld [vmem:[%s5 + $0xde0] sm:$0xf]
    %v4996 = vld [vmem:[%s5 + $0xde4] sm:$0xff]
    %v4997 = vld [vmem:[%s5 + $0xdec] sm:$0xff]
    %v4998 = vld [vmem:[%s5 + $0xdf4] sm:$0xff]
    %v4999 = vld [vmem:[%s5 + $0xdfc] sm:$0xf]
    %v5000 = vld [vmem:[%s6] sm:$0x7f]
    %v5002 = vperm.slane %v5000, 0
    %v5003 = vperm.slane %v5000, 1
    %v5004 = vperm.slane %v5000, 2
    %v5005 = vperm.slane %v5000, 3
    %v5006 = vperm.slane %v5000, 4
    %v5007 = vperm.slane %v5000, 5
    %v5008 = vperm.slane %v5000, 6
    %v5528 = vunpack.c.l.b16 %v4488
    %v5529 = vunpack.c.h.b16 %v4488
    %v5530 = vunpack.c.l.b16 %v4489
    %v5531 = vunpack.c.h.b16 %v4489
    %v5532 = vunpack.c.l.b16 %v4490
    %v5533 = vunpack.c.h.b16 %v4490
    %v5534 = vunpack.c.l.b16 %v4491
    %v5535 = vunpack.c.l.b16 %v4492
    %v5536 = vunpack.c.h.b16 %v4492
    %v5537 = vunpack.c.l.b16 %v4493
    %v5538 = vunpack.c.h.b16 %v4493
    %v5539 = vunpack.c.l.b16 %v4494
    %v5540 = vunpack.c.h.b16 %v4494
    %v5541 = vunpack.c.l.b16 %v4495
    %v5542 = vunpack.c.l.b16 %v4496
    %v5543 = vunpack.c.h.b16 %v4496
    %v5544 = vunpack.c.l.b16 %v4497
    %v5545 = vunpack.c.h.b16 %v4497
    %v5546 = vunpack.c.l.b16 %v4498
    %v5547 = vunpack.c.h.b16 %v4498
    %v5548 = vunpack.c.l.b16 %v4499
    %v5549 = vunpack.c.l.b16 %v4500
    %v5550 = vunpack.c.h.b16 %v4500
    %v5551 = vunpack.c.l.b16 %v4501
    %v5552 = vunpack.c.h.b16 %v4501
    %v5553 = vunpack.c.l.b16 %v4502
    %v5554 = vunpack.c.h.b16 %v4502
    %v5555 = vunpack.c.l.b16 %v4503
    %v5556 = vunpack.c.l.b16 %v4504
    %v5557 = vunpack.c.h.b16 %v4504
    %v5558 = vunpack.c.l.b16 %v4505
    %v5559 = vunpack.c.h.b16 %v4505
    %v5560 = vunpack.c.l.b16 %v4506
    %v5561 = vunpack.c.h.b16 %v4506
    %v5562 = vunpack.c.l.b16 %v4507
    %v5563 = vunpack.c.l.b16 %v4508
    %v5564 = vunpack.c.h.b16 %v4508
    %v5565 = vunpack.c.l.b16 %v4509
    %v5566 = vunpack.c.h.b16 %v4509
    %v5567 = vunpack.c.l.b16 %v4510
    %v5568 = vunpack.c.h.b16 %v4510
    %v5569 = vunpack.c.l.b16 %v4511
    %v5570 = vunpack.c.l.b16 %v4512
    %v5571 = vunpack.c.h.b16 %v4512
    %v5572 = vunpack.c.l.b16 %v4513
    %v5573 = vunpack.c.h.b16 %v4513
    %v5574 = vunpack.c.l.b16 %v4514
    %v5575 = vunpack.c.h.b16 %v4514
    %v5576 = vunpack.c.l.b16 %v4515
    %v5577 = vunpack.c.l.b16 %v4516
    %v5578 = vunpack.c.h.b16 %v4516
    %v5579 = vunpack.c.l.b16 %v4517
    %v5580 = vunpack.c.h.b16 %v4517
    %v5581 = vunpack.c.l.b16 %v4518
    %v5582 = vunpack.c.h.b16 %v4518
    %v5583 = vunpack.c.l.b16 %v4519
    %v5584 = vunpack.c.l.b16 %v4520
    %v5585 = vunpack.c.h.b16 %v4520
    %v5586 = vunpack.c.l.b16 %v4521
    %v5587 = vunpack.c.h.b16 %v4521
    %v5588 = vunpack.c.l.b16 %v4522
    %v5589 = vunpack.c.h.b16 %v4522
    %v5590 = vunpack.c.l.b16 %v4523
    %v5591 = vunpack.c.l.b16 %v4524
    %v5592 = vunpack.c.h.b16 %v4524
    %v5593 = vunpack.c.l.b16 %v4525
    %v5594 = vunpack.c.h.b16 %v4525
    %v5595 = vunpack.c.l.b16 %v4526
    %v5596 = vunpack.c.h.b16 %v4526
    %v5597 = vunpack.c.l.b16 %v4527
    %v5598 = vunpack.c.l.b16 %v4528
    %v5599 = vunpack.c.h.b16 %v4528
    %v5600 = vunpack.c.l.b16 %v4529
    %v5601 = vunpack.c.h.b16 %v4529
    %v5602 = vunpack.c.l.b16 %v4530
    %v5603 = vunpack.c.h.b16 %v4530
    %v5604 = vunpack.c.l.b16 %v4531
    %v5605 = vunpack.c.l.b16 %v4532
    %v5606 = vunpack.c.h.b16 %v4532
    %v5607 = vunpack.c.l.b16 %v4533
    %v5608 = vunpack.c.h.b16 %v4533
    %v5609 = vunpack.c.l.b16 %v4534
    %v5610 = vunpack.c.h.b16 %v4534
    %v5611 = vunpack.c.l.b16 %v4535
    %v5612 = vunpack.c.l.b16 %v4536
    %v5613 = vunpack.c.h.b16 %v4536
    %v5614 = vunpack.c.l.b16 %v4537
    %v5615 = vunpack.c.h.b16 %v4537
    %v5616 = vunpack.c.l.b16 %v4538
    %v5617 = vunpack.c.h.b16 %v4538
    %v5618 = vunpack.c.l.b16 %v4539
    %v5619 = vunpack.c.l.b16 %v4540
    %v5620 = vunpack.c.h.b16 %v4540
    %v5621 = vunpack.c.l.b16 %v4541
    %v5622 = vunpack.c.h.b16 %v4541
    %v5623 = vunpack.c.l.b16 %v4542
    %v5624 = vunpack.c.h.b16 %v4542
    %v5625 = vunpack.c.l.b16 %v4543
    %v5626 = vunpack.c.l.b16 %v4544
    %v5627 = vunpack.c.h.b16 %v4544
    %v5628 = vunpack.c.l.b16 %v4545
    %v5629 = vunpack.c.h.b16 %v4545
    %v5630 = vunpack.c.l.b16 %v4546
    %v5631 = vunpack.c.h.b16 %v4546
    %v5632 = vunpack.c.l.b16 %v4547
    %v5633 = vunpack.c.l.b16 %v4548
    %v5634 = vunpack.c.h.b16 %v4548
    %v5635 = vunpack.c.l.b16 %v4549
    %v5636 = vunpack.c.h.b16 %v4549
    %v5637 = vunpack.c.l.b16 %v4550
    %v5638 = vunpack.c.h.b16 %v4550
    %v5639 = vunpack.c.l.b16 %v4551
    %v5640 = vunpack.c.l.b16 %v4552
    %v5641 = vunpack.c.h.b16 %v4552
    %v5642 = vunpack.c.l.b16 %v4553
    %v5643 = vunpack.c.h.b16 %v4553
    %v5644 = vunpack.c.l.b16 %v4554
    %v5645 = vunpack.c.h.b16 %v4554
    %v5646 = vunpack.c.l.b16 %v4555
    %v5647 = vunpack.c.l.b16 %v4556
    %v5648 = vunpack.c.h.b16 %v4556
    %v5649 = vunpack.c.l.b16 %v4557
    %v5650 = vunpack.c.h.b16 %v4557
    %v5651 = vunpack.c.l.b16 %v4558
    %v5652 = vunpack.c.h.b16 %v4558
    %v5653 = vunpack.c.l.b16 %v4559
    %v5654 = vunpack.c.l.b16 %v4560
    %v5655 = vunpack.c.h.b16 %v4560
    %v5656 = vunpack.c.l.b16 %v4561
    %v5657 = vunpack.c.h.b16 %v4561
    %v5658 = vunpack.c.l.b16 %v4562
    %v5659 = vunpack.c.h.b16 %v4562
    %v5660 = vunpack.c.l.b16 %v4563
    %v5661 = vunpack.c.l.b16 %v4564
    %v5662 = vunpack.c.h.b16 %v4564
    %v5663 = vunpack.c.l.b16 %v4565
    %v5664 = vunpack.c.h.b16 %v4565
    %v5665 = vunpack.c.l.b16 %v4566
    %v5666 = vunpack.c.h.b16 %v4566
    %v5667 = vunpack.c.l.b16 %v4567
    %v5668 = vunpack.c.l.b16 %v4568
    %v5669 = vunpack.c.h.b16 %v4568
    %v5670 = vunpack.c.l.b16 %v4569
    %v5671 = vunpack.c.h.b16 %v4569
    %v5672 = vunpack.c.l.b16 %v4570
    %v5673 = vunpack.c.h.b16 %v4570
    %v5674 = vunpack.c.l.b16 %v4571
    %v5675 = vunpack.c.l.b16 %v4572
    %v5676 = vunpack.c.h.b16 %v4572
    %v5677 = vunpack.c.l.b16 %v4573
    %v5678 = vunpack.c.h.b16 %v4573
    %v5679 = vunpack.c.l.b16 %v4574
    %v5680 = vunpack.c.h.b16 %v4574
    %v5681 = vunpack.c.l.b16 %v4575
    %v5682 = vunpack.c.l.b16 %v4576
    %v5683 = vunpack.c.h.b16 %v4576
    %v5684 = vunpack.c.l.b16 %v4577
    %v5685 = vunpack.c.h.b16 %v4577
    %v5686 = vunpack.c.l.b16 %v4578
    %v5687 = vunpack.c.h.b16 %v4578
    %v5688 = vunpack.c.l.b16 %v4579
    %v5689 = vunpack.c.l.b16 %v4580
    %v5690 = vunpack.c.h.b16 %v4580
    %v5691 = vunpack.c.l.b16 %v4581
    %v5692 = vunpack.c.h.b16 %v4581
    %v5693 = vunpack.c.l.b16 %v4582
    %v5694 = vunpack.c.h.b16 %v4582
    %v5695 = vunpack.c.l.b16 %v4583
    %v5696 = vunpack.c.l.b16 %v4584
    %v5697 = vunpack.c.h.b16 %v4584
    %v5698 = vunpack.c.l.b16 %v4585
    %v5699 = vunpack.c.h.b16 %v4585
    %v5700 = vunpack.c.l.b16 %v4586
    %v5701 = vunpack.c.h.b16 %v4586
    %v5702 = vunpack.c.l.b16 %v4587
    %v5703 = vunpack.c.l.b16 %v4588
    %v5704 = vunpack.c.h.b16 %v4588
    %v5705 = vunpack.c.l.b16 %v4589
    %v5706 = vunpack.c.h.b16 %v4589
    %v5707 = vunpack.c.l.b16 %v4590
    %v5708 = vunpack.c.h.b16 %v4590
    %v5709 = vunpack.c.l.b16 %v4591
    %v5710 = vunpack.c.l.b16 %v4592
    %v5711 = vunpack.c.h.b16 %v4592
    %v5712 = vunpack.c.l.b16 %v4593
    %v5713 = vunpack.c.h.b16 %v4593
    %v5714 = vunpack.c.l.b16 %v4594
    %v5715 = vunpack.c.h.b16 %v4594
    %v5716 = vunpack.c.l.b16 %v4595
    %v5717 = vunpack.c.l.b16 %v4596
    %v5718 = vunpack.c.h.b16 %v4596
    %v5719 = vunpack.c.l.b16 %v4597
    %v5720 = vunpack.c.h.b16 %v4597
    %v5721 = vunpack.c.l.b16 %v4598
    %v5722 = vunpack.c.h.b16 %v4598
    %v5723 = vunpack.c.l.b16 %v4599
    %v5724 = vunpack.c.l.b16 %v4600
    %v5725 = vunpack.c.h.b16 %v4600
    %v5726 = vunpack.c.l.b16 %v4601
    %v5727 = vunpack.c.h.b16 %v4601
    %v5728 = vunpack.c.l.b16 %v4602
    %v5729 = vunpack.c.h.b16 %v4602
    %v5730 = vunpack.c.l.b16 %v4603
    %v5731 = vunpack.c.l.b16 %v4604
    %v5732 = vunpack.c.h.b16 %v4604
    %v5733 = vunpack.c.l.b16 %v4605
    %v5734 = vunpack.c.h.b16 %v4605
    %v5735 = vunpack.c.l.b16 %v4606
    %v5736 = vunpack.c.h.b16 %v4606
    %v5737 = vunpack.c.l.b16 %v4607
    %v5738 = vunpack.c.l.b16 %v4608
    %v5739 = vunpack.c.h.b16 %v4608
    %v5740 = vunpack.c.l.b16 %v4609
    %v5741 = vunpack.c.h.b16 %v4609
    %v5742 = vunpack.c.l.b16 %v4610
    %v5743 = vunpack.c.h.b16 %v4610
    %v5744 = vunpack.c.l.b16 %v4611
    %v5745 = vunpack.c.l.b16 %v4612
    %v5746 = vunpack.c.h.b16 %v4612
    %v5747 = vunpack.c.l.b16 %v4613
    %v5748 = vunpack.c.h.b16 %v4613
    %v5749 = vunpack.c.l.b16 %v4614
    %v5750 = vunpack.c.h.b16 %v4614
    %v5751 = vunpack.c.l.b16 %v4615
    %v5752 = vunpack.c.l.b16 %v4616
    %v5753 = vunpack.c.h.b16 %v4616
    %v5754 = vunpack.c.l.b16 %v4617
    %v5755 = vunpack.c.h.b16 %v4617
    %v5756 = vunpack.c.l.b16 %v4618
    %v5757 = vunpack.c.h.b16 %v4618
    %v5758 = vunpack.c.l.b16 %v4619
    %v5759 = vunpack.c.l.b16 %v4620
    %v5760 = vunpack.c.h.b16 %v4620
    %v5761 = vunpack.c.l.b16 %v4621
    %v5762 = vunpack.c.h.b16 %v4621
    %v5763 = vunpack.c.l.b16 %v4622
    %v5764 = vunpack.c.h.b16 %v4622
    %v5765 = vunpack.c.l.b16 %v4623
    %v5766 = vunpack.c.l.b16 %v4624
    %v5767 = vunpack.c.h.b16 %v4624
    %v5768 = vunpack.c.l.b16 %v4625
    %v5769 = vunpack.c.h.b16 %v4625
    %v5770 = vunpack.c.l.b16 %v4626
    %v5771 = vunpack.c.h.b16 %v4626
    %v5772 = vunpack.c.l.b16 %v4627
    %v5773 = vunpack.c.l.b16 %v4628
    %v5774 = vunpack.c.h.b16 %v4628
    %v5775 = vunpack.c.l.b16 %v4629
    %v5776 = vunpack.c.h.b16 %v4629
    %v5777 = vunpack.c.l.b16 %v4630
    %v5778 = vunpack.c.h.b16 %v4630
    %v5779 = vunpack.c.l.b16 %v4631
    %v5780 = vunpack.c.l.b16 %v4632
    %v5781 = vunpack.c.h.b16 %v4632
    %v5782 = vunpack.c.l.b16 %v4633
    %v5783 = vunpack.c.h.b16 %v4633
    %v5784 = vunpack.c.l.b16 %v4634
    %v5785 = vunpack.c.h.b16 %v4634
    %v5786 = vunpack.c.l.b16 %v4635
    %v5787 = vunpack.c.l.b16 %v4636
    %v5788 = vunpack.c.h.b16 %v4636
    %v5789 = vunpack.c.l.b16 %v4637
    %v5790 = vunpack.c.h.b16 %v4637
    %v5791 = vunpack.c.l.b16 %v4638
    %v5792 = vunpack.c.h.b16 %v4638
    %v5793 = vunpack.c.l.b16 %v4639
    %v5794 = vunpack.c.l.b16 %v4640
    %v5795 = vunpack.c.h.b16 %v4640
    %v5796 = vunpack.c.l.b16 %v4641
    %v5797 = vunpack.c.h.b16 %v4641
    %v5798 = vunpack.c.l.b16 %v4642
    %v5799 = vunpack.c.h.b16 %v4642
    %v5800 = vunpack.c.l.b16 %v4643
    %v5801 = vunpack.c.l.b16 %v4644
    %v5802 = vunpack.c.h.b16 %v4644
    %v5803 = vunpack.c.l.b16 %v4645
    %v5804 = vunpack.c.h.b16 %v4645
    %v5805 = vunpack.c.l.b16 %v4646
    %v5806 = vunpack.c.h.b16 %v4646
    %v5807 = vunpack.c.l.b16 %v4647
    %v5808 = vunpack.c.l.b16 %v4648
    %v5809 = vunpack.c.h.b16 %v4648
    %v5810 = vunpack.c.l.b16 %v4649
    %v5811 = vunpack.c.h.b16 %v4649
    %v5812 = vunpack.c.l.b16 %v4650
    %v5813 = vunpack.c.h.b16 %v4650
    %v5814 = vunpack.c.l.b16 %v4651
    %v5815 = vunpack.c.l.b16 %v4652
    %v5816 = vunpack.c.h.b16 %v4652
    %v5817 = vunpack.c.l.b16 %v4653
    %v5818 = vunpack.c.h.b16 %v4653
    %v5819 = vunpack.c.l.b16 %v4654
    %v5820 = vunpack.c.h.b16 %v4654
    %v5821 = vunpack.c.l.b16 %v4655
    %v5822 = vunpack.c.l.b16 %v4656
    %v5823 = vunpack.c.h.b16 %v4656
    %v5824 = vunpack.c.l.b16 %v4657
    %v5825 = vunpack.c.h.b16 %v4657
    %v5826 = vunpack.c.l.b16 %v4658
    %v5827 = vunpack.c.h.b16 %v4658
    %v5828 = vunpack.c.l.b16 %v4659
    %v5829 = vunpack.c.l.b16 %v4660
    %v5830 = vunpack.c.h.b16 %v4660
    %v5831 = vunpack.c.l.b16 %v4661
    %v5832 = vunpack.c.h.b16 %v4661
    %v5833 = vunpack.c.l.b16 %v4662
    %v5834 = vunpack.c.h.b16 %v4662
    %v5835 = vunpack.c.l.b16 %v4663
    %v5836 = vunpack.c.l.b16 %v4664
    %v5837 = vunpack.c.h.b16 %v4664
    %v5838 = vunpack.c.l.b16 %v4665
    %v5839 = vunpack.c.h.b16 %v4665
    %v5840 = vunpack.c.l.b16 %v4666
    %v5841 = vunpack.c.h.b16 %v4666
    %v5842 = vunpack.c.l.b16 %v4667
    %v5843 = vunpack.c.l.b16 %v4668
    %v5844 = vunpack.c.h.b16 %v4668
    %v5845 = vunpack.c.l.b16 %v4669
    %v5846 = vunpack.c.h.b16 %v4669
    %v5847 = vunpack.c.l.b16 %v4670
    %v5848 = vunpack.c.h.b16 %v4670
    %v5849 = vunpack.c.l.b16 %v4671
    %v5850 = vunpack.c.l.b16 %v4672
    %v5851 = vunpack.c.h.b16 %v4672
    %v5852 = vunpack.c.l.b16 %v4673
    %v5853 = vunpack.c.h.b16 %v4673
    %v5854 = vunpack.c.l.b16 %v4674
    %v5855 = vunpack.c.h.b16 %v4674
    %v5856 = vunpack.c.l.b16 %v4675
    %v5857 = vunpack.c.l.b16 %v4676
    %v5858 = vunpack.c.h.b16 %v4676
    %v5859 = vunpack.c.l.b16 %v4677
    %v5860 = vunpack.c.h.b16 %v4677
    %v5861 = vunpack.c.l.b16 %v4678
    %v5862 = vunpack.c.h.b16 %v4678
    %v5863 = vunpack.c.l.b16 %v4679
    %v5864 = vunpack.c.l.b16 %v4680
    %v5865 = vunpack.c.h.b16 %v4680
    %v5866 = vunpack.c.l.b16 %v4681
    %v5867 = vunpack.c.h.b16 %v4681
    %v5868 = vunpack.c.l.b16 %v4682
    %v5869 = vunpack.c.h.b16 %v4682
    %v5870 = vunpack.c.l.b16 %v4683
    %v5871 = vunpack.c.l.b16 %v4684
    %v5872 = vunpack.c.h.b16 %v4684
    %v5873 = vunpack.c.l.b16 %v4685
    %v5874 = vunpack.c.h.b16 %v4685
    %v5875 = vunpack.c.l.b16 %v4686
    %v5876 = vunpack.c.h.b16 %v4686
    %v5877 = vunpack.c.l.b16 %v4687
    %v5878 = vunpack.c.l.b16 %v4688
    %v5879 = vunpack.c.h.b16 %v4688
    %v5880 = vunpack.c.l.b16 %v4689
    %v5881 = vunpack.c.h.b16 %v4689
    %v5882 = vunpack.c.l.b16 %v4690
    %v5883 = vunpack.c.h.b16 %v4690
    %v5884 = vunpack.c.l.b16 %v4691
    %v5885 = vunpack.c.l.b16 %v4692
    %v5886 = vunpack.c.h.b16 %v4692
    %v5887 = vunpack.c.l.b16 %v4693
    %v5888 = vunpack.c.h.b16 %v4693
    %v5889 = vunpack.c.l.b16 %v4694
    %v5890 = vunpack.c.h.b16 %v4694
    %v5891 = vunpack.c.l.b16 %v4695
    %v5892 = vunpack.c.l.b16 %v4696
    %v5893 = vunpack.c.h.b16 %v4696
    %v5894 = vunpack.c.l.b16 %v4697
    %v5895 = vunpack.c.h.b16 %v4697
    %v5896 = vunpack.c.l.b16 %v4698
    %v5897 = vunpack.c.h.b16 %v4698
    %v5898 = vunpack.c.l.b16 %v4699
    %v5899 = vunpack.c.l.b16 %v4700
    %v5900 = vunpack.c.h.b16 %v4700
    %v5901 = vunpack.c.l.b16 %v4701
    %v5902 = vunpack.c.h.b16 %v4701
    %v5903 = vunpack.c.l.b16 %v4702
    %v5904 = vunpack.c.h.b16 %v4702
    %v5905 = vunpack.c.l.b16 %v4703
    %v5906 = vunpack.c.l.b16 %v4704
    %v5907 = vunpack.c.h.b16 %v4704
    %v5908 = vunpack.c.l.b16 %v4705
    %v5909 = vunpack.c.h.b16 %v4705
    %v5910 = vunpack.c.l.b16 %v4706
    %v5911 = vunpack.c.h.b16 %v4706
    %v5912 = vunpack.c.l.b16 %v4707
    %v5913 = vunpack.c.l.b16 %v4708
    %v5914 = vunpack.c.h.b16 %v4708
    %v5915 = vunpack.c.l.b16 %v4709
    %v5916 = vunpack.c.h.b16 %v4709
    %v5917 = vunpack.c.l.b16 %v4710
    %v5918 = vunpack.c.h.b16 %v4710
    %v5919 = vunpack.c.l.b16 %v4711
    %v5920 = vunpack.c.l.b16 %v4712
    %v5921 = vunpack.c.h.b16 %v4712
    %v5922 = vunpack.c.l.b16 %v4713
    %v5923 = vunpack.c.h.b16 %v4713
    %v5924 = vunpack.c.l.b16 %v4714
    %v5925 = vunpack.c.h.b16 %v4714
    %v5926 = vunpack.c.l.b16 %v4715
    %v5927 = vunpack.c.l.b16 %v4716
    %v5928 = vunpack.c.h.b16 %v4716
    %v5929 = vunpack.c.l.b16 %v4717
    %v5930 = vunpack.c.h.b16 %v4717
    %v5931 = vunpack.c.l.b16 %v4718
    %v5932 = vunpack.c.h.b16 %v4718
    %v5933 = vunpack.c.l.b16 %v4719
    %v5934 = vunpack.c.l.b16 %v4720
    %v5935 = vunpack.c.h.b16 %v4720
    %v5936 = vunpack.c.l.b16 %v4721
    %v5937 = vunpack.c.h.b16 %v4721
    %v5938 = vunpack.c.l.b16 %v4722
    %v5939 = vunpack.c.h.b16 %v4722
    %v5940 = vunpack.c.l.b16 %v4723
    %v5941 = vunpack.c.l.b16 %v4724
    %v5942 = vunpack.c.h.b16 %v4724
    %v5943 = vunpack.c.l.b16 %v4725
    %v5944 = vunpack.c.h.b16 %v4725
    %v5945 = vunpack.c.l.b16 %v4726
    %v5946 = vunpack.c.h.b16 %v4726
    %v5947 = vunpack.c.l.b16 %v4727
    %v5948 = vunpack.c.l.b16 %v4728
    %v5949 = vunpack.c.h.b16 %v4728
    %v5950 = vunpack.c.l.b16 %v4729
    %v5951 = vunpack.c.h.b16 %v4729
    %v5952 = vunpack.c.l.b16 %v4730
    %v5953 = vunpack.c.h.b16 %v4730
    %v5954 = vunpack.c.l.b16 %v4731
    %v5955 = vunpack.c.l.b16 %v4732
    %v5956 = vunpack.c.h.b16 %v4732
    %v5957 = vunpack.c.l.b16 %v4733
    %v5958 = vunpack.c.h.b16 %v4733
    %v5959 = vunpack.c.l.b16 %v4734
    %v5960 = vunpack.c.h.b16 %v4734
    %v5961 = vunpack.c.l.b16 %v4735
    %v5962 = vunpack.c.l.b16 %v4736
    %v5963 = vunpack.c.h.b16 %v4736
    %v5964 = vunpack.c.l.b16 %v4737
    %v5965 = vunpack.c.h.b16 %v4737
    %v5966 = vunpack.c.l.b16 %v4738
    %v5967 = vunpack.c.h.b16 %v4738
    %v5968 = vunpack.c.l.b16 %v4739
    %v5969 = vunpack.c.l.b16 %v4740
    %v5970 = vunpack.c.h.b16 %v4740
    %v5971 = vunpack.c.l.b16 %v4741
    %v5972 = vunpack.c.h.b16 %v4741
    %v5973 = vunpack.c.l.b16 %v4742
    %v5974 = vunpack.c.h.b16 %v4742
    %v5975 = vunpack.c.l.b16 %v4743
    %v5976 = vunpack.c.l.b16 %v4744
    %v5977 = vunpack.c.h.b16 %v4744
    %v5978 = vunpack.c.l.b16 %v4745
    %v5979 = vunpack.c.h.b16 %v4745
    %v5980 = vunpack.c.l.b16 %v4746
    %v5981 = vunpack.c.h.b16 %v4746
    %v5982 = vunpack.c.l.b16 %v4747
    %v5983 = vunpack.c.l.b16 %v4748
    %v5984 = vunpack.c.h.b16 %v4748
    %v5985 = vunpack.c.l.b16 %v4749
    %v5986 = vunpack.c.h.b16 %v4749
    %v5987 = vunpack.c.l.b16 %v4750
    %v5988 = vunpack.c.h.b16 %v4750
    %v5989 = vunpack.c.l.b16 %v4751
    %v5990 = vunpack.c.l.b16 %v4752
    %v5991 = vunpack.c.h.b16 %v4752
    %v5992 = vunpack.c.l.b16 %v4753
    %v5993 = vunpack.c.h.b16 %v4753
    %v5994 = vunpack.c.l.b16 %v4754
    %v5995 = vunpack.c.h.b16 %v4754
    %v5996 = vunpack.c.l.b16 %v4755
    %v5997 = vunpack.c.l.b16 %v4756
    %v5998 = vunpack.c.h.b16 %v4756
    %v5999 = vunpack.c.l.b16 %v4757
    %v6000 = vunpack.c.h.b16 %v4757
    %v6001 = vunpack.c.l.b16 %v4758
    %v6002 = vunpack.c.h.b16 %v4758
    %v6003 = vunpack.c.l.b16 %v4759
    %v6004 = vunpack.c.l.b16 %v4760
    %v6005 = vunpack.c.h.b16 %v4760
    %v6006 = vunpack.c.l.b16 %v4761
    %v6007 = vunpack.c.h.b16 %v4761
    %v6008 = vunpack.c.l.b16 %v4762
    %v6009 = vunpack.c.h.b16 %v4762
    %v6010 = vunpack.c.l.b16 %v4763
    %v6011 = vunpack.c.l.b16 %v4764
    %v6012 = vunpack.c.h.b16 %v4764
    %v6013 = vunpack.c.l.b16 %v4765
    %v6014 = vunpack.c.h.b16 %v4765
    %v6015 = vunpack.c.l.b16 %v4766
    %v6016 = vunpack.c.h.b16 %v4766
    %v6017 = vunpack.c.l.b16 %v4767
    %v6018 = vunpack.c.l.b16 %v4768
    %v6019 = vunpack.c.h.b16 %v4768
    %v6020 = vunpack.c.l.b16 %v4769
    %v6021 = vunpack.c.h.b16 %v4769
    %v6022 = vunpack.c.l.b16 %v4770
    %v6023 = vunpack.c.h.b16 %v4770
    %v6024 = vunpack.c.l.b16 %v4771
    %v6025 = vunpack.c.l.b16 %v4772
    %v6026 = vunpack.c.h.b16 %v4772
    %v6027 = vunpack.c.l.b16 %v4773
    %v6028 = vunpack.c.h.b16 %v4773
    %v6029 = vunpack.c.l.b16 %v4774
    %v6030 = vunpack.c.h.b16 %v4774
    %v6031 = vunpack.c.l.b16 %v4775
    %v6032 = vunpack.c.l.b16 %v4776
    %v6033 = vunpack.c.h.b16 %v4776
    %v6034 = vunpack.c.l.b16 %v4777
    %v6035 = vunpack.c.h.b16 %v4777
    %v6036 = vunpack.c.l.b16 %v4778
    %v6037 = vunpack.c.h.b16 %v4778
    %v6038 = vunpack.c.l.b16 %v4779
    %v6039 = vunpack.c.l.b16 %v4780
    %v6040 = vunpack.c.h.b16 %v4780
    %v6041 = vunpack.c.l.b16 %v4781
    %v6042 = vunpack.c.h.b16 %v4781
    %v6043 = vunpack.c.l.b16 %v4782
    %v6044 = vunpack.c.h.b16 %v4782
    %v6045 = vunpack.c.l.b16 %v4783
    %v6046 = vunpack.c.l.b16 %v4784
    %v6047 = vunpack.c.h.b16 %v4784
    %v6048 = vunpack.c.l.b16 %v4785
    %v6049 = vunpack.c.h.b16 %v4785
    %v6050 = vunpack.c.l.b16 %v4786
    %v6051 = vunpack.c.h.b16 %v4786
    %v6052 = vunpack.c.l.b16 %v4787
    %v6053 = vunpack.c.l.b16 %v4788
    %v6054 = vunpack.c.h.b16 %v4788
    %v6055 = vunpack.c.l.b16 %v4789
    %v6056 = vunpack.c.h.b16 %v4789
    %v6057 = vunpack.c.l.b16 %v4790
    %v6058 = vunpack.c.h.b16 %v4790
    %v6059 = vunpack.c.l.b16 %v4791
    %v6060 = vunpack.c.l.b16 %v4792
    %v6061 = vunpack.c.h.b16 %v4792
    %v6062 = vunpack.c.l.b16 %v4793
    %v6063 = vunpack.c.h.b16 %v4793
    %v6064 = vunpack.c.l.b16 %v4794
    %v6065 = vunpack.c.h.b16 %v4794
    %v6066 = vunpack.c.l.b16 %v4795
    %v6067 = vunpack.c.l.b16 %v4796
    %v6068 = vunpack.c.h.b16 %v4796
    %v6069 = vunpack.c.l.b16 %v4797
    %v6070 = vunpack.c.h.b16 %v4797
    %v6071 = vunpack.c.l.b16 %v4798
    %v6072 = vunpack.c.h.b16 %v4798
    %v6073 = vunpack.c.l.b16 %v4799
    %v6074 = vunpack.c.l.b16 %v4800
    %v6075 = vunpack.c.h.b16 %v4800
    %v6076 = vunpack.c.l.b16 %v4801
    %v6077 = vunpack.c.h.b16 %v4801
    %v6078 = vunpack.c.l.b16 %v4802
    %v6079 = vunpack.c.h.b16 %v4802
    %v6080 = vunpack.c.l.b16 %v4803
    %v6081 = vunpack.c.l.b16 %v4804
    %v6082 = vunpack.c.h.b16 %v4804
    %v6083 = vunpack.c.l.b16 %v4805
    %v6084 = vunpack.c.h.b16 %v4805
    %v6085 = vunpack.c.l.b16 %v4806
    %v6086 = vunpack.c.h.b16 %v4806
    %v6087 = vunpack.c.l.b16 %v4807
    %v6088 = vunpack.c.l.b16 %v4808
    %v6089 = vunpack.c.h.b16 %v4808
    %v6090 = vunpack.c.l.b16 %v4809
    %v6091 = vunpack.c.h.b16 %v4809
    %v6092 = vunpack.c.l.b16 %v4810
    %v6093 = vunpack.c.h.b16 %v4810
    %v6094 = vunpack.c.l.b16 %v4811
    %v6095 = vunpack.c.l.b16 %v4812
    %v6096 = vunpack.c.h.b16 %v4812
    %v6097 = vunpack.c.l.b16 %v4813
    %v6098 = vunpack.c.h.b16 %v4813
    %v6099 = vunpack.c.l.b16 %v4814
    %v6100 = vunpack.c.h.b16 %v4814
    %v6101 = vunpack.c.l.b16 %v4815
    %v6102 = vunpack.c.l.b16 %v4816
    %v6103 = vunpack.c.h.b16 %v4816
    %v6104 = vunpack.c.l.b16 %v4817
    %v6105 = vunpack.c.h.b16 %v4817
    %v6106 = vunpack.c.l.b16 %v4818
    %v6107 = vunpack.c.h.b16 %v4818
    %v6108 = vunpack.c.l.b16 %v4819
    %v6109 = vunpack.c.l.b16 %v4820
    %v6110 = vunpack.c.h.b16 %v4820
    %v6111 = vunpack.c.l.b16 %v4821
    %v6112 = vunpack.c.h.b16 %v4821
    %v6113 = vunpack.c.l.b16 %v4822
    %v6114 = vunpack.c.h.b16 %v4822
    %v6115 = vunpack.c.l.b16 %v4823
    %v6116 = vunpack.c.l.b16 %v4824
    %v6117 = vunpack.c.h.b16 %v4824
    %v6118 = vunpack.c.l.b16 %v4825
    %v6119 = vunpack.c.h.b16 %v4825
    %v6120 = vunpack.c.l.b16 %v4826
    %v6121 = vunpack.c.h.b16 %v4826
    %v6122 = vunpack.c.l.b16 %v4827
    %v6123 = vunpack.c.l.b16 %v4828
    %v6124 = vunpack.c.h.b16 %v4828
    %v6125 = vunpack.c.l.b16 %v4829
    %v6126 = vunpack.c.h.b16 %v4829
    %v6127 = vunpack.c.l.b16 %v4830
    %v6128 = vunpack.c.h.b16 %v4830
    %v6129 = vunpack.c.l.b16 %v4831
    %v6130 = vunpack.c.l.b16 %v4832
    %v6131 = vunpack.c.h.b16 %v4832
    %v6132 = vunpack.c.l.b16 %v4833
    %v6133 = vunpack.c.h.b16 %v4833
    %v6134 = vunpack.c.l.b16 %v4834
    %v6135 = vunpack.c.h.b16 %v4834
    %v6136 = vunpack.c.l.b16 %v4835
    %v6137 = vunpack.c.l.b16 %v4836
    %v6138 = vunpack.c.h.b16 %v4836
    %v6139 = vunpack.c.l.b16 %v4837
    %v6140 = vunpack.c.h.b16 %v4837
    %v6141 = vunpack.c.l.b16 %v4838
    %v6142 = vunpack.c.h.b16 %v4838
    %v6143 = vunpack.c.l.b16 %v4839
    %v6144 = vunpack.c.l.b16 %v4840
    %v6145 = vunpack.c.h.b16 %v4840
    %v6146 = vunpack.c.l.b16 %v4841
    %v6147 = vunpack.c.h.b16 %v4841
    %v6148 = vunpack.c.l.b16 %v4842
    %v6149 = vunpack.c.h.b16 %v4842
    %v6150 = vunpack.c.l.b16 %v4843
    %v6151 = vunpack.c.l.b16 %v4844
    %v6152 = vunpack.c.h.b16 %v4844
    %v6153 = vunpack.c.l.b16 %v4845
    %v6154 = vunpack.c.h.b16 %v4845
    %v6155 = vunpack.c.l.b16 %v4846
    %v6156 = vunpack.c.h.b16 %v4846
    %v6157 = vunpack.c.l.b16 %v4847
    %v6158 = vunpack.c.l.b16 %v4848
    %v6159 = vunpack.c.h.b16 %v4848
    %v6160 = vunpack.c.l.b16 %v4849
    %v6161 = vunpack.c.h.b16 %v4849
    %v6162 = vunpack.c.l.b16 %v4850
    %v6163 = vunpack.c.h.b16 %v4850
    %v6164 = vunpack.c.l.b16 %v4851
    %v6165 = vunpack.c.l.b16 %v4852
    %v6166 = vunpack.c.h.b16 %v4852
    %v6167 = vunpack.c.l.b16 %v4853
    %v6168 = vunpack.c.h.b16 %v4853
    %v6169 = vunpack.c.l.b16 %v4854
    %v6170 = vunpack.c.h.b16 %v4854
    %v6171 = vunpack.c.l.b16 %v4855
    %v6172 = vunpack.c.l.b16 %v4856
    %v6173 = vunpack.c.h.b16 %v4856
    %v6174 = vunpack.c.l.b16 %v4857
    %v6175 = vunpack.c.h.b16 %v4857
    %v6176 = vunpack.c.l.b16 %v4858
    %v6177 = vunpack.c.h.b16 %v4858
    %v6178 = vunpack.c.l.b16 %v4859
    %v6179 = vunpack.c.l.b16 %v4860
    %v6180 = vunpack.c.h.b16 %v4860
    %v6181 = vunpack.c.l.b16 %v4861
    %v6182 = vunpack.c.h.b16 %v4861
    %v6183 = vunpack.c.l.b16 %v4862
    %v6184 = vunpack.c.h.b16 %v4862
    %v6185 = vunpack.c.l.b16 %v4863
    %v6186 = vunpack.c.l.b16 %v4864
    %v6187 = vunpack.c.h.b16 %v4864
    %v6188 = vunpack.c.l.b16 %v4865
    %v6189 = vunpack.c.h.b16 %v4865
    %v6190 = vunpack.c.l.b16 %v4866
    %v6191 = vunpack.c.h.b16 %v4866
    %v6192 = vunpack.c.l.b16 %v4867
    %v6193 = vunpack.c.l.b16 %v4868
    %v6194 = vunpack.c.h.b16 %v4868
    %v6195 = vunpack.c.l.b16 %v4869
    %v6196 = vunpack.c.h.b16 %v4869
    %v6197 = vunpack.c.l.b16 %v4870
    %v6198 = vunpack.c.h.b16 %v4870
    %v6199 = vunpack.c.l.b16 %v4871
    %v6200 = vunpack.c.l.b16 %v4872
    %v6201 = vunpack.c.h.b16 %v4872
    %v6202 = vunpack.c.l.b16 %v4873
    %v6203 = vunpack.c.h.b16 %v4873
    %v6204 = vunpack.c.l.b16 %v4874
    %v6205 = vunpack.c.h.b16 %v4874
    %v6206 = vunpack.c.l.b16 %v4875
    %v6207 = vunpack.c.l.b16 %v4876
    %v6208 = vunpack.c.h.b16 %v4876
    %v6209 = vunpack.c.l.b16 %v4877
    %v6210 = vunpack.c.h.b16 %v4877
    %v6211 = vunpack.c.l.b16 %v4878
    %v6212 = vunpack.c.h.b16 %v4878
    %v6213 = vunpack.c.l.b16 %v4879
    %v6214 = vunpack.c.l.b16 %v4880
    %v6215 = vunpack.c.h.b16 %v4880
    %v6216 = vunpack.c.l.b16 %v4881
    %v6217 = vunpack.c.h.b16 %v4881
    %v6218 = vunpack.c.l.b16 %v4882
    %v6219 = vunpack.c.h.b16 %v4882
    %v6220 = vunpack.c.l.b16 %v4883
    %v6221 = vunpack.c.l.b16 %v4884
    %v6222 = vunpack.c.h.b16 %v4884
    %v6223 = vunpack.c.l.b16 %v4885
    %v6224 = vunpack.c.h.b16 %v4885
    %v6225 = vunpack.c.l.b16 %v4886
    %v6226 = vunpack.c.h.b16 %v4886
    %v6227 = vunpack.c.l.b16 %v4887
    %v6228 = vunpack.c.l.b16 %v4888
    %v6229 = vunpack.c.h.b16 %v4888
    %v6230 = vunpack.c.l.b16 %v4889
    %v6231 = vunpack.c.h.b16 %v4889
    %v6232 = vunpack.c.l.b16 %v4890
    %v6233 = vunpack.c.h.b16 %v4890
    %v6234 = vunpack.c.l.b16 %v4891
    %v6235 = vunpack.c.l.b16 %v4892
    %v6236 = vunpack.c.h.b16 %v4892
    %v6237 = vunpack.c.l.b16 %v4893
    %v6238 = vunpack.c.h.b16 %v4893
    %v6239 = vunpack.c.l.b16 %v4894
    %v6240 = vunpack.c.h.b16 %v4894
    %v6241 = vunpack.c.l.b16 %v4895
    %v6242 = vunpack.c.l.b16 %v4896
    %v6243 = vunpack.c.h.b16 %v4896
    %v6244 = vunpack.c.l.b16 %v4897
    %v6245 = vunpack.c.h.b16 %v4897
    %v6246 = vunpack.c.l.b16 %v4898
    %v6247 = vunpack.c.h.b16 %v4898
    %v6248 = vunpack.c.l.b16 %v4899
    %v6249 = vunpack.c.l.b16 %v4900
    %v6250 = vunpack.c.h.b16 %v4900
    %v6251 = vunpack.c.l.b16 %v4901
    %v6252 = vunpack.c.h.b16 %v4901
    %v6253 = vunpack.c.l.b16 %v4902
    %v6254 = vunpack.c.h.b16 %v4902
    %v6255 = vunpack.c.l.b16 %v4903
    %v6256 = vunpack.c.l.b16 %v4904
    %v6257 = vunpack.c.h.b16 %v4904
    %v6258 = vunpack.c.l.b16 %v4905
    %v6259 = vunpack.c.h.b16 %v4905
    %v6260 = vunpack.c.l.b16 %v4906
    %v6261 = vunpack.c.h.b16 %v4906
    %v6262 = vunpack.c.l.b16 %v4907
    %v6263 = vunpack.c.l.b16 %v4908
    %v6264 = vunpack.c.h.b16 %v4908
    %v6265 = vunpack.c.l.b16 %v4909
    %v6266 = vunpack.c.h.b16 %v4909
    %v6267 = vunpack.c.l.b16 %v4910
    %v6268 = vunpack.c.h.b16 %v4910
    %v6269 = vunpack.c.l.b16 %v4911
    %v6270 = vunpack.c.l.b16 %v4912
    %v6271 = vunpack.c.h.b16 %v4912
    %v6272 = vunpack.c.l.b16 %v4913
    %v6273 = vunpack.c.h.b16 %v4913
    %v6274 = vunpack.c.l.b16 %v4914
    %v6275 = vunpack.c.h.b16 %v4914
    %v6276 = vunpack.c.l.b16 %v4915
    %v6277 = vunpack.c.l.b16 %v4916
    %v6278 = vunpack.c.h.b16 %v4916
    %v6279 = vunpack.c.l.b16 %v4917
    %v6280 = vunpack.c.h.b16 %v4917
    %v6281 = vunpack.c.l.b16 %v4918
    %v6282 = vunpack.c.h.b16 %v4918
    %v6283 = vunpack.c.l.b16 %v4919
    %v6284 = vunpack.c.l.b16 %v4920
    %v6285 = vunpack.c.h.b16 %v4920
    %v6286 = vunpack.c.l.b16 %v4921
    %v6287 = vunpack.c.h.b16 %v4921
    %v6288 = vunpack.c.l.b16 %v4922
    %v6289 = vunpack.c.h.b16 %v4922
    %v6290 = vunpack.c.l.b16 %v4923
    %v6291 = vunpack.c.l.b16 %v4924
    %v6292 = vunpack.c.h.b16 %v4924
    %v6293 = vunpack.c.l.b16 %v4925
    %v6294 = vunpack.c.h.b16 %v4925
    %v6295 = vunpack.c.l.b16 %v4926
    %v6296 = vunpack.c.h.b16 %v4926
    %v6297 = vunpack.c.l.b16 %v4927
    %v6298 = vunpack.c.l.b16 %v4928
    %v6299 = vunpack.c.h.b16 %v4928
    %v6300 = vunpack.c.l.b16 %v4929
    %v6301 = vunpack.c.h.b16 %v4929
    %v6302 = vunpack.c.l.b16 %v4930
    %v6303 = vunpack.c.h.b16 %v4930
    %v6304 = vunpack.c.l.b16 %v4931
    %v6305 = vunpack.c.l.b16 %v4932
    %v6306 = vunpack.c.h.b16 %v4932
    %v6307 = vunpack.c.l.b16 %v4933
    %v6308 = vunpack.c.h.b16 %v4933
    %v6309 = vunpack.c.l.b16 %v4934
    %v6310 = vunpack.c.h.b16 %v4934
    %v6311 = vunpack.c.l.b16 %v4935
    %v6312 = vunpack.c.l.b16 %v4936
    %v6313 = vunpack.c.h.b16 %v4936
    %v6314 = vunpack.c.l.b16 %v4937
    %v6315 = vunpack.c.h.b16 %v4937
    %v6316 = vunpack.c.l.b16 %v4938
    %v6317 = vunpack.c.h.b16 %v4938
    %v6318 = vunpack.c.l.b16 %v4939
    %v6319 = vunpack.c.l.b16 %v4940
    %v6320 = vunpack.c.h.b16 %v4940
    %v6321 = vunpack.c.l.b16 %v4941
    %v6322 = vunpack.c.h.b16 %v4941
    %v6323 = vunpack.c.l.b16 %v4942
    %v6324 = vunpack.c.h.b16 %v4942
    %v6325 = vunpack.c.l.b16 %v4943
    %v6326 = vunpack.c.l.b16 %v4944
    %v6327 = vunpack.c.h.b16 %v4944
    %v6328 = vunpack.c.l.b16 %v4945
    %v6329 = vunpack.c.h.b16 %v4945
    %v6330 = vunpack.c.l.b16 %v4946
    %v6331 = vunpack.c.h.b16 %v4946
    %v6332 = vunpack.c.l.b16 %v4947
    %v6333 = vunpack.c.l.b16 %v4948
    %v6334 = vunpack.c.h.b16 %v4948
    %v6335 = vunpack.c.l.b16 %v4949
    %v6336 = vunpack.c.h.b16 %v4949
    %v6337 = vunpack.c.l.b16 %v4950
    %v6338 = vunpack.c.h.b16 %v4950
    %v6339 = vunpack.c.l.b16 %v4951
    %v6340 = vunpack.c.l.b16 %v4952
    %v6341 = vunpack.c.h.b16 %v4952
    %v6342 = vunpack.c.l.b16 %v4953
    %v6343 = vunpack.c.h.b16 %v4953
    %v6344 = vunpack.c.l.b16 %v4954
    %v6345 = vunpack.c.h.b16 %v4954
    %v6346 = vunpack.c.l.b16 %v4955
    %v6347 = vunpack.c.l.b16 %v4956
    %v6348 = vunpack.c.h.b16 %v4956
    %v6349 = vunpack.c.l.b16 %v4957
    %v6350 = vunpack.c.h.b16 %v4957
    %v6351 = vunpack.c.l.b16 %v4958
    %v6352 = vunpack.c.h.b16 %v4958
    %v6353 = vunpack.c.l.b16 %v4959
    %v6354 = vunpack.c.l.b16 %v4960
    %v6355 = vunpack.c.h.b16 %v4960
    %v6356 = vunpack.c.l.b16 %v4961
    %v6357 = vunpack.c.h.b16 %v4961
    %v6358 = vunpack.c.l.b16 %v4962
    %v6359 = vunpack.c.h.b16 %v4962
    %v6360 = vunpack.c.l.b16 %v4963
    %v6361 = vunpack.c.l.b16 %v4964
    %v6362 = vunpack.c.h.b16 %v4964
    %v6363 = vunpack.c.l.b16 %v4965
    %v6364 = vunpack.c.h.b16 %v4965
    %v6365 = vunpack.c.l.b16 %v4966
    %v6366 = vunpack.c.h.b16 %v4966
    %v6367 = vunpack.c.l.b16 %v4967
    %v6368 = vunpack.c.l.b16 %v4968
    %v6369 = vunpack.c.h.b16 %v4968
    %v6370 = vunpack.c.l.b16 %v4969
    %v6371 = vunpack.c.h.b16 %v4969
    %v6372 = vunpack.c.l.b16 %v4970
    %v6373 = vunpack.c.h.b16 %v4970
    %v6374 = vunpack.c.l.b16 %v4971
    %v6375 = vunpack.c.l.b16 %v4972
    %v6376 = vunpack.c.h.b16 %v4972
    %v6377 = vunpack.c.l.b16 %v4973
    %v6378 = vunpack.c.h.b16 %v4973
    %v6379 = vunpack.c.l.b16 %v4974
    %v6380 = vunpack.c.h.b16 %v4974
    %v6381 = vunpack.c.l.b16 %v4975
    %v6382 = vunpack.c.l.b16 %v4976
    %v6383 = vunpack.c.h.b16 %v4976
    %v6384 = vunpack.c.l.b16 %v4977
    %v6385 = vunpack.c.h.b16 %v4977
    %v6386 = vunpack.c.l.b16 %v4978
    %v6387 = vunpack.c.h.b16 %v4978
    %v6388 = vunpack.c.l.b16 %v4979
    %v6389 = vunpack.c.l.b16 %v4980
    %v6390 = vunpack.c.h.b16 %v4980
    %v6391 = vunpack.c.l.b16 %v4981
    %v6392 = vunpack.c.h.b16 %v4981
    %v6393 = vunpack.c.l.b16 %v4982
    %v6394 = vunpack.c.h.b16 %v4982
    %v6395 = vunpack.c.l.b16 %v4983
    %v6396 = vunpack.c.l.b16 %v4984
    %v6397 = vunpack.c.h.b16 %v4984
    %v6398 = vunpack.c.l.b16 %v4985
    %v6399 = vunpack.c.h.b16 %v4985
    %v6400 = vunpack.c.l.b16 %v4986
    %v6401 = vunpack.c.h.b16 %v4986
    %v6402 = vunpack.c.l.b16 %v4987
    %v6403 = vunpack.c.l.b16 %v4988
    %v6404 = vunpack.c.h.b16 %v4988
    %v6405 = vunpack.c.l.b16 %v4989
    %v6406 = vunpack.c.h.b16 %v4989
    %v6407 = vunpack.c.l.b16 %v4990
    %v6408 = vunpack.c.h.b16 %v4990
    %v6409 = vunpack.c.l.b16 %v4991
    %v6410 = vunpack.c.l.b16 %v4992
    %v6411 = vunpack.c.h.b16 %v4992
    %v6412 = vunpack.c.l.b16 %v4993
    %v6413 = vunpack.c.h.b16 %v4993
    %v6414 = vunpack.c.l.b16 %v4994
    %v6415 = vunpack.c.h.b16 %v4994
    %v6416 = vunpack.c.l.b16 %v4995
    %v6417 = vunpack.c.l.b16 %v4996
    %v6418 = vunpack.c.h.b16 %v4996
    %v6419 = vunpack.c.l.b16 %v4997
    %v6420 = vunpack.c.h.b16 %v4997
    %v6421 = vunpack.c.l.b16 %v4998
    %v6422 = vunpack.c.h.b16 %v4998
    %v6423 = vunpack.c.l.b16 %v4999
    %v6424 = vpack.c.b16 %v5535, %v5528
    %v6425 = vpack.c.b16 %v5536, %v5529
    %v6426 = vpack.c.b16 %v5537, %v5530
    %v6427 = vpack.c.b16 %v5538, %v5531
    %v6428 = vpack.c.b16 %v5539, %v5532
    %v6429 = vpack.c.b16 %v5540, %v5533
    %v6430 = vpack.c.b16 %v5541, %v5534
    %v6431 = vpack.c.b16 %v5549, %v5542
    %v6432 = vpack.c.b16 %v5550, %v5543
    %v6433 = vpack.c.b16 %v5551, %v5544
    %v6434 = vpack.c.b16 %v5552, %v5545
    %v6435 = vpack.c.b16 %v5553, %v5546
    %v6436 = vpack.c.b16 %v5554, %v5547
    %v6437 = vpack.c.b16 %v5555, %v5548
    %v6438 = vpack.c.b16 %v5563, %v5556
    %v6439 = vpack.c.b16 %v5564, %v5557
    %v6440 = vpack.c.b16 %v5565, %v5558
    %v6441 = vpack.c.b16 %v5566, %v5559
    %v6442 = vpack.c.b16 %v5567, %v5560
    %v6443 = vpack.c.b16 %v5568, %v5561
    %v6444 = vpack.c.b16 %v5569, %v5562
    %v6445 = vpack.c.b16 %v5577, %v5570
    %v6446 = vpack.c.b16 %v5578, %v5571
    %v6447 = vpack.c.b16 %v5579, %v5572
    %v6448 = vpack.c.b16 %v5580, %v5573
    %v6449 = vpack.c.b16 %v5581, %v5574
    %v6450 = vpack.c.b16 %v5582, %v5575
    %v6451 = vpack.c.b16 %v5583, %v5576
    %v6452 = vpack.c.b16 %v5591, %v5584
    %v6453 = vpack.c.b16 %v5592, %v5585
    %v6454 = vpack.c.b16 %v5593, %v5586
    %v6455 = vpack.c.b16 %v5594, %v5587
    %v6456 = vpack.c.b16 %v5595, %v5588
    %v6457 = vpack.c.b16 %v5596, %v5589
    %v6458 = vpack.c.b16 %v5597, %v5590
    %v6459 = vpack.c.b16 %v5605, %v5598
    %v6460 = vpack.c.b16 %v5606, %v5599
    %v6461 = vpack.c.b16 %v5607, %v5600
    %v6462 = vpack.c.b16 %v5608, %v5601
    %v6463 = vpack.c.b16 %v5609, %v5602
    %v6464 = vpack.c.b16 %v5610, %v5603
    %v6465 = vpack.c.b16 %v5611, %v5604
    %v6466 = vpack.c.b16 %v5619, %v5612
    %v6467 = vpack.c.b16 %v5620, %v5613
    %v6468 = vpack.c.b16 %v5621, %v5614
    %v6469 = vpack.c.b16 %v5622, %v5615
    %v6470 = vpack.c.b16 %v5623, %v5616
    %v6471 = vpack.c.b16 %v5624, %v5617
    %v6472 = vpack.c.b16 %v5625, %v5618
    %v6473 = vpack.c.b16 %v5633, %v5626
    %v6474 = vpack.c.b16 %v5634, %v5627
    %v6475 = vpack.c.b16 %v5635, %v5628
    %v6476 = vpack.c.b16 %v5636, %v5629
    %v6477 = vpack.c.b16 %v5637, %v5630
    %v6478 = vpack.c.b16 %v5638, %v5631
    %v6479 = vpack.c.b16 %v5639, %v5632
    %v6480 = vpack.c.b16 %v5647, %v5640
    %v6481 = vpack.c.b16 %v5648, %v5641
    %v6482 = vpack.c.b16 %v5649, %v5642
    %v6483 = vpack.c.b16 %v5650, %v5643
    %v6484 = vpack.c.b16 %v5651, %v5644
    %v6485 = vpack.c.b16 %v5652, %v5645
    %v6486 = vpack.c.b16 %v5653, %v5646
    %v6487 = vpack.c.b16 %v5661, %v5654
    %v6488 = vpack.c.b16 %v5662, %v5655
    %v6489 = vpack.c.b16 %v5663, %v5656
    %v6490 = vpack.c.b16 %v5664, %v5657
    %v6491 = vpack.c.b16 %v5665, %v5658
    %v6492 = vpack.c.b16 %v5666, %v5659
    %v6493 = vpack.c.b16 %v5667, %v5660
    %v6494 = vpack.c.b16 %v5675, %v5668
    %v6495 = vpack.c.b16 %v5676, %v5669
    %v6496 = vpack.c.b16 %v5677, %v5670
    %v6497 = vpack.c.b16 %v5678, %v5671
    %v6498 = vpack.c.b16 %v5679, %v5672
    %v6499 = vpack.c.b16 %v5680, %v5673
    %v6500 = vpack.c.b16 %v5681, %v5674
    %v6501 = vpack.c.b16 %v5689, %v5682
    %v6502 = vpack.c.b16 %v5690, %v5683
    %v6503 = vpack.c.b16 %v5691, %v5684
    %v6504 = vpack.c.b16 %v5692, %v5685
    %v6505 = vpack.c.b16 %v5693, %v5686
    %v6506 = vpack.c.b16 %v5694, %v5687
    %v6507 = vpack.c.b16 %v5695, %v5688
    %v6508 = vpack.c.b16 %v5703, %v5696
    %v6509 = vpack.c.b16 %v5704, %v5697
    %v6510 = vpack.c.b16 %v5705, %v5698
    %v6511 = vpack.c.b16 %v5706, %v5699
    %v6512 = vpack.c.b16 %v5707, %v5700
    %v6513 = vpack.c.b16 %v5708, %v5701
    %v6514 = vpack.c.b16 %v5709, %v5702
    %v6515 = vpack.c.b16 %v5717, %v5710
    %v6516 = vpack.c.b16 %v5718, %v5711
    %v6517 = vpack.c.b16 %v5719, %v5712
    %v6518 = vpack.c.b16 %v5720, %v5713
    %v6519 = vpack.c.b16 %v5721, %v5714
    %v6520 = vpack.c.b16 %v5722, %v5715
    %v6521 = vpack.c.b16 %v5723, %v5716
    %v6522 = vpack.c.b16 %v5731, %v5724
    %v6523 = vpack.c.b16 %v5732, %v5725
    %v6524 = vpack.c.b16 %v5733, %v5726
    %v6525 = vpack.c.b16 %v5734, %v5727
    %v6526 = vpack.c.b16 %v5735, %v5728
    %v6527 = vpack.c.b16 %v5736, %v5729
    %v6528 = vpack.c.b16 %v5737, %v5730
    %v6529 = vpack.c.b16 %v5745, %v5738
    %v6530 = vpack.c.b16 %v5746, %v5739
    %v6531 = vpack.c.b16 %v5747, %v5740
    %v6532 = vpack.c.b16 %v5748, %v5741
    %v6533 = vpack.c.b16 %v5749, %v5742
    %v6534 = vpack.c.b16 %v5750, %v5743
    %v6535 = vpack.c.b16 %v5751, %v5744
    %v6536 = vpack.c.b16 %v5759, %v5752
    %v6537 = vpack.c.b16 %v5760, %v5753
    %v6538 = vpack.c.b16 %v5761, %v5754
    %v6539 = vpack.c.b16 %v5762, %v5755
    %v6540 = vpack.c.b16 %v5763, %v5756
    %v6541 = vpack.c.b16 %v5764, %v5757
    %v6542 = vpack.c.b16 %v5765, %v5758
    %v6543 = vpack.c.b16 %v5773, %v5766
    %v6544 = vpack.c.b16 %v5774, %v5767
    %v6545 = vpack.c.b16 %v5775, %v5768
    %v6546 = vpack.c.b16 %v5776, %v5769
    %v6547 = vpack.c.b16 %v5777, %v5770
    %v6548 = vpack.c.b16 %v5778, %v5771
    %v6549 = vpack.c.b16 %v5779, %v5772
    %v6550 = vpack.c.b16 %v5787, %v5780
    %v6551 = vpack.c.b16 %v5788, %v5781
    %v6552 = vpack.c.b16 %v5789, %v5782
    %v6553 = vpack.c.b16 %v5790, %v5783
    %v6554 = vpack.c.b16 %v5791, %v5784
    %v6555 = vpack.c.b16 %v5792, %v5785
    %v6556 = vpack.c.b16 %v5793, %v5786
    %v6557 = vpack.c.b16 %v5801, %v5794
    %v6558 = vpack.c.b16 %v5802, %v5795
    %v6559 = vpack.c.b16 %v5803, %v5796
    %v6560 = vpack.c.b16 %v5804, %v5797
    %v6561 = vpack.c.b16 %v5805, %v5798
    %v6562 = vpack.c.b16 %v5806, %v5799
    %v6563 = vpack.c.b16 %v5807, %v5800
    %v6564 = vpack.c.b16 %v5815, %v5808
    %v6565 = vpack.c.b16 %v5816, %v5809
    %v6566 = vpack.c.b16 %v5817, %v5810
    %v6567 = vpack.c.b16 %v5818, %v5811
    %v6568 = vpack.c.b16 %v5819, %v5812
    %v6569 = vpack.c.b16 %v5820, %v5813
    %v6570 = vpack.c.b16 %v5821, %v5814
    %v6571 = vpack.c.b16 %v5829, %v5822
    %v6572 = vpack.c.b16 %v5830, %v5823
    %v6573 = vpack.c.b16 %v5831, %v5824
    %v6574 = vpack.c.b16 %v5832, %v5825
    %v6575 = vpack.c.b16 %v5833, %v5826
    %v6576 = vpack.c.b16 %v5834, %v5827
    %v6577 = vpack.c.b16 %v5835, %v5828
    %v6578 = vpack.c.b16 %v5843, %v5836
    %v6579 = vpack.c.b16 %v5844, %v5837
    %v6580 = vpack.c.b16 %v5845, %v5838
    %v6581 = vpack.c.b16 %v5846, %v5839
    %v6582 = vpack.c.b16 %v5847, %v5840
    %v6583 = vpack.c.b16 %v5848, %v5841
    %v6584 = vpack.c.b16 %v5849, %v5842
    %v6585 = vpack.c.b16 %v5857, %v5850
    %v6586 = vpack.c.b16 %v5858, %v5851
    %v6587 = vpack.c.b16 %v5859, %v5852
    %v6588 = vpack.c.b16 %v5860, %v5853
    %v6589 = vpack.c.b16 %v5861, %v5854
    %v6590 = vpack.c.b16 %v5862, %v5855
    %v6591 = vpack.c.b16 %v5863, %v5856
    %v6592 = vpack.c.b16 %v5871, %v5864
    %v6593 = vpack.c.b16 %v5872, %v5865
    %v6594 = vpack.c.b16 %v5873, %v5866
    %v6595 = vpack.c.b16 %v5874, %v5867
    %v6596 = vpack.c.b16 %v5875, %v5868
    %v6597 = vpack.c.b16 %v5876, %v5869
    %v6598 = vpack.c.b16 %v5877, %v5870
    %v6599 = vpack.c.b16 %v5885, %v5878
    %v6600 = vpack.c.b16 %v5886, %v5879
    %v6601 = vpack.c.b16 %v5887, %v5880
    %v6602 = vpack.c.b16 %v5888, %v5881
    %v6603 = vpack.c.b16 %v5889, %v5882
    %v6604 = vpack.c.b16 %v5890, %v5883
    %v6605 = vpack.c.b16 %v5891, %v5884
    %v6606 = vpack.c.b16 %v5899, %v5892
    %v6607 = vpack.c.b16 %v5900, %v5893
    %v6608 = vpack.c.b16 %v5901, %v5894
    %v6609 = vpack.c.b16 %v5902, %v5895
    %v6610 = vpack.c.b16 %v5903, %v5896
    %v6611 = vpack.c.b16 %v5904, %v5897
    %v6612 = vpack.c.b16 %v5905, %v5898
    %v6613 = vpack.c.b16 %v5913, %v5906
    %v6614 = vpack.c.b16 %v5914, %v5907
    %v6615 = vpack.c.b16 %v5915, %v5908
    %v6616 = vpack.c.b16 %v5916, %v5909
    %v6617 = vpack.c.b16 %v5917, %v5910
    %v6618 = vpack.c.b16 %v5918, %v5911
    %v6619 = vpack.c.b16 %v5919, %v5912
    %v6620 = vpack.c.b16 %v5927, %v5920
    %v6621 = vpack.c.b16 %v5928, %v5921
    %v6622 = vpack.c.b16 %v5929, %v5922
    %v6623 = vpack.c.b16 %v5930, %v5923
    %v6624 = vpack.c.b16 %v5931, %v5924
    %v6625 = vpack.c.b16 %v5932, %v5925
    %v6626 = vpack.c.b16 %v5933, %v5926
    %v6627 = vpack.c.b16 %v5941, %v5934
    %v6628 = vpack.c.b16 %v5942, %v5935
    %v6629 = vpack.c.b16 %v5943, %v5936
    %v6630 = vpack.c.b16 %v5944, %v5937
    %v6631 = vpack.c.b16 %v5945, %v5938
    %v6632 = vpack.c.b16 %v5946, %v5939
    %v6633 = vpack.c.b16 %v5947, %v5940
    %v6634 = vpack.c.b16 %v5955, %v5948
    %v6635 = vpack.c.b16 %v5956, %v5949
    %v6636 = vpack.c.b16 %v5957, %v5950
    %v6637 = vpack.c.b16 %v5958, %v5951
    %v6638 = vpack.c.b16 %v5959, %v5952
    %v6639 = vpack.c.b16 %v5960, %v5953
    %v6640 = vpack.c.b16 %v5961, %v5954
    %v6641 = vpack.c.b16 %v5969, %v5962
    %v6642 = vpack.c.b16 %v5970, %v5963
    %v6643 = vpack.c.b16 %v5971, %v5964
    %v6644 = vpack.c.b16 %v5972, %v5965
    %v6645 = vpack.c.b16 %v5973, %v5966
    %v6646 = vpack.c.b16 %v5974, %v5967
    %v6647 = vpack.c.b16 %v5975, %v5968
    %v6648 = vpack.c.b16 %v5983, %v5976
    %v6649 = vpack.c.b16 %v5984, %v5977
    %v6650 = vpack.c.b16 %v5985, %v5978
    %v6651 = vpack.c.b16 %v5986, %v5979
    %v6652 = vpack.c.b16 %v5987, %v5980
    %v6653 = vpack.c.b16 %v5988, %v5981
    %v6654 = vpack.c.b16 %v5989, %v5982
    %v6655 = vpack.c.b16 %v5997, %v5990
    %v6656 = vpack.c.b16 %v5998, %v5991
    %v6657 = vpack.c.b16 %v5999, %v5992
    %v6658 = vpack.c.b16 %v6000, %v5993
    %v6659 = vpack.c.b16 %v6001, %v5994
    %v6660 = vpack.c.b16 %v6002, %v5995
    %v6661 = vpack.c.b16 %v6003, %v5996
    %v6662 = vpack.c.b16 %v6011, %v6004
    %v6663 = vpack.c.b16 %v6012, %v6005
    %v6664 = vpack.c.b16 %v6013, %v6006
    %v6665 = vpack.c.b16 %v6014, %v6007
    %v6666 = vpack.c.b16 %v6015, %v6008
    %v6667 = vpack.c.b16 %v6016, %v6009
    %v6668 = vpack.c.b16 %v6017, %v6010
    %v6669 = vpack.c.b16 %v6025, %v6018
    %v6670 = vpack.c.b16 %v6026, %v6019
    %v6671 = vpack.c.b16 %v6027, %v6020
    %v6672 = vpack.c.b16 %v6028, %v6021
    %v6673 = vpack.c.b16 %v6029, %v6022
    %v6674 = vpack.c.b16 %v6030, %v6023
    %v6675 = vpack.c.b16 %v6031, %v6024
    %v6676 = vpack.c.b16 %v6039, %v6032
    %v6677 = vpack.c.b16 %v6040, %v6033
    %v6678 = vpack.c.b16 %v6041, %v6034
    %v6679 = vpack.c.b16 %v6042, %v6035
    %v6680 = vpack.c.b16 %v6043, %v6036
    %v6681 = vpack.c.b16 %v6044, %v6037
    %v6682 = vpack.c.b16 %v6045, %v6038
    %v6683 = vpack.c.b16 %v6053, %v6046
    %v6684 = vpack.c.b16 %v6054, %v6047
    %v6685 = vpack.c.b16 %v6055, %v6048
    %v6686 = vpack.c.b16 %v6056, %v6049
    %v6687 = vpack.c.b16 %v6057, %v6050
    %v6688 = vpack.c.b16 %v6058, %v6051
    %v6689 = vpack.c.b16 %v6059, %v6052
    %v6690 = vpack.c.b16 %v6067, %v6060
    %v6691 = vpack.c.b16 %v6068, %v6061
    %v6692 = vpack.c.b16 %v6069, %v6062
    %v6693 = vpack.c.b16 %v6070, %v6063
    %v6694 = vpack.c.b16 %v6071, %v6064
    %v6695 = vpack.c.b16 %v6072, %v6065
    %v6696 = vpack.c.b16 %v6073, %v6066
    %v6697 = vpack.c.b16 %v6081, %v6074
    %v6698 = vpack.c.b16 %v6082, %v6075
    %v6699 = vpack.c.b16 %v6083, %v6076
    %v6700 = vpack.c.b16 %v6084, %v6077
    %v6701 = vpack.c.b16 %v6085, %v6078
    %v6702 = vpack.c.b16 %v6086, %v6079
    %v6703 = vpack.c.b16 %v6087, %v6080
    %v6704 = vpack.c.b16 %v6095, %v6088
    %v6705 = vpack.c.b16 %v6096, %v6089
    %v6706 = vpack.c.b16 %v6097, %v6090
    %v6707 = vpack.c.b16 %v6098, %v6091
    %v6708 = vpack.c.b16 %v6099, %v6092
    %v6709 = vpack.c.b16 %v6100, %v6093
    %v6710 = vpack.c.b16 %v6101, %v6094
    %v6711 = vpack.c.b16 %v6109, %v6102
    %v6712 = vpack.c.b16 %v6110, %v6103
    %v6713 = vpack.c.b16 %v6111, %v6104
    %v6714 = vpack.c.b16 %v6112, %v6105
    %v6715 = vpack.c.b16 %v6113, %v6106
    %v6716 = vpack.c.b16 %v6114, %v6107
    %v6717 = vpack.c.b16 %v6115, %v6108
    %v6718 = vpack.c.b16 %v6123, %v6116
    %v6719 = vpack.c.b16 %v6124, %v6117
    %v6720 = vpack.c.b16 %v6125, %v6118
    %v6721 = vpack.c.b16 %v6126, %v6119
    %v6722 = vpack.c.b16 %v6127, %v6120
    %v6723 = vpack.c.b16 %v6128, %v6121
    %v6724 = vpack.c.b16 %v6129, %v6122
    %v6725 = vpack.c.b16 %v6137, %v6130
    %v6726 = vpack.c.b16 %v6138, %v6131
    %v6727 = vpack.c.b16 %v6139, %v6132
    %v6728 = vpack.c.b16 %v6140, %v6133
    %v6729 = vpack.c.b16 %v6141, %v6134
    %v6730 = vpack.c.b16 %v6142, %v6135
    %v6731 = vpack.c.b16 %v6143, %v6136
    %v6732 = vpack.c.b16 %v6151, %v6144
    %v6733 = vpack.c.b16 %v6152, %v6145
    %v6734 = vpack.c.b16 %v6153, %v6146
    %v6735 = vpack.c.b16 %v6154, %v6147
    %v6736 = vpack.c.b16 %v6155, %v6148
    %v6737 = vpack.c.b16 %v6156, %v6149
    %v6738 = vpack.c.b16 %v6157, %v6150
    %v6739 = vpack.c.b16 %v6165, %v6158
    %v6740 = vpack.c.b16 %v6166, %v6159
    %v6741 = vpack.c.b16 %v6167, %v6160
    %v6742 = vpack.c.b16 %v6168, %v6161
    %v6743 = vpack.c.b16 %v6169, %v6162
    %v6744 = vpack.c.b16 %v6170, %v6163
    %v6745 = vpack.c.b16 %v6171, %v6164
    %v6746 = vpack.c.b16 %v6179, %v6172
    %v6747 = vpack.c.b16 %v6180, %v6173
    %v6748 = vpack.c.b16 %v6181, %v6174
    %v6749 = vpack.c.b16 %v6182, %v6175
    %v6750 = vpack.c.b16 %v6183, %v6176
    %v6751 = vpack.c.b16 %v6184, %v6177
    %v6752 = vpack.c.b16 %v6185, %v6178
    %v6753 = vpack.c.b16 %v6193, %v6186
    %v6754 = vpack.c.b16 %v6194, %v6187
    %v6755 = vpack.c.b16 %v6195, %v6188
    %v6756 = vpack.c.b16 %v6196, %v6189
    %v6757 = vpack.c.b16 %v6197, %v6190
    %v6758 = vpack.c.b16 %v6198, %v6191
    %v6759 = vpack.c.b16 %v6199, %v6192
    %v6760 = vpack.c.b16 %v6207, %v6200
    %v6761 = vpack.c.b16 %v6208, %v6201
    %v6762 = vpack.c.b16 %v6209, %v6202
    %v6763 = vpack.c.b16 %v6210, %v6203
    %v6764 = vpack.c.b16 %v6211, %v6204
    %v6765 = vpack.c.b16 %v6212, %v6205
    %v6766 = vpack.c.b16 %v6213, %v6206
    %v6767 = vpack.c.b16 %v6221, %v6214
    %v6768 = vpack.c.b16 %v6222, %v6215
    %v6769 = vpack.c.b16 %v6223, %v6216
    %v6770 = vpack.c.b16 %v6224, %v6217
    %v6771 = vpack.c.b16 %v6225, %v6218
    %v6772 = vpack.c.b16 %v6226, %v6219
    %v6773 = vpack.c.b16 %v6227, %v6220
    %v6774 = vpack.c.b16 %v6235, %v6228
    %v6775 = vpack.c.b16 %v6236, %v6229
    %v6776 = vpack.c.b16 %v6237, %v6230
    %v6777 = vpack.c.b16 %v6238, %v6231
    %v6778 = vpack.c.b16 %v6239, %v6232
    %v6779 = vpack.c.b16 %v6240, %v6233
    %v6780 = vpack.c.b16 %v6241, %v6234
    %v6781 = vpack.c.b16 %v6249, %v6242
    %v6782 = vpack.c.b16 %v6250, %v6243
    %v6783 = vpack.c.b16 %v6251, %v6244
    %v6784 = vpack.c.b16 %v6252, %v6245
    %v6785 = vpack.c.b16 %v6253, %v6246
    %v6786 = vpack.c.b16 %v6254, %v6247
    %v6787 = vpack.c.b16 %v6255, %v6248
    %v6788 = vpack.c.b16 %v6263, %v6256
    %v6789 = vpack.c.b16 %v6264, %v6257
    %v6790 = vpack.c.b16 %v6265, %v6258
    %v6791 = vpack.c.b16 %v6266, %v6259
    %v6792 = vpack.c.b16 %v6267, %v6260
    %v6793 = vpack.c.b16 %v6268, %v6261
    %v6794 = vpack.c.b16 %v6269, %v6262
    %v6795 = vpack.c.b16 %v6277, %v6270
    %v6796 = vpack.c.b16 %v6278, %v6271
    %v6797 = vpack.c.b16 %v6279, %v6272
    %v6798 = vpack.c.b16 %v6280, %v6273
    %v6799 = vpack.c.b16 %v6281, %v6274
    %v6800 = vpack.c.b16 %v6282, %v6275
    %v6801 = vpack.c.b16 %v6283, %v6276
    %v6802 = vpack.c.b16 %v6291, %v6284
    %v6803 = vpack.c.b16 %v6292, %v6285
    %v6804 = vpack.c.b16 %v6293, %v6286
    %v6805 = vpack.c.b16 %v6294, %v6287
    %v6806 = vpack.c.b16 %v6295, %v6288
    %v6807 = vpack.c.b16 %v6296, %v6289
    %v6808 = vpack.c.b16 %v6297, %v6290
    %v6809 = vpack.c.b16 %v6305, %v6298
    %v6810 = vpack.c.b16 %v6306, %v6299
    %v6811 = vpack.c.b16 %v6307, %v6300
    %v6812 = vpack.c.b16 %v6308, %v6301
    %v6813 = vpack.c.b16 %v6309, %v6302
    %v6814 = vpack.c.b16 %v6310, %v6303
    %v6815 = vpack.c.b16 %v6311, %v6304
    %v6816 = vpack.c.b16 %v6319, %v6312
    %v6817 = vpack.c.b16 %v6320, %v6313
    %v6818 = vpack.c.b16 %v6321, %v6314
    %v6819 = vpack.c.b16 %v6322, %v6315
    %v6820 = vpack.c.b16 %v6323, %v6316
    %v6821 = vpack.c.b16 %v6324, %v6317
    %v6822 = vpack.c.b16 %v6325, %v6318
    %v6823 = vpack.c.b16 %v6333, %v6326
    %v6824 = vpack.c.b16 %v6334, %v6327
    %v6825 = vpack.c.b16 %v6335, %v6328
    %v6826 = vpack.c.b16 %v6336, %v6329
    %v6827 = vpack.c.b16 %v6337, %v6330
    %v6828 = vpack.c.b16 %v6338, %v6331
    %v6829 = vpack.c.b16 %v6339, %v6332
    %v6830 = vpack.c.b16 %v6347, %v6340
    %v6831 = vpack.c.b16 %v6348, %v6341
    %v6832 = vpack.c.b16 %v6349, %v6342
    %v6833 = vpack.c.b16 %v6350, %v6343
    %v6834 = vpack.c.b16 %v6351, %v6344
    %v6835 = vpack.c.b16 %v6352, %v6345
    %v6836 = vpack.c.b16 %v6353, %v6346
    %v6837 = vpack.c.b16 %v6361, %v6354
    %v6838 = vpack.c.b16 %v6362, %v6355
    %v6839 = vpack.c.b16 %v6363, %v6356
    %v6840 = vpack.c.b16 %v6364, %v6357
    %v6841 = vpack.c.b16 %v6365, %v6358
    %v6842 = vpack.c.b16 %v6366, %v6359
    %v6843 = vpack.c.b16 %v6367, %v6360
    %v6844 = vpack.c.b16 %v6375, %v6368
    %v6845 = vpack.c.b16 %v6376, %v6369
    %v6846 = vpack.c.b16 %v6377, %v6370
    %v6847 = vpack.c.b16 %v6378, %v6371
    %v6848 = vpack.c.b16 %v6379, %v6372
    %v6849 = vpack.c.b16 %v6380, %v6373
    %v6850 = vpack.c.b16 %v6381, %v6374
    %v6851 = vpack.c.b16 %v6389, %v6382
    %v6852 = vpack.c.b16 %v6390, %v6383
    %v6853 = vpack.c.b16 %v6391, %v6384
    %v6854 = vpack.c.b16 %v6392, %v6385
    %v6855 = vpack.c.b16 %v6393, %v6386
    %v6856 = vpack.c.b16 %v6394, %v6387
    %v6857 = vpack.c.b16 %v6395, %v6388
    %v6858 = vpack.c.b16 %v6403, %v6396
    %v6859 = vpack.c.b16 %v6404, %v6397
    %v6860 = vpack.c.b16 %v6405, %v6398
    %v6861 = vpack.c.b16 %v6406, %v6399
    %v6862 = vpack.c.b16 %v6407, %v6400
    %v6863 = vpack.c.b16 %v6408, %v6401
    %v6864 = vpack.c.b16 %v6409, %v6402
    %v6865 = vpack.c.b16 %v6417, %v6410
    %v6866 = vpack.c.b16 %v6418, %v6411
    %v6867 = vpack.c.b16 %v6419, %v6412
    %v6868 = vpack.c.b16 %v6420, %v6413
    %v6869 = vpack.c.b16 %v6421, %v6414
    %v6870 = vpack.c.b16 %v6422, %v6415
    %v6871 = vpack.c.b16 %v6423, %v6416
    %7320 = vmatpush.bf16.msra.mxu0 %v6473
    %7321 = vmatpush.bf16.msra.mxu0 %v6466
    %7322 = vmatpush.bf16.msra.mxu0 %v6459
    %7323 = vmatpush.bf16.msra.mxu0 %v6452
    %7324 = vmatpush.bf16.msra.mxu0 %v6445
    %7325 = vmatpush.bf16.msra.mxu0 %v6438
    %7326 = vmatpush.bf16.msra.mxu0 %v6431
    %7327 = vmatpush.bf16.msra.mxu0 %v6424
    %7328 = vmatmul.bf16.gmra.mxu0 %v4480
    %v7329 = vpop.f32.mrf.mxu0
    %v7330 = vadd.f32 %v5002, %v7329
    %v7331 = vpop.f32.mrf.mxu0
    %7332 = vdwg.mxu0
    %7333 = vmatpush.bf16.msra.mxu0 %v6529
    %7334 = vmatpush.bf16.msra.mxu0 %v6522
    %7335 = vmatpush.bf16.msra.mxu0 %v6515
    %7336 = vmatpush.bf16.msra.mxu0 %v6508
    %7337 = vmatpush.bf16.msra.mxu0 %v6501
    %7338 = vmatpush.bf16.msra.mxu0 %v6494
    %7339 = vmatpush.bf16.msra.mxu0 %v6487
    %7340 = vmatpush.bf16.msra.mxu0 %v6480
    %7341 = vmatmul.bf16.gmra.mxu0 %v4481
    %v7342 = vpop.f32.mrf.mxu0
    %v7343 = vadd.f32 %v7330, %v7342
    %v7344 = vpop.f32.mrf.mxu0
    %7345 = vdwg.mxu0
    %7346 = vmatpush.bf16.msra.mxu0 %v6585
    %7347 = vmatpush.bf16.msra.mxu0 %v6578
    %7348 = vmatpush.bf16.msra.mxu0 %v6571
    %7349 = vmatpush.bf16.msra.mxu0 %v6564
    %7350 = vmatpush.bf16.msra.mxu0 %v6557
    %7351 = vmatpush.bf16.msra.mxu0 %v6550
    %7352 = vmatpush.bf16.msra.mxu0 %v6543
    %7353 = vmatpush.bf16.msra.mxu0 %v6536
    %7354 = vmatmul.bf16.gmra.mxu0 %v4482
    %v7355 = vpop.f32.mrf.mxu0
    %v7356 = vadd.f32 %v7343, %v7355
    %v7357 = vpop.f32.mrf.mxu0
    %7358 = vdwg.mxu0
    %7359 = vmatpush.bf16.msra.mxu0 %v6641
    %7360 = vmatpush.bf16.msra.mxu0 %v6634
    %7361 = vmatpush.bf16.msra.mxu0 %v6627
    %7362 = vmatpush.bf16.msra.mxu0 %v6620
    %7363 = vmatpush.bf16.msra.mxu0 %v6613
    %7364 = vmatpush.bf16.msra.mxu0 %v6606
    %7365 = vmatpush.bf16.msra.mxu0 %v6599
    %7366 = vmatpush.bf16.msra.mxu0 %v6592
    %7367 = vmatmul.bf16.gmra.mxu0 %v4483
    %v7368 = vpop.f32.mrf.mxu0
    %v7369 = vadd.f32 %v7356, %v7368
    %v7370 = vpop.f32.mrf.mxu0
    %7371 = vdwg.mxu0
    %7372 = vmatpush.bf16.msra.mxu0 %v6697
    %7373 = vmatpush.bf16.msra.mxu0 %v6690
    %7374 = vmatpush.bf16.msra.mxu0 %v6683
    %7375 = vmatpush.bf16.msra.mxu0 %v6676
    %7376 = vmatpush.bf16.msra.mxu0 %v6669
    %7377 = vmatpush.bf16.msra.mxu0 %v6662
    %7378 = vmatpush.bf16.msra.mxu0 %v6655
    %7379 = vmatpush.bf16.msra.mxu0 %v6648
    %7380 = vmatmul.bf16.gmra.mxu0 %v4484
    %v7381 = vpop.f32.mrf.mxu0
    %v7382 = vadd.f32 %v7369, %v7381
    %v7383 = vpop.f32.mrf.mxu0
    %7384 = vdwg.mxu0
    %7385 = vmatpush.bf16.msra.mxu0 %v6753
    %7386 = vmatpush.bf16.msra.mxu0 %v6746
    %7387 = vmatpush.bf16.msra.mxu0 %v6739
    %7388 = vmatpush.bf16.msra.mxu0 %v6732
    %7389 = vmatpush.bf16.msra.mxu0 %v6725
    %7390 = vmatpush.bf16.msra.mxu0 %v6718
    %7391 = vmatpush.bf16.msra.mxu0 %v6711
    %7392 = vmatpush.bf16.msra.mxu0 %v6704
    %7393 = vmatmul.bf16.gmra.mxu0 %v4485
    %v7394 = vpop.f32.mrf.mxu0
    %v7395 = vadd.f32 %v7382, %v7394
    %v7396 = vpop.f32.mrf.mxu0
    %7397 = vdwg.mxu0
    %7398 = vmatpush.bf16.msra.mxu0 %v6809
    %7399 = vmatpush.bf16.msra.mxu0 %v6802
    %7400 = vmatpush.bf16.msra.mxu0 %v6795
    %7401 = vmatpush.bf16.msra.mxu0 %v6788
    %7402 = vmatpush.bf16.msra.mxu0 %v6781
    %7403 = vmatpush.bf16.msra.mxu0 %v6774
    %7404 = vmatpush.bf16.msra.mxu0 %v6767
    %7405 = vmatpush.bf16.msra.mxu0 %v6760
    %7406 = vmatmul.bf16.gmra.mxu0 %v4486
    %v7407 = vpop.f32.mrf.mxu0
    %v7408 = vadd.f32 %v7395, %v7407
    %v7409 = vpop.f32.mrf.mxu0
    %7410 = vdwg.mxu0
    %7411 = vmatpush.bf16.msra.mxu0 %v6865
    %7412 = vmatpush.bf16.msra.mxu0 %v6858
    %7413 = vmatpush.bf16.msra.mxu0 %v6851
    %7414 = vmatpush.bf16.msra.mxu0 %v6844
    %7415 = vmatpush.bf16.msra.mxu0 %v6837
    %7416 = vmatpush.bf16.msra.mxu0 %v6830
    %7417 = vmatpush.bf16.msra.mxu0 %v6823
    %7418 = vmatpush.bf16.msra.mxu0 %v6816
    %7419 = vmatmul.bf16.gmra.mxu0 %v4487
    %v7420 = vpop.f32.mrf.mxu0
    %v7421 = vadd.f32 %v7408, %v7420
    %v7422 = vpop.f32.mrf.mxu0
    %7423 = vdwg.mxu0
    %7424 = vmatpush.bf16.msra.mxu0 %v6474
    %7425 = vmatpush.bf16.msra.mxu0 %v6467
    %7426 = vmatpush.bf16.msra.mxu0 %v6460
    %7427 = vmatpush.bf16.msra.mxu0 %v6453
    %7428 = vmatpush.bf16.msra.mxu0 %v6446
    %7429 = vmatpush.bf16.msra.mxu0 %v6439
    %7430 = vmatpush.bf16.msra.mxu0 %v6432
    %7431 = vmatpush.bf16.msra.mxu0 %v6425
    %7432 = vmatmul.bf16.gmra.mxu0 %v4480
    %v7433 = vpop.f32.mrf.mxu0
    %v7434 = vadd.f32 %v5003, %v7433
    %v7435 = vpop.f32.mrf.mxu0
    %7436 = vdwg.mxu0
    %7437 = vmatpush.bf16.msra.mxu0 %v6530
    %7438 = vmatpush.bf16.msra.mxu0 %v6523
    %7439 = vmatpush.bf16.msra.mxu0 %v6516
    %7440 = vmatpush.bf16.msra.mxu0 %v6509
    %7441 = vmatpush.bf16.msra.mxu0 %v6502
    %7442 = vmatpush.bf16.msra.mxu0 %v6495
    %7443 = vmatpush.bf16.msra.mxu0 %v6488
    %7444 = vmatpush.bf16.msra.mxu0 %v6481
    %7445 = vmatmul.bf16.gmra.mxu0 %v4481
    %v7446 = vpop.f32.mrf.mxu0
    %v7447 = vadd.f32 %v7434, %v7446
    %v7448 = vpop.f32.mrf.mxu0
    %7449 = vdwg.mxu0
    %7450 = vmatpush.bf16.msra.mxu0 %v6586
    %7451 = vmatpush.bf16.msra.mxu0 %v6579
    %7452 = vmatpush.bf16.msra.mxu0 %v6572
    %7453 = vmatpush.bf16.msra.mxu0 %v6565
    %7454 = vmatpush.bf16.msra.mxu0 %v6558
    %7455 = vmatpush.bf16.msra.mxu0 %v6551
    %7456 = vmatpush.bf16.msra.mxu0 %v6544
    %7457 = vmatpush.bf16.msra.mxu0 %v6537
    %7458 = vmatmul.bf16.gmra.mxu0 %v4482
    %v7459 = vpop.f32.mrf.mxu0
    %v7460 = vadd.f32 %v7447, %v7459
    %v7461 = vpop.f32.mrf.mxu0
    %7462 = vdwg.mxu0
    %7463 = vmatpush.bf16.msra.mxu0 %v6642
    %7464 = vmatpush.bf16.msra.mxu0 %v6635
    %7465 = vmatpush.bf16.msra.mxu0 %v6628
    %7466 = vmatpush.bf16.msra.mxu0 %v6621
    %7467 = vmatpush.bf16.msra.mxu0 %v6614
    %7468 = vmatpush.bf16.msra.mxu0 %v6607
    %7469 = vmatpush.bf16.msra.mxu0 %v6600
    %7470 = vmatpush.bf16.msra.mxu0 %v6593
    %7471 = vmatmul.bf16.gmra.mxu0 %v4483
    %v7472 = vpop.f32.mrf.mxu0
    %v7473 = vadd.f32 %v7460, %v7472
    %v7474 = vpop.f32.mrf.mxu0
    %7475 = vdwg.mxu0
    %7476 = vmatpush.bf16.msra.mxu0 %v6698
    %7477 = vmatpush.bf16.msra.mxu0 %v6691
    %7478 = vmatpush.bf16.msra.mxu0 %v6684
    %7479 = vmatpush.bf16.msra.mxu0 %v6677
    %7480 = vmatpush.bf16.msra.mxu0 %v6670
    %7481 = vmatpush.bf16.msra.mxu0 %v6663
    %7482 = vmatpush.bf16.msra.mxu0 %v6656
    %7483 = vmatpush.bf16.msra.mxu0 %v6649
    %7484 = vmatmul.bf16.gmra.mxu0 %v4484
    %v7485 = vpop.f32.mrf.mxu0
    %v7486 = vadd.f32 %v7473, %v7485
    %v7487 = vpop.f32.mrf.mxu0
    %7488 = vdwg.mxu0
    %7489 = vmatpush.bf16.msra.mxu0 %v6754
    %7490 = vmatpush.bf16.msra.mxu0 %v6747
    %7491 = vmatpush.bf16.msra.mxu0 %v6740
    %7492 = vmatpush.bf16.msra.mxu0 %v6733
    %7493 = vmatpush.bf16.msra.mxu0 %v6726
    %7494 = vmatpush.bf16.msra.mxu0 %v6719
    %7495 = vmatpush.bf16.msra.mxu0 %v6712
    %7496 = vmatpush.bf16.msra.mxu0 %v6705
    %7497 = vmatmul.bf16.gmra.mxu0 %v4485
    %v7498 = vpop.f32.mrf.mxu0
    %v7499 = vadd.f32 %v7486, %v7498
    %v7500 = vpop.f32.mrf.mxu0
    %7501 = vdwg.mxu0
    %7502 = vmatpush.bf16.msra.mxu0 %v6810
    %7503 = vmatpush.bf16.msra.mxu0 %v6803
    %7504 = vmatpush.bf16.msra.mxu0 %v6796
    %7505 = vmatpush.bf16.msra.mxu0 %v6789
    %7506 = vmatpush.bf16.msra.mxu0 %v6782
    %7507 = vmatpush.bf16.msra.mxu0 %v6775
    %7508 = vmatpush.bf16.msra.mxu0 %v6768
    %7509 = vmatpush.bf16.msra.mxu0 %v6761
    %7510 = vmatmul.bf16.gmra.mxu0 %v4486
    %v7511 = vpop.f32.mrf.mxu0
    %v7512 = vadd.f32 %v7499, %v7511
    %v7513 = vpop.f32.mrf.mxu0
    %7514 = vdwg.mxu0
    %7515 = vmatpush.bf16.msra.mxu0 %v6866
    %7516 = vmatpush.bf16.msra.mxu0 %v6859
    %7517 = vmatpush.bf16.msra.mxu0 %v6852
    %7518 = vmatpush.bf16.msra.mxu0 %v6845
    %7519 = vmatpush.bf16.msra.mxu0 %v6838
    %7520 = vmatpush.bf16.msra.mxu0 %v6831
    %7521 = vmatpush.bf16.msra.mxu0 %v6824
    %7522 = vmatpush.bf16.msra.mxu0 %v6817
    %7523 = vmatmul.bf16.gmra.mxu0 %v4487
    %v7524 = vpop.f32.mrf.mxu0
    %v7525 = vadd.f32 %v7512, %v7524
    %v7526 = vpop.f32.mrf.mxu0
    %7527 = vdwg.mxu0
    %7528 = vmatpush.bf16.msra.mxu0 %v6475
    %7529 = vmatpush.bf16.msra.mxu0 %v6468
    %7530 = vmatpush.bf16.msra.mxu0 %v6461
    %7531 = vmatpush.bf16.msra.mxu0 %v6454
    %7532 = vmatpush.bf16.msra.mxu0 %v6447
    %7533 = vmatpush.bf16.msra.mxu0 %v6440
    %7534 = vmatpush.bf16.msra.mxu0 %v6433
    %7535 = vmatpush.bf16.msra.mxu0 %v6426
    %7536 = vmatmul.bf16.gmra.mxu0 %v4480
    %v7537 = vpop.f32.mrf.mxu0
    %v7538 = vadd.f32 %v5004, %v7537
    %v7539 = vpop.f32.mrf.mxu0
    %7540 = vdwg.mxu0
    %7541 = vmatpush.bf16.msra.mxu0 %v6531
    %7542 = vmatpush.bf16.msra.mxu0 %v6524
    %7543 = vmatpush.bf16.msra.mxu0 %v6517
    %7544 = vmatpush.bf16.msra.mxu0 %v6510
    %7545 = vmatpush.bf16.msra.mxu0 %v6503
    %7546 = vmatpush.bf16.msra.mxu0 %v6496
    %7547 = vmatpush.bf16.msra.mxu0 %v6489
    %7548 = vmatpush.bf16.msra.mxu0 %v6482
    %7549 = vmatmul.bf16.gmra.mxu0 %v4481
    %v7550 = vpop.f32.mrf.mxu0
    %v7551 = vadd.f32 %v7538, %v7550
    %v7552 = vpop.f32.mrf.mxu0
    %7553 = vdwg.mxu0
    %7554 = vmatpush.bf16.msra.mxu0 %v6587
    %7555 = vmatpush.bf16.msra.mxu0 %v6580
    %7556 = vmatpush.bf16.msra.mxu0 %v6573
    %7557 = vmatpush.bf16.msra.mxu0 %v6566
    %7558 = vmatpush.bf16.msra.mxu0 %v6559
    %7559 = vmatpush.bf16.msra.mxu0 %v6552
    %7560 = vmatpush.bf16.msra.mxu0 %v6545
    %7561 = vmatpush.bf16.msra.mxu0 %v6538
    %7562 = vmatmul.bf16.gmra.mxu0 %v4482
    %v7563 = vpop.f32.mrf.mxu0
    %v7564 = vadd.f32 %v7551, %v7563
    %v7565 = vpop.f32.mrf.mxu0
    %7566 = vdwg.mxu0
    %7567 = vmatpush.bf16.msra.mxu0 %v6643
    %7568 = vmatpush.bf16.msra.mxu0 %v6636
    %7569 = vmatpush.bf16.msra.mxu0 %v6629
    %7570 = vmatpush.bf16.msra.mxu0 %v6622
    %7571 = vmatpush.bf16.msra.mxu0 %v6615
    %7572 = vmatpush.bf16.msra.mxu0 %v6608
    %7573 = vmatpush.bf16.msra.mxu0 %v6601
    %7574 = vmatpush.bf16.msra.mxu0 %v6594
    %7575 = vmatmul.bf16.gmra.mxu0 %v4483
    %v7576 = vpop.f32.mrf.mxu0
    %v7577 = vadd.f32 %v7564, %v7576
    %v7578 = vpop.f32.mrf.mxu0
    %7579 = vdwg.mxu0
    %7580 = vmatpush.bf16.msra.mxu0 %v6699
    %7581 = vmatpush.bf16.msra.mxu0 %v6692
    %7582 = vmatpush.bf16.msra.mxu0 %v6685
    %7583 = vmatpush.bf16.msra.mxu0 %v6678
    %7584 = vmatpush.bf16.msra.mxu0 %v6671
    %7585 = vmatpush.bf16.msra.mxu0 %v6664
    %7586 = vmatpush.bf16.msra.mxu0 %v6657
    %7587 = vmatpush.bf16.msra.mxu0 %v6650
    %7588 = vmatmul.bf16.gmra.mxu0 %v4484
    %v7589 = vpop.f32.mrf.mxu0
    %v7590 = vadd.f32 %v7577, %v7589
    %v7591 = vpop.f32.mrf.mxu0
    %7592 = vdwg.mxu0
    %7593 = vmatpush.bf16.msra.mxu0 %v6755
    %7594 = vmatpush.bf16.msra.mxu0 %v6748
    %7595 = vmatpush.bf16.msra.mxu0 %v6741
    %7596 = vmatpush.bf16.msra.mxu0 %v6734
    %7597 = vmatpush.bf16.msra.mxu0 %v6727
    %7598 = vmatpush.bf16.msra.mxu0 %v6720
    %7599 = vmatpush.bf16.msra.mxu0 %v6713
    %7600 = vmatpush.bf16.msra.mxu0 %v6706
    %7601 = vmatmul.bf16.gmra.mxu0 %v4485
    %v7602 = vpop.f32.mrf.mxu0
    %v7603 = vadd.f32 %v7590, %v7602
    %v7604 = vpop.f32.mrf.mxu0
    %7605 = vdwg.mxu0
    %7606 = vmatpush.bf16.msra.mxu0 %v6811
    %7607 = vmatpush.bf16.msra.mxu0 %v6804
    %7608 = vmatpush.bf16.msra.mxu0 %v6797
    %7609 = vmatpush.bf16.msra.mxu0 %v6790
    %7610 = vmatpush.bf16.msra.mxu0 %v6783
    %7611 = vmatpush.bf16.msra.mxu0 %v6776
    %7612 = vmatpush.bf16.msra.mxu0 %v6769
    %7613 = vmatpush.bf16.msra.mxu0 %v6762
    %7614 = vmatmul.bf16.gmra.mxu0 %v4486
    %v7615 = vpop.f32.mrf.mxu0
    %v7616 = vadd.f32 %v7603, %v7615
    %v7617 = vpop.f32.mrf.mxu0
    %7618 = vdwg.mxu0
    %7619 = vmatpush.bf16.msra.mxu0 %v6867
    %7620 = vmatpush.bf16.msra.mxu0 %v6860
    %7621 = vmatpush.bf16.msra.mxu0 %v6853
    %7622 = vmatpush.bf16.msra.mxu0 %v6846
    %7623 = vmatpush.bf16.msra.mxu0 %v6839
    %7624 = vmatpush.bf16.msra.mxu0 %v6832
    %7625 = vmatpush.bf16.msra.mxu0 %v6825
    %7626 = vmatpush.bf16.msra.mxu0 %v6818
    %7627 = vmatmul.bf16.gmra.mxu0 %v4487
    %v7628 = vpop.f32.mrf.mxu0
    %v7629 = vadd.f32 %v7616, %v7628
    %v7630 = vpop.f32.mrf.mxu0
    %7631 = vdwg.mxu0
    %7632 = vmatpush.bf16.msra.mxu0 %v6476
    %7633 = vmatpush.bf16.msra.mxu0 %v6469
    %7634 = vmatpush.bf16.msra.mxu0 %v6462
    %7635 = vmatpush.bf16.msra.mxu0 %v6455
    %7636 = vmatpush.bf16.msra.mxu0 %v6448
    %7637 = vmatpush.bf16.msra.mxu0 %v6441
    %7638 = vmatpush.bf16.msra.mxu0 %v6434
    %7639 = vmatpush.bf16.msra.mxu0 %v6427
    %7640 = vmatmul.bf16.gmra.mxu0 %v4480
    %v7641 = vpop.f32.mrf.mxu0
    %v7642 = vadd.f32 %v5005, %v7641
    %v7643 = vpop.f32.mrf.mxu0
    %7644 = vdwg.mxu0
    %7645 = vmatpush.bf16.msra.mxu0 %v6532
    %7646 = vmatpush.bf16.msra.mxu0 %v6525
    %7647 = vmatpush.bf16.msra.mxu0 %v6518
    %7648 = vmatpush.bf16.msra.mxu0 %v6511
    %7649 = vmatpush.bf16.msra.mxu0 %v6504
    %7650 = vmatpush.bf16.msra.mxu0 %v6497
    %7651 = vmatpush.bf16.msra.mxu0 %v6490
    %7652 = vmatpush.bf16.msra.mxu0 %v6483
    %7653 = vmatmul.bf16.gmra.mxu0 %v4481
    %v7654 = vpop.f32.mrf.mxu0
    %v7655 = vadd.f32 %v7642, %v7654
    %v7656 = vpop.f32.mrf.mxu0
    %7657 = vdwg.mxu0
    %7658 = vmatpush.bf16.msra.mxu0 %v6588
    %7659 = vmatpush.bf16.msra.mxu0 %v6581
    %7660 = vmatpush.bf16.msra.mxu0 %v6574
    %7661 = vmatpush.bf16.msra.mxu0 %v6567
    %7662 = vmatpush.bf16.msra.mxu0 %v6560
    %7663 = vmatpush.bf16.msra.mxu0 %v6553
    %7664 = vmatpush.bf16.msra.mxu0 %v6546
    %7665 = vmatpush.bf16.msra.mxu0 %v6539
    %7666 = vmatmul.bf16.gmra.mxu0 %v4482
    %v7667 = vpop.f32.mrf.mxu0
    %v7668 = vadd.f32 %v7655, %v7667
    %v7669 = vpop.f32.mrf.mxu0
    %7670 = vdwg.mxu0
    %7671 = vmatpush.bf16.msra.mxu0 %v6644
    %7672 = vmatpush.bf16.msra.mxu0 %v6637
    %7673 = vmatpush.bf16.msra.mxu0 %v6630
    %7674 = vmatpush.bf16.msra.mxu0 %v6623
    %7675 = vmatpush.bf16.msra.mxu0 %v6616
    %7676 = vmatpush.bf16.msra.mxu0 %v6609
    %7677 = vmatpush.bf16.msra.mxu0 %v6602
    %7678 = vmatpush.bf16.msra.mxu0 %v6595
    %7679 = vmatmul.bf16.gmra.mxu0 %v4483
    %v7680 = vpop.f32.mrf.mxu0
    %v7681 = vadd.f32 %v7668, %v7680
    %v7682 = vpop.f32.mrf.mxu0
    %7683 = vdwg.mxu0
    %7684 = vmatpush.bf16.msra.mxu0 %v6700
    %7685 = vmatpush.bf16.msra.mxu0 %v6693
    %7686 = vmatpush.bf16.msra.mxu0 %v6686
    %7687 = vmatpush.bf16.msra.mxu0 %v6679
    %7688 = vmatpush.bf16.msra.mxu0 %v6672
    %7689 = vmatpush.bf16.msra.mxu0 %v6665
    %7690 = vmatpush.bf16.msra.mxu0 %v6658
    %7691 = vmatpush.bf16.msra.mxu0 %v6651
    %7692 = vmatmul.bf16.gmra.mxu0 %v4484
    %v7693 = vpop.f32.mrf.mxu0
    %v7694 = vadd.f32 %v7681, %v7693
    %v7695 = vpop.f32.mrf.mxu0
    %7696 = vdwg.mxu0
    %7697 = vmatpush.bf16.msra.mxu0 %v6756
    %7698 = vmatpush.bf16.msra.mxu0 %v6749
    %7699 = vmatpush.bf16.msra.mxu0 %v6742
    %7700 = vmatpush.bf16.msra.mxu0 %v6735
    %7701 = vmatpush.bf16.msra.mxu0 %v6728
    %7702 = vmatpush.bf16.msra.mxu0 %v6721
    %7703 = vmatpush.bf16.msra.mxu0 %v6714
    %7704 = vmatpush.bf16.msra.mxu0 %v6707
    %7705 = vmatmul.bf16.gmra.mxu0 %v4485
    %v7706 = vpop.f32.mrf.mxu0
    %v7707 = vadd.f32 %v7694, %v7706
    %v7708 = vpop.f32.mrf.mxu0
    %7709 = vdwg.mxu0
    %7710 = vmatpush.bf16.msra.mxu0 %v6812
    %7711 = vmatpush.bf16.msra.mxu0 %v6805
    %7712 = vmatpush.bf16.msra.mxu0 %v6798
    %7713 = vmatpush.bf16.msra.mxu0 %v6791
    %7714 = vmatpush.bf16.msra.mxu0 %v6784
    %7715 = vmatpush.bf16.msra.mxu0 %v6777
    %7716 = vmatpush.bf16.msra.mxu0 %v6770
    %7717 = vmatpush.bf16.msra.mxu0 %v6763
    %7718 = vmatmul.bf16.gmra.mxu0 %v4486
    %v7719 = vpop.f32.mrf.mxu0
    %v7720 = vadd.f32 %v7707, %v7719
    %v7721 = vpop.f32.mrf.mxu0
    %7722 = vdwg.mxu0
    %7723 = vmatpush.bf16.msra.mxu0 %v6868
    %7724 = vmatpush.bf16.msra.mxu0 %v6861
    %7725 = vmatpush.bf16.msra.mxu0 %v6854
    %7726 = vmatpush.bf16.msra.mxu0 %v6847
    %7727 = vmatpush.bf16.msra.mxu0 %v6840
    %7728 = vmatpush.bf16.msra.mxu0 %v6833
    %7729 = vmatpush.bf16.msra.mxu0 %v6826
    %7730 = vmatpush.bf16.msra.mxu0 %v6819
    %7731 = vmatmul.bf16.gmra.mxu0 %v4487
    %v7732 = vpop.f32.mrf.mxu0
    %v7733 = vadd.f32 %v7720, %v7732
    %v7734 = vpop.f32.mrf.mxu0
    %7735 = vdwg.mxu0
    %7736 = vmatpush.bf16.msra.mxu0 %v6477
    %7737 = vmatpush.bf16.msra.mxu0 %v6470
    %7738 = vmatpush.bf16.msra.mxu0 %v6463
    %7739 = vmatpush.bf16.msra.mxu0 %v6456
    %7740 = vmatpush.bf16.msra.mxu0 %v6449
    %7741 = vmatpush.bf16.msra.mxu0 %v6442
    %7742 = vmatpush.bf16.msra.mxu0 %v6435
    %7743 = vmatpush.bf16.msra.mxu0 %v6428
    %7744 = vmatmul.bf16.gmra.mxu0 %v4480
    %v7745 = vpop.f32.mrf.mxu0
    %v7746 = vadd.f32 %v5006, %v7745
    %v7747 = vpop.f32.mrf.mxu0
    %7748 = vdwg.mxu0
    %7749 = vmatpush.bf16.msra.mxu0 %v6533
    %7750 = vmatpush.bf16.msra.mxu0 %v6526
    %7751 = vmatpush.bf16.msra.mxu0 %v6519
    %7752 = vmatpush.bf16.msra.mxu0 %v6512
    %7753 = vmatpush.bf16.msra.mxu0 %v6505
    %7754 = vmatpush.bf16.msra.mxu0 %v6498
    %7755 = vmatpush.bf16.msra.mxu0 %v6491
    %7756 = vmatpush.bf16.msra.mxu0 %v6484
    %7757 = vmatmul.bf16.gmra.mxu0 %v4481
    %v7758 = vpop.f32.mrf.mxu0
    %v7759 = vadd.f32 %v7746, %v7758
    %v7760 = vpop.f32.mrf.mxu0
    %7761 = vdwg.mxu0
    %7762 = vmatpush.bf16.msra.mxu0 %v6589
    %7763 = vmatpush.bf16.msra.mxu0 %v6582
    %7764 = vmatpush.bf16.msra.mxu0 %v6575
    %7765 = vmatpush.bf16.msra.mxu0 %v6568
    %7766 = vmatpush.bf16.msra.mxu0 %v6561
    %7767 = vmatpush.bf16.msra.mxu0 %v6554
    %7768 = vmatpush.bf16.msra.mxu0 %v6547
    %7769 = vmatpush.bf16.msra.mxu0 %v6540
    %7770 = vmatmul.bf16.gmra.mxu0 %v4482
    %v7771 = vpop.f32.mrf.mxu0
    %v7772 = vadd.f32 %v7759, %v7771
    %v7773 = vpop.f32.mrf.mxu0
    %7774 = vdwg.mxu0
    %7775 = vmatpush.bf16.msra.mxu0 %v6645
    %7776 = vmatpush.bf16.msra.mxu0 %v6638
    %7777 = vmatpush.bf16.msra.mxu0 %v6631
    %7778 = vmatpush.bf16.msra.mxu0 %v6624
    %7779 = vmatpush.bf16.msra.mxu0 %v6617
    %7780 = vmatpush.bf16.msra.mxu0 %v6610
    %7781 = vmatpush.bf16.msra.mxu0 %v6603
    %7782 = vmatpush.bf16.msra.mxu0 %v6596
    %7783 = vmatmul.bf16.gmra.mxu0 %v4483
    %v7784 = vpop.f32.mrf.mxu0
    %v7785 = vadd.f32 %v7772, %v7784
    %v7786 = vpop.f32.mrf.mxu0
    %7787 = vdwg.mxu0
    %7788 = vmatpush.bf16.msra.mxu0 %v6701
    %7789 = vmatpush.bf16.msra.mxu0 %v6694
    %7790 = vmatpush.bf16.msra.mxu0 %v6687
    %7791 = vmatpush.bf16.msra.mxu0 %v6680
    %7792 = vmatpush.bf16.msra.mxu0 %v6673
    %7793 = vmatpush.bf16.msra.mxu0 %v6666
    %7794 = vmatpush.bf16.msra.mxu0 %v6659
    %7795 = vmatpush.bf16.msra.mxu0 %v6652
    %7796 = vmatmul.bf16.gmra.mxu0 %v4484
    %v7797 = vpop.f32.mrf.mxu0
    %v7798 = vadd.f32 %v7785, %v7797
    %v7799 = vpop.f32.mrf.mxu0
    %7800 = vdwg.mxu0
    %7801 = vmatpush.bf16.msra.mxu0 %v6757
    %7802 = vmatpush.bf16.msra.mxu0 %v6750
    %7803 = vmatpush.bf16.msra.mxu0 %v6743
    %7804 = vmatpush.bf16.msra.mxu0 %v6736
    %7805 = vmatpush.bf16.msra.mxu0 %v6729
    %7806 = vmatpush.bf16.msra.mxu0 %v6722
    %7807 = vmatpush.bf16.msra.mxu0 %v6715
    %7808 = vmatpush.bf16.msra.mxu0 %v6708
    %7809 = vmatmul.bf16.gmra.mxu0 %v4485
    %v7810 = vpop.f32.mrf.mxu0
    %v7811 = vadd.f32 %v7798, %v7810
    %v7812 = vpop.f32.mrf.mxu0
    %7813 = vdwg.mxu0
    %7814 = vmatpush.bf16.msra.mxu0 %v6813
    %7815 = vmatpush.bf16.msra.mxu0 %v6806
    %7816 = vmatpush.bf16.msra.mxu0 %v6799
    %7817 = vmatpush.bf16.msra.mxu0 %v6792
    %7818 = vmatpush.bf16.msra.mxu0 %v6785
    %7819 = vmatpush.bf16.msra.mxu0 %v6778
    %7820 = vmatpush.bf16.msra.mxu0 %v6771
    %7821 = vmatpush.bf16.msra.mxu0 %v6764
    %7822 = vmatmul.bf16.gmra.mxu0 %v4486
    %v7823 = vpop.f32.mrf.mxu0
    %v7824 = vadd.f32 %v7811, %v7823
    %v7825 = vpop.f32.mrf.mxu0
    %7826 = vdwg.mxu0
    %7827 = vmatpush.bf16.msra.mxu0 %v6869
    %7828 = vmatpush.bf16.msra.mxu0 %v6862
    %7829 = vmatpush.bf16.msra.mxu0 %v6855
    %7830 = vmatpush.bf16.msra.mxu0 %v6848
    %7831 = vmatpush.bf16.msra.mxu0 %v6841
    %7832 = vmatpush.bf16.msra.mxu0 %v6834
    %7833 = vmatpush.bf16.msra.mxu0 %v6827
    %7834 = vmatpush.bf16.msra.mxu0 %v6820
    %7835 = vmatmul.bf16.gmra.mxu0 %v4487
    %v7836 = vpop.f32.mrf.mxu0
    %v7837 = vadd.f32 %v7824, %v7836
    %v7838 = vpop.f32.mrf.mxu0
    %7839 = vdwg.mxu0
    %7840 = vmatpush.bf16.msra.mxu0 %v6478
    %7841 = vmatpush.bf16.msra.mxu0 %v6471
    %7842 = vmatpush.bf16.msra.mxu0 %v6464
    %7843 = vmatpush.bf16.msra.mxu0 %v6457
    %7844 = vmatpush.bf16.msra.mxu0 %v6450
    %7845 = vmatpush.bf16.msra.mxu0 %v6443
    %7846 = vmatpush.bf16.msra.mxu0 %v6436
    %7847 = vmatpush.bf16.msra.mxu0 %v6429
    %7848 = vmatmul.bf16.gmra.mxu0 %v4480
    %v7849 = vpop.f32.mrf.mxu0
    %v7850 = vadd.f32 %v5007, %v7849
    %v7851 = vpop.f32.mrf.mxu0
    %7852 = vdwg.mxu0
    %7853 = vmatpush.bf16.msra.mxu0 %v6534
    %7854 = vmatpush.bf16.msra.mxu0 %v6527
    %7855 = vmatpush.bf16.msra.mxu0 %v6520
    %7856 = vmatpush.bf16.msra.mxu0 %v6513
    %7857 = vmatpush.bf16.msra.mxu0 %v6506
    %7858 = vmatpush.bf16.msra.mxu0 %v6499
    %7859 = vmatpush.bf16.msra.mxu0 %v6492
    %7860 = vmatpush.bf16.msra.mxu0 %v6485
    %7861 = vmatmul.bf16.gmra.mxu0 %v4481
    %v7862 = vpop.f32.mrf.mxu0
    %v7863 = vadd.f32 %v7850, %v7862
    %v7864 = vpop.f32.mrf.mxu0
    %7865 = vdwg.mxu0
    %7866 = vmatpush.bf16.msra.mxu0 %v6590
    %7867 = vmatpush.bf16.msra.mxu0 %v6583
    %7868 = vmatpush.bf16.msra.mxu0 %v6576
    %7869 = vmatpush.bf16.msra.mxu0 %v6569
    %7870 = vmatpush.bf16.msra.mxu0 %v6562
    %7871 = vmatpush.bf16.msra.mxu0 %v6555
    %7872 = vmatpush.bf16.msra.mxu0 %v6548
    %7873 = vmatpush.bf16.msra.mxu0 %v6541
    %7874 = vmatmul.bf16.gmra.mxu0 %v4482
    %v7875 = vpop.f32.mrf.mxu0
    %v7876 = vadd.f32 %v7863, %v7875
    %v7877 = vpop.f32.mrf.mxu0
    %7878 = vdwg.mxu0
    %7879 = vmatpush.bf16.msra.mxu0 %v6646
    %7880 = vmatpush.bf16.msra.mxu0 %v6639
    %7881 = vmatpush.bf16.msra.mxu0 %v6632
    %7882 = vmatpush.bf16.msra.mxu0 %v6625
    %7883 = vmatpush.bf16.msra.mxu0 %v6618
    %7884 = vmatpush.bf16.msra.mxu0 %v6611
    %7885 = vmatpush.bf16.msra.mxu0 %v6604
    %7886 = vmatpush.bf16.msra.mxu0 %v6597
    %7887 = vmatmul.bf16.gmra.mxu0 %v4483
    %v7888 = vpop.f32.mrf.mxu0
    %v7889 = vadd.f32 %v7876, %v7888
    %v7890 = vpop.f32.mrf.mxu0
    %7891 = vdwg.mxu0
    %7892 = vmatpush.bf16.msra.mxu0 %v6702
    %7893 = vmatpush.bf16.msra.mxu0 %v6695
    %7894 = vmatpush.bf16.msra.mxu0 %v6688
    %7895 = vmatpush.bf16.msra.mxu0 %v6681
    %7896 = vmatpush.bf16.msra.mxu0 %v6674
    %7897 = vmatpush.bf16.msra.mxu0 %v6667
    %7898 = vmatpush.bf16.msra.mxu0 %v6660
    %7899 = vmatpush.bf16.msra.mxu0 %v6653
    %7900 = vmatmul.bf16.gmra.mxu0 %v4484
    %v7901 = vpop.f32.mrf.mxu0
    %v7902 = vadd.f32 %v7889, %v7901
    %v7903 = vpop.f32.mrf.mxu0
    %7904 = vdwg.mxu0
    %7905 = vmatpush.bf16.msra.mxu0 %v6758
    %7906 = vmatpush.bf16.msra.mxu0 %v6751
    %7907 = vmatpush.bf16.msra.mxu0 %v6744
    %7908 = vmatpush.bf16.msra.mxu0 %v6737
    %7909 = vmatpush.bf16.msra.mxu0 %v6730
    %7910 = vmatpush.bf16.msra.mxu0 %v6723
    %7911 = vmatpush.bf16.msra.mxu0 %v6716
    %7912 = vmatpush.bf16.msra.mxu0 %v6709
    %7913 = vmatmul.bf16.gmra.mxu0 %v4485
    %v7914 = vpop.f32.mrf.mxu0
    %v7915 = vadd.f32 %v7902, %v7914
    %v7916 = vpop.f32.mrf.mxu0
    %7917 = vdwg.mxu0
    %7918 = vmatpush.bf16.msra.mxu0 %v6814
    %7919 = vmatpush.bf16.msra.mxu0 %v6807
    %7920 = vmatpush.bf16.msra.mxu0 %v6800
    %7921 = vmatpush.bf16.msra.mxu0 %v6793
    %7922 = vmatpush.bf16.msra.mxu0 %v6786
    %7923 = vmatpush.bf16.msra.mxu0 %v6779
    %7924 = vmatpush.bf16.msra.mxu0 %v6772
    %7925 = vmatpush.bf16.msra.mxu0 %v6765
    %7926 = vmatmul.bf16.gmra.mxu0 %v4486
    %v7927 = vpop.f32.mrf.mxu0
    %v7928 = vadd.f32 %v7915, %v7927
    %v7929 = vpop.f32.mrf.mxu0
    %7930 = vdwg.mxu0
    %7931 = vmatpush.bf16.msra.mxu0 %v6870
    %7932 = vmatpush.bf16.msra.mxu0 %v6863
    %7933 = vmatpush.bf16.msra.mxu0 %v6856
    %7934 = vmatpush.bf16.msra.mxu0 %v6849
    %7935 = vmatpush.bf16.msra.mxu0 %v6842
    %7936 = vmatpush.bf16.msra.mxu0 %v6835
    %7937 = vmatpush.bf16.msra.mxu0 %v6828
    %7938 = vmatpush.bf16.msra.mxu0 %v6821
    %7939 = vmatmul.bf16.gmra.mxu0 %v4487
    %v7940 = vpop.f32.mrf.mxu0
    %v7941 = vadd.f32 %v7928, %v7940
    %v7942 = vpop.f32.mrf.mxu0
    %7943 = vdwg.mxu0
    %7944 = vmatpush.bf16.msra.mxu0 %v6479
    %7945 = vmatpush.bf16.msra.mxu0 %v6472
    %7946 = vmatpush.bf16.msra.mxu0 %v6465
    %7947 = vmatpush.bf16.msra.mxu0 %v6458
    %7948 = vmatpush.bf16.msra.mxu0 %v6451
    %7949 = vmatpush.bf16.msra.mxu0 %v6444
    %7950 = vmatpush.bf16.msra.mxu0 %v6437
    %7951 = vmatpush.bf16.msra.mxu0 %v6430
    %7952 = vmatmul.bf16.gmra.mxu0 %v4480
    %v7953 = vpop.f32.mrf.mxu0
    %v7954 = vadd.f32 %v5008, %v7953
    %v7955 = vpop.f32.mrf.mxu0
    %7956 = vdwg.mxu0
    %7957 = vmatpush.bf16.msra.mxu0 %v6535
    %7958 = vmatpush.bf16.msra.mxu0 %v6528
    %7959 = vmatpush.bf16.msra.mxu0 %v6521
    %7960 = vmatpush.bf16.msra.mxu0 %v6514
    %7961 = vmatpush.bf16.msra.mxu0 %v6507
    %7962 = vmatpush.bf16.msra.mxu0 %v6500
    %7963 = vmatpush.bf16.msra.mxu0 %v6493
    %7964 = vmatpush.bf16.msra.mxu0 %v6486
    %7965 = vmatmul.bf16.gmra.mxu0 %v4481
    %v7966 = vpop.f32.mrf.mxu0
    %v7967 = vadd.f32 %v7954, %v7966
    %v7968 = vpop.f32.mrf.mxu0
    %7969 = vdwg.mxu0
    %7970 = vmatpush.bf16.msra.mxu0 %v6591
    %7971 = vmatpush.bf16.msra.mxu0 %v6584
    %7972 = vmatpush.bf16.msra.mxu0 %v6577
    %7973 = vmatpush.bf16.msra.mxu0 %v6570
    %7974 = vmatpush.bf16.msra.mxu0 %v6563
    %7975 = vmatpush.bf16.msra.mxu0 %v6556
    %7976 = vmatpush.bf16.msra.mxu0 %v6549
    %7977 = vmatpush.bf16.msra.mxu0 %v6542
    %7978 = vmatmul.bf16.gmra.mxu0 %v4482
    %v7979 = vpop.f32.mrf.mxu0
    %v7980 = vadd.f32 %v7967, %v7979
    %v7981 = vpop.f32.mrf.mxu0
    %7982 = vdwg.mxu0
    %7983 = vmatpush.bf16.msra.mxu0 %v6647
    %7984 = vmatpush.bf16.msra.mxu0 %v6640
    %7985 = vmatpush.bf16.msra.mxu0 %v6633
    %7986 = vmatpush.bf16.msra.mxu0 %v6626
    %7987 = vmatpush.bf16.msra.mxu0 %v6619
    %7988 = vmatpush.bf16.msra.mxu0 %v6612
    %7989 = vmatpush.bf16.msra.mxu0 %v6605
    %7990 = vmatpush.bf16.msra.mxu0 %v6598
    %7991 = vmatmul.bf16.gmra.mxu0 %v4483
    %v7992 = vpop.f32.mrf.mxu0
    %v7993 = vadd.f32 %v7980, %v7992
    %v7994 = vpop.f32.mrf.mxu0
    %7995 = vdwg.mxu0
    %7996 = vmatpush.bf16.msra.mxu0 %v6703
    %7997 = vmatpush.bf16.msra.mxu0 %v6696
    %7998 = vmatpush.bf16.msra.mxu0 %v6689
    %7999 = vmatpush.bf16.msra.mxu0 %v6682
    %8000 = vmatpush.bf16.msra.mxu0 %v6675
    %8001 = vmatpush.bf16.msra.mxu0 %v6668
    %8002 = vmatpush.bf16.msra.mxu0 %v6661
    %8003 = vmatpush.bf16.msra.mxu0 %v6654
    %8004 = vmatmul.bf16.gmra.mxu0 %v4484
    %v8005 = vpop.f32.mrf.mxu0
    %v8006 = vadd.f32 %v7993, %v8005
    %v8007 = vpop.f32.mrf.mxu0
    %8008 = vdwg.mxu0
    %8009 = vmatpush.bf16.msra.mxu0 %v6759
    %8010 = vmatpush.bf16.msra.mxu0 %v6752
    %8011 = vmatpush.bf16.msra.mxu0 %v6745
    %8012 = vmatpush.bf16.msra.mxu0 %v6738
    %8013 = vmatpush.bf16.msra.mxu0 %v6731
    %8014 = vmatpush.bf16.msra.mxu0 %v6724
    %8015 = vmatpush.bf16.msra.mxu0 %v6717
    %8016 = vmatpush.bf16.msra.mxu0 %v6710
    %8017 = vmatmul.bf16.gmra.mxu0 %v4485
    %v8018 = vpop.f32.mrf.mxu0
    %v8019 = vadd.f32 %v8006, %v8018
    %v8020 = vpop.f32.mrf.mxu0
    %8021 = vdwg.mxu0
    %8022 = vmatpush.bf16.msra.mxu0 %v6815
    %8023 = vmatpush.bf16.msra.mxu0 %v6808
    %8024 = vmatpush.bf16.msra.mxu0 %v6801
    %8025 = vmatpush.bf16.msra.mxu0 %v6794
    %8026 = vmatpush.bf16.msra.mxu0 %v6787
    %8027 = vmatpush.bf16.msra.mxu0 %v6780
    %8028 = vmatpush.bf16.msra.mxu0 %v6773
    %8029 = vmatpush.bf16.msra.mxu0 %v6766
    %8030 = vmatmul.bf16.gmra.mxu0 %v4486
    %v8031 = vpop.f32.mrf.mxu0
    %v8032 = vadd.f32 %v8019, %v8031
    %v8033 = vpop.f32.mrf.mxu0
    %8034 = vdwg.mxu0
    %8035 = vmatpush.bf16.msra.mxu0 %v6871
    %8036 = vmatpush.bf16.msra.mxu0 %v6864
    %8037 = vmatpush.bf16.msra.mxu0 %v6857
    %8038 = vmatpush.bf16.msra.mxu0 %v6850
    %8039 = vmatpush.bf16.msra.mxu0 %v6843
    %8040 = vmatpush.bf16.msra.mxu0 %v6836
    %8041 = vmatpush.bf16.msra.mxu0 %v6829
    %8042 = vmatpush.bf16.msra.mxu0 %v6822
    %8043 = vmatmul.bf16.gmra.mxu0 %v4487
    %v8044 = vpop.f32.mrf.mxu0
    %v8045 = vadd.f32 %v8032, %v8044
    %v8046 = vpop.f32.mrf.mxu0
    %8047 = vdwg.mxu0
    %v8048 = vtanh.pop %v7421
    %v8049 = vtanh.pop %v7525
    %v8050 = vtanh.pop %v7629
    %v8051 = vtanh.pop %v7733
    %v8052 = vtanh.pop %v7837
    %v8053 = vtanh.pop %v7941
    %v8054 = vtanh.pop %v8045
    %8055 = vst [vmem:[#allocation2] sm:$0xff] %v8048
    %8056 = vst [vmem:[#allocation2 + $0x8] sm:$0xff] %v8049
    %8057 = vst [vmem:[#allocation2 + $0x10] sm:$0xff] %v8050
    %8058 = vst [vmem:[#allocation2 + $0x18] sm:$0xff] %v8051
    %8059 = vst [vmem:[#allocation2 + $0x20] sm:$0xff] %v8052
    %8060 = vst [vmem:[#allocation2 + $0x28] sm:$0xff] %v8053
    %vm8061 = vcmask 130048
    %8062 = vst.msk [vmem:[#allocation2 + $0x30] sm:$0xff] %vm8061, %v8054
    // Predicated region
    $region30: #{tpu_custom_call.1} parent=1 // pred_check
      _
    $region31: #{tpu_custom_call.1} parent=1 // pred_check_branch
      %8064 = sbr.rel (0) target = $region33
    $region32: #{tpu_custom_call.1} parent=1 // pred_region
      %8066 = vsyncadd [#allocation3], 0
      %s8068 = sshll.u32 [#allocation2], 4
      %s8069 = int_to_ptr.vmem [resolvable:$true] %s8068
      %s8070 = sshll.u32 %s7, 4
      %s8071 = int_to_ptr.hbm [resolvable:$true] %s8070
      %8073 = dma.vmem_to_hbm [thread:$0]  %s8069, 896, %s8071, [#allocation3]
    $region33: #{tpu_custom_call.1} parent=1 // pred_fallthru
      _
    // Predicated region
    $region34: #{tpu_custom_call.1} parent=1 // pred_check
      _
    $region35: #{tpu_custom_call.1} parent=1 // pred_check_branch
      %8075 = sbr.rel (0) target = $region37
    $region36: #{tpu_custom_call.1} parent=1 // pred_region
      %8077 = dma.done [#allocation3], 896
    $region37: #{tpu_custom_call.1} parent=1 // pred_fallthru
      _
    %8078 = vsyncpa [#allocation3], 1

</llo_original>
